<compile_context>
chip_gen: v7x
topology: tpu7x:2x2x1
jax: 0.10.0
libtpu: 0.0.40
codegen_flags: <defaults>
</compile_context>

<pallas_src>
import functools
import math

import jax
import jax.numpy as jnp
import numpy as np
from jax.experimental import pallas as pl
from jax.experimental.pallas import tpu as pltpu


# ----------------------------------------------------------------------------
# Adaptive-average-pool matrices (exact nn.AdaptiveAvgPool2d semantics):
# row-stochastic M (out, in) with M @ v == adaptive_avg_pool1d(v).
# ----------------------------------------------------------------------------
def _adaptive_pool_matrix(out_dim, in_dim):
    m = np.zeros((out_dim, in_dim), dtype=np.float32)
    for i in range(out_dim):
        s = (i * in_dim) // out_dim
        e = -(-((i + 1) * in_dim) // out_dim)  # ceil
        m[i, s:e] = 1.0 / (e - s)
    return m


# ----------------------------------------------------------------------------
# Single fused kernel: pool -> BiLSTM layer 0 -> BiLSTM layer 1 -> classifier.
# All operands are full-array VMEM blocks (no grid); the time recurrence is a
# fully unrolled static loop with VMEM-scratch layer outputs.
# ----------------------------------------------------------------------------
def _lstm_block_kernel(x_ref, ahT_ref, pblk_ref,
                       wih0_ref, whh0_ref, b0_ref,
                       wih1_ref, whh1_ref, b1_ref,
                       cw_ref, cb_ref,
                       o_ref,
                       outf_ref, outb_ref,
                       *, batch, seq_len, hidden):
    f32 = jnp.float32
    B, T, H = batch, seq_len, hidden
    G = 4 * H  # per-direction gate width (i|f|g|o)

    # ---- 1) adaptive average pool as two matmuls --------------------------
    # x_ref: (B*Wimg, Himg), row = b*Wimg + w ;  ahT: (Himg, F)
    y = jnp.dot(x_ref[...], ahT_ref[...], preferred_element_type=f32)   # (B*Wimg, F)
    # pblk: (T*B, B*Wimg) block width-pool matrix with time-major rows (t*B + b)
    pooled = jnp.dot(pblk_ref[...], y, preferred_element_type=f32)      # (T*B, F)

    # ---- shared fused-direction BiLSTM layer -------------------------------
    def bilstm_layer(xp, whh):
        # xp : (T*B, 8H) hoisted input projection (+bias), columns [fwd 4H | bwd 4H]
        # whh: (2H, 8H) block-diagonal [[Whh_f^T, 0], [0, Whh_b^T]]
        h_cat = jnp.zeros((B, 2 * H), f32)      # [h_fwd | h_bwd]
        c_f = jnp.zeros((B, H), f32)
        c_b = jnp.zeros((B, H), f32)

        def cell(gates, c):
            i = jax.nn.sigmoid(gates[:, 0 * H:1 * H])
            f = jax.nn.sigmoid(gates[:, 1 * H:2 * H])
            g = jnp.tanh(gates[:, 2 * H:3 * H])
            o = jax.nn.sigmoid(gates[:, 3 * H:4 * H])
            c_new = f * c + i * g
            return o * jnp.tanh(c_new), c_new

        for s in range(T):
            # one block-diagonal recurrent matmul for both directions
            rec = jnp.dot(h_cat, whh, preferred_element_type=f32)       # (B, 8H)
            gf = rec[:, :G] + xp[s * B:(s + 1) * B, :G]                 # time s
            gb = rec[:, G:] + xp[(T - 1 - s) * B:(T - s) * B, G:]       # time T-1-s
            h_f, c_f = cell(gf, c_f)
            h_b, c_b = cell(gb, c_b)
            outf_ref[s * B:(s + 1) * B, :] = h_f
            outb_ref[(T - 1 - s) * B:(T - s) * B, :] = h_b
            h_cat = jnp.concatenate([h_f, h_b], axis=1)                 # (B, 2H)

    # ---- 2) layer 0: hoisted input projection + recurrence -----------------
    xp0 = jnp.dot(pooled, wih0_ref[...], preferred_element_type=f32) + b0_ref[...]
    bilstm_layer(xp0, whh0_ref[...])

    # ---- 3) layer 1: input is [fwd|bwd] of layer 0; concat avoided by ------
    #         splitting the input weight into its fwd/bwd row blocks.
    wih1 = wih1_ref[...]
    xp1 = (jnp.dot(outf_ref[...], wih1[:H, :], preferred_element_type=f32)
           + jnp.dot(outb_ref[...], wih1[H:, :], preferred_element_type=f32)
           + b1_ref[...])
    bilstm_layer(xp1, whh1_ref[...])

    # ---- 4) classifier + log_softmax over 128-lane padded class dim --------
    cw = cw_ref[...]
    logits = (jnp.dot(outf_ref[...], cw[:H, :], preferred_element_type=f32)
              + jnp.dot(outb_ref[...], cw[H:, :], preferred_element_type=f32)
              + cb_ref[...])                                            # (T*B, CP)
    m = jnp.max(logits, axis=-1, keepdims=True)
    z = logits - m
    lse = jnp.log(jnp.sum(jnp.exp(z), axis=-1, keepdims=True))
    o_ref[...] = z - lse


# ----------------------------------------------------------------------------
# Parameter init (PyTorch nn.LSTM / nn.Linear shaped) and one-time fusion of the
# weights into the kernel's layout.
# ----------------------------------------------------------------------------
def init_params(key, input_size, hidden, num_layers, num_classes):
    params = {"lstm": []}
    k = 1.0 / math.sqrt(hidden)
    for layer in range(num_layers):
        in_size = input_size if layer == 0 else 2 * hidden
        dirs = []
        for _direction in range(2):  # forward, reverse
            key, k0, k1, k2, k3 = jax.random.split(key, 5)
            dirs.append(dict(
                w_ih=jax.random.uniform(k0, (4 * hidden, in_size), jnp.float32, -k, k),
                w_hh=jax.random.uniform(k1, (4 * hidden, hidden), jnp.float32, -k, k),
                b_ih=jax.random.uniform(k2, (4 * hidden,), jnp.float32, -k, k),
                b_hh=jax.random.uniform(k3, (4 * hidden,), jnp.float32, -k, k),
            ))
        params["lstm"].append(dirs)
    key, kw, kb = jax.random.split(key, 3)
    kc = 1.0 / math.sqrt(2 * hidden)
    params["cls_w"] = jax.random.uniform(kw, (num_classes, 2 * hidden), jnp.float32, -kc, kc)
    params["cls_b"] = jax.random.uniform(kb, (num_classes,), jnp.float32, -kc, kc)
    return params


def _fuse_layer(dirs, hidden):
    fw, bw = dirs
    wih = jnp.concatenate([fw["w_ih"].T, bw["w_ih"].T], axis=1)            # (Din, 8H)
    zero = jnp.zeros((hidden, 4 * hidden), jnp.float32)
    whh = jnp.concatenate(
        [jnp.concatenate([fw["w_hh"].T, zero], axis=1),
         jnp.concatenate([zero, bw["w_hh"].T], axis=1)], axis=0)           # (2H, 8H)
    bias = jnp.concatenate(
        [fw["b_ih"] + fw["b_hh"], bw["b_ih"] + bw["b_hh"]])[None, :]       # (1, 8H)
    return wih, whh, bias


def prepare_fused(params, *, img_h, img_w, batch, time_feature_count, width,
                  hidden, num_classes):
    assert len(params["lstm"]) == 2, "fused kernel is specialized to lstm_len=2"
    F, T, H, B, C = time_feature_count, width, hidden, batch, num_classes
    cp = max(128, ((C + 127) // 128) * 128)   # lane-padded class dim

    ah_t = jnp.asarray(_adaptive_pool_matrix(F, img_h).T)                  # (Himg, F)
    aw = _adaptive_pool_matrix(T, img_w)                                   # (T, Wimg)
    pblk = np.zeros((T * B, B * img_w), np.float32)                        # time-major rows
    for t in range(T):
        for b in range(B):
            pblk[t * B + b, b * img_w:(b + 1) * img_w] = aw[t]

    wih0, whh0, b0 = _fuse_layer(params["lstm"][0], H)
    wih1, whh1, b1 = _fuse_layer(params["lstm"][1], H)
    cw = jnp.zeros((2 * H, cp), jnp.float32).at[:, :C].set(params["cls_w"].T)
    cb = jnp.full((1, cp), -1e30, jnp.float32).at[0, :C].set(params["cls_b"])
    return dict(ahT=ah_t, pblk=jnp.asarray(pblk),
                wih0=wih0, whh0=whh0, b0=b0,
                wih1=wih1, whh1=whh1, b1=b1,
                cw=cw, cb=cb)


# ----------------------------------------------------------------------------
# Forward pass: one pallas_call + pure layout plumbing in the wrapper.
# ----------------------------------------------------------------------------
def lstm_block_forward(fused, x, *, width, hidden, num_classes):
    b, img_h, img_w = x.shape
    t = width
    cp = fused["cw"].shape[1]
    # layout plumbing only: (B, Himg, Wimg) -> (B*Wimg, Himg), row = b*Wimg + w
    x2 = jnp.transpose(x, (0, 2, 1)).reshape(b * img_w, img_h)

    kernel = functools.partial(_lstm_block_kernel, batch=b, seq_len=t, hidden=hidden)
    out_flat = pl.pallas_call(
        kernel,
        out_shape=jax.ShapeDtypeStruct((t * b, cp), jnp.float32),
        in_specs=[pl.BlockSpec(memory_space=pltpu.MemorySpace.VMEM)] * 11,
        out_specs=pl.BlockSpec(memory_space=pltpu.MemorySpace.VMEM),
        scratch_shapes=[pltpu.VMEM((t * b, hidden), jnp.float32),   # fwd hidden outputs
                        pltpu.VMEM((t * b, hidden), jnp.float32)],  # bwd hidden outputs
    )(x2, fused["ahT"], fused["pblk"],
      fused["wih0"], fused["whh0"], fused["b0"],
      fused["wih1"], fused["whh1"], fused["b1"],
      fused["cw"], fused["cb"])

    # rows are already time-major (t*B + b) == PyTorch log_softmax(...).permute(1,0,2)
    return out_flat[:, :num_classes].reshape(t, b, num_classes)


if __name__ == "__main__":
    # Small, module-consistent sizes.
    B = 2
    H_IMG, W_IMG = 48, 20          # raw "image" fed to AdaptiveAvgPool2d
    TIME_FEATURE_COUNT = 32        # pooled height -> LSTM input feature size
    WIDTH = 8                      # pooled width  -> sequence length T
    LSTM_HIDDEN = 32
    LSTM_LEN = 2
    NUM_CLASSES = 10

    key = jax.random.PRNGKey(0)
    key, kx, kp = jax.random.split(key, 3)
    x = jax.random.normal(kx, (B, H_IMG, W_IMG), dtype=jnp.float32)
    params = init_params(kp, TIME_FEATURE_COUNT, LSTM_HIDDEN, LSTM_LEN, NUM_CLASSES)
    fused = prepare_fused(params, img_h=H_IMG, img_w=W_IMG, batch=B,
                          time_feature_count=TIME_FEATURE_COUNT, width=WIDTH,
                          hidden=LSTM_HIDDEN, num_classes=NUM_CLASSES)

    fwd = jax.jit(functools.partial(
        lstm_block_forward, width=WIDTH, hidden=LSTM_HIDDEN, num_classes=NUM_CLASSES))
    out = jax.block_until_ready(fwd(fused, x))

    assert out.shape == (WIDTH, B, NUM_CLASSES), out.shape
    assert bool(jnp.all(jnp.isfinite(out)))
    # log_softmax rows must exponentiate-sum to ~1
    assert bool(jnp.allclose(jnp.sum(jnp.exp(out), axis=-1), 1.0, atol=1e-4))
    print("KERNEL_OK")
</pallas_src>

<mosaic_0001>
module attributes {stable_mosaic.version = 11 : i64} {
  func.func @_lstm_block_kernel(%arg0: memref<40x48xf32, #tpu.memory_space<vmem>>, %arg1: memref<48x32xf32, #tpu.memory_space<vmem>>, %arg2: memref<16x40xf32, #tpu.memory_space<vmem>>, %arg3: memref<32x256xf32, #tpu.memory_space<vmem>>, %arg4: memref<64x256xf32, #tpu.memory_space<vmem>>, %arg5: memref<1x256xf32, #tpu.memory_space<vmem>>, %arg6: memref<64x256xf32, #tpu.memory_space<vmem>>, %arg7: memref<64x256xf32, #tpu.memory_space<vmem>>, %arg8: memref<1x256xf32, #tpu.memory_space<vmem>>, %arg9: memref<64x128xf32, #tpu.memory_space<vmem>>, %arg10: memref<1x128xf32, #tpu.memory_space<vmem>>, %arg11: memref<16x128xf32, #tpu.memory_space<vmem>>, %arg12: memref<16x32xf32, #tpu.memory_space<vmem>>, %arg13: memref<16x32xf32, #tpu.memory_space<vmem>>) attributes {dimension_semantics = [], scalar_prefetch = 0 : i64, scratch_operands = 2 : i64, tpu.core_type = #tpu.core_type<tc>} {
    %c0 = arith.constant 0 : index
    %c0_0 = arith.constant 0 : index
    %0 = vector.load %arg0[%c0, %c0_0] : memref<40x48xf32, #tpu.memory_space<vmem>>, vector<40x48xf32>
    %c0_1 = arith.constant 0 : index
    %c0_2 = arith.constant 0 : index
    %1 = vector.load %arg1[%c0_1, %c0_2] : memref<48x32xf32, #tpu.memory_space<vmem>>, vector<48x32xf32>
    %cst = arith.constant dense<0.000000e+00> : vector<40x32xf32>
    %2 = tpu.matmul %0, %1, %cst {dimension_numbers = #tpu.dot_dimension_numbers<[1], [0], [0], [1], [0, 0, 1, 1], [], []>} : vector<40x48xf32>, vector<48x32xf32>, vector<40x32xf32> -> vector<40x32xf32>
    %c0_3 = arith.constant 0 : index
    %c0_4 = arith.constant 0 : index
    %3 = vector.load %arg2[%c0_3, %c0_4] : memref<16x40xf32, #tpu.memory_space<vmem>>, vector<16x40xf32>
    %cst_5 = arith.constant dense<0.000000e+00> : vector<16x32xf32>
    %4 = tpu.matmul %3, %2, %cst_5 {dimension_numbers = #tpu.dot_dimension_numbers<[1], [0], [0], [1], [0, 0, 1, 1], [], []>} : vector<16x40xf32>, vector<40x32xf32>, vector<16x32xf32> -> vector<16x32xf32>
    %c0_6 = arith.constant 0 : index
    %c0_7 = arith.constant 0 : index
    %5 = vector.load %arg3[%c0_6, %c0_7] : memref<32x256xf32, #tpu.memory_space<vmem>>, vector<32x256xf32>
    %cst_8 = arith.constant dense<0.000000e+00> : vector<16x256xf32>
    %6 = tpu.matmul %4, %5, %cst_8 {dimension_numbers = #tpu.dot_dimension_numbers<[1], [0], [0], [1], [0, 0, 1, 1], [], []>} : vector<16x32xf32>, vector<32x256xf32>, vector<16x256xf32> -> vector<16x256xf32>
    %c0_9 = arith.constant 0 : index
    %c0_10 = arith.constant 0 : index
    %7 = vector.load %arg5[%c0_9, %c0_10] : memref<1x256xf32, #tpu.memory_space<vmem>>, vector<1x256xf32>
    %8 = vector.broadcast %7 : vector<1x256xf32> to vector<16x256xf32>
    %9 = arith.addf %6, %8 : vector<16x256xf32>
    %c0_11 = arith.constant 0 : index
    %c0_12 = arith.constant 0 : index
    %10 = vector.load %arg4[%c0_11, %c0_12] : memref<64x256xf32, #tpu.memory_space<vmem>>, vector<64x256xf32>
    %cst_13 = arith.constant 0.000000e+00 : f32
    %11 = vector.broadcast %cst_13 : f32 to vector<2x64xf32>
    %cst_14 = arith.constant 0.000000e+00 : f32
    %12 = vector.broadcast %cst_14 : f32 to vector<2x32xf32>
    %cst_15 = arith.constant 0.000000e+00 : f32
    %13 = vector.broadcast %cst_15 : f32 to vector<2x32xf32>
    %cst_16 = arith.constant dense<0.000000e+00> : vector<2x256xf32>
    %14 = tpu.matmul %11, %10, %cst_16 {dimension_numbers = #tpu.dot_dimension_numbers<[1], [0], [0], [1], [0, 0, 1, 1], [], []>} : vector<2x64xf32>, vector<64x256xf32>, vector<2x256xf32> -> vector<2x256xf32>
    %15 = vector.extract_strided_slice %14 {offsets = [0, 0], sizes = [2, 128], strides = [1, 1]} : vector<2x256xf32> to vector<2x128xf32>
    %16 = vector.extract_strided_slice %9 {offsets = [0, 0], sizes = [2, 128], strides = [1, 1]} : vector<16x256xf32> to vector<2x128xf32>
    %17 = arith.addf %15, %16 : vector<2x128xf32>
    %18 = vector.extract_strided_slice %14 {offsets = [0, 128], sizes = [2, 128], strides = [1, 1]} : vector<2x256xf32> to vector<2x128xf32>
    %19 = vector.extract_strided_slice %9 {offsets = [14, 128], sizes = [2, 128], strides = [1, 1]} : vector<16x256xf32> to vector<2x128xf32>
    %20 = arith.addf %18, %19 : vector<2x128xf32>
    %21 = vector.extract_strided_slice %17 {offsets = [0, 0], sizes = [2, 32], strides = [1, 1]} : vector<2x128xf32> to vector<2x32xf32>
    %22 = arith.negf %21 : vector<2x32xf32>
    %23 = math.exp %22 : vector<2x32xf32>
    %cst_17 = arith.constant 1.000000e+00 : f32
    %24 = vector.broadcast %cst_17 : f32 to vector<2x32xf32>
    %25 = arith.addf %24, %23 : vector<2x32xf32>
    %26 = arith.divf %24, %25 : vector<2x32xf32>
    %27 = vector.extract_strided_slice %17 {offsets = [0, 32], sizes = [2, 32], strides = [1, 1]} : vector<2x128xf32> to vector<2x32xf32>
    %28 = arith.negf %27 : vector<2x32xf32>
    %29 = math.exp %28 : vector<2x32xf32>
    %cst_18 = arith.constant 1.000000e+00 : f32
    %30 = vector.broadcast %cst_18 : f32 to vector<2x32xf32>
    %31 = arith.addf %30, %29 : vector<2x32xf32>
    %32 = arith.divf %30, %31 : vector<2x32xf32>
    %33 = vector.extract_strided_slice %17 {offsets = [0, 64], sizes = [2, 32], strides = [1, 1]} : vector<2x128xf32> to vector<2x32xf32>
    %34 = math.tanh %33 : vector<2x32xf32>
    %35 = vector.extract_strided_slice %17 {offsets = [0, 96], sizes = [2, 32], strides = [1, 1]} : vector<2x128xf32> to vector<2x32xf32>
    %36 = arith.negf %35 : vector<2x32xf32>
    %37 = math.exp %36 : vector<2x32xf32>
    %cst_19 = arith.constant 1.000000e+00 : f32
    %38 = vector.broadcast %cst_19 : f32 to vector<2x32xf32>
    %39 = arith.addf %38, %37 : vector<2x32xf32>
    %40 = arith.divf %38, %39 : vector<2x32xf32>
    %41 = arith.mulf %32, %12 : vector<2x32xf32>
    %42 = arith.mulf %26, %34 : vector<2x32xf32>
    %43 = arith.addf %41, %42 : vector<2x32xf32>
    %44 = math.tanh %43 : vector<2x32xf32>
    %45 = arith.mulf %40, %44 : vector<2x32xf32>
    %46 = vector.extract_strided_slice %20 {offsets = [0, 0], sizes = [2, 32], strides = [1, 1]} : vector<2x128xf32> to vector<2x32xf32>
    %47 = arith.negf %46 : vector<2x32xf32>
    %48 = math.exp %47 : vector<2x32xf32>
    %cst_20 = arith.constant 1.000000e+00 : f32
    %49 = vector.broadcast %cst_20 : f32 to vector<2x32xf32>
    %50 = arith.addf %49, %48 : vector<2x32xf32>
    %51 = arith.divf %49, %50 : vector<2x32xf32>
    %52 = vector.extract_strided_slice %20 {offsets = [0, 32], sizes = [2, 32], strides = [1, 1]} : vector<2x128xf32> to vector<2x32xf32>
    %53 = arith.negf %52 : vector<2x32xf32>
    %54 = math.exp %53 : vector<2x32xf32>
    %cst_21 = arith.constant 1.000000e+00 : f32
    %55 = vector.broadcast %cst_21 : f32 to vector<2x32xf32>
    %56 = arith.addf %55, %54 : vector<2x32xf32>
    %57 = arith.divf %55, %56 : vector<2x32xf32>
    %58 = vector.extract_strided_slice %20 {offsets = [0, 64], sizes = [2, 32], strides = [1, 1]} : vector<2x128xf32> to vector<2x32xf32>
    %59 = math.tanh %58 : vector<2x32xf32>
    %60 = vector.extract_strided_slice %20 {offsets = [0, 96], sizes = [2, 32], strides = [1, 1]} : vector<2x128xf32> to vector<2x32xf32>
    %61 = arith.negf %60 : vector<2x32xf32>
    %62 = math.exp %61 : vector<2x32xf32>
    %cst_22 = arith.constant 1.000000e+00 : f32
    %63 = vector.broadcast %cst_22 : f32 to vector<2x32xf32>
    %64 = arith.addf %63, %62 : vector<2x32xf32>
    %65 = arith.divf %63, %64 : vector<2x32xf32>
    %66 = arith.mulf %57, %13 : vector<2x32xf32>
    %67 = arith.mulf %51, %59 : vector<2x32xf32>
    %68 = arith.addf %66, %67 : vector<2x32xf32>
    %69 = math.tanh %68 : vector<2x32xf32>
    %70 = arith.mulf %65, %69 : vector<2x32xf32>
    %c0_23 = arith.constant 0 : index
    %c0_24 = arith.constant 0 : index
    %71 = vector.load %arg12[%c0_23, %c0_24] : memref<16x32xf32, #tpu.memory_space<vmem>>, vector<2x32xf32>
    tpu.vector_store %arg12[%c0_23, %c0_24], %45 {strides = array<i32>} : memref<16x32xf32, #tpu.memory_space<vmem>>, vector<2x32xf32>,
    %c14 = arith.constant 14 : index
    %c0_25 = arith.constant 0 : index
    %72 = vector.load %arg13[%c14, %c0_25] : memref<16x32xf32, #tpu.memory_space<vmem>>, vector<2x32xf32>
    tpu.vector_store %arg13[%c14, %c0_25], %70 {strides = array<i32>} : memref<16x32xf32, #tpu.memory_space<vmem>>, vector<2x32xf32>,
    %73 = tpu.concatenate %45, %70 in 1 : vector<2x32xf32>, vector<2x32xf32> -> vector<2x64xf32>
    %cst_26 = arith.constant dense<0.000000e+00> : vector<2x256xf32>
    %74 = tpu.matmul %73, %10, %cst_26 {dimension_numbers = #tpu.dot_dimension_numbers<[1], [0], [0], [1], [0, 0, 1, 1], [], []>} : vector<2x64xf32>, vector<64x256xf32>, vector<2x256xf32> -> vector<2x256xf32>
    %75 = vector.extract_strided_slice %74 {offsets = [0, 0], sizes = [2, 128], strides = [1, 1]} : vector<2x256xf32> to vector<2x128xf32>
    %76 = vector.extract_strided_slice %9 {offsets = [2, 0], sizes = [2, 128], strides = [1, 1]} : vector<16x256xf32> to vector<2x128xf32>
    %77 = arith.addf %75, %76 : vector<2x128xf32>
    %78 = vector.extract_strided_slice %74 {offsets = [0, 128], sizes = [2, 128], strides = [1, 1]} : vector<2x256xf32> to vector<2x128xf32>
    %79 = vector.extract_strided_slice %9 {offsets = [12, 128], sizes = [2, 128], strides = [1, 1]} : vector<16x256xf32> to vector<2x128xf32>
    %80 = arith.addf %78, %79 : vector<2x128xf32>
    %81 = vector.extract_strided_slice %77 {offsets = [0, 0], sizes = [2, 32], strides = [1, 1]} : vector<2x128xf32> to vector<2x32xf32>
    %82 = arith.negf %81 : vector<2x32xf32>
    %83 = math.exp %82 : vector<2x32xf32>
    %cst_27 = arith.constant 1.000000e+00 : f32
    %84 = vector.broadcast %cst_27 : f32 to vector<2x32xf32>
    %85 = arith.addf %84, %83 : vector<2x32xf32>
    %86 = arith.divf %84, %85 : vector<2x32xf32>
    %87 = vector.extract_strided_slice %77 {offsets = [0, 32], sizes = [2, 32], strides = [1, 1]} : vector<2x128xf32> to vector<2x32xf32>
    %88 = arith.negf %87 : vector<2x32xf32>
    %89 = math.exp %88 : vector<2x32xf32>
    %cst_28 = arith.constant 1.000000e+00 : f32
    %90 = vector.broadcast %cst_28 : f32 to vector<2x32xf32>
    %91 = arith.addf %90, %89 : vector<2x32xf32>
    %92 = arith.divf %90, %91 : vector<2x32xf32>
    %93 = vector.extract_strided_slice %77 {offsets = [0, 64], sizes = [2, 32], strides = [1, 1]} : vector<2x128xf32> to vector<2x32xf32>
    %94 = math.tanh %93 : vector<2x32xf32>
    %95 = vector.extract_strided_slice %77 {offsets = [0, 96], sizes = [2, 32], strides = [1, 1]} : vector<2x128xf32> to vector<2x32xf32>
    %96 = arith.negf %95 : vector<2x32xf32>
    %97 = math.exp %96 : vector<2x32xf32>
    %cst_29 = arith.constant 1.000000e+00 : f32
    %98 = vector.broadcast %cst_29 : f32 to vector<2x32xf32>
    %99 = arith.addf %98, %97 : vector<2x32xf32>
    %100 = arith.divf %98, %99 : vector<2x32xf32>
    %101 = arith.mulf %92, %43 : vector<2x32xf32>
    %102 = arith.mulf %86, %94 : vector<2x32xf32>
    %103 = arith.addf %101, %102 : vector<2x32xf32>
    %104 = math.tanh %103 : vector<2x32xf32>
    %105 = arith.mulf %100, %104 : vector<2x32xf32>
    %106 = vector.extract_strided_slice %80 {offsets = [0, 0], sizes = [2, 32], strides = [1, 1]} : vector<2x128xf32> to vector<2x32xf32>
    %107 = arith.negf %106 : vector<2x32xf32>
    %108 = math.exp %107 : vector<2x32xf32>
    %cst_30 = arith.constant 1.000000e+00 : f32
    %109 = vector.broadcast %cst_30 : f32 to vector<2x32xf32>
    %110 = arith.addf %109, %108 : vector<2x32xf32>
    %111 = arith.divf %109, %110 : vector<2x32xf32>
    %112 = vector.extract_strided_slice %80 {offsets = [0, 32], sizes = [2, 32], strides = [1, 1]} : vector<2x128xf32> to vector<2x32xf32>
    %113 = arith.negf %112 : vector<2x32xf32>
    %114 = math.exp %113 : vector<2x32xf32>
    %cst_31 = arith.constant 1.000000e+00 : f32
    %115 = vector.broadcast %cst_31 : f32 to vector<2x32xf32>
    %116 = arith.addf %115, %114 : vector<2x32xf32>
    %117 = arith.divf %115, %116 : vector<2x32xf32>
    %118 = vector.extract_strided_slice %80 {offsets = [0, 64], sizes = [2, 32], strides = [1, 1]} : vector<2x128xf32> to vector<2x32xf32>
    %119 = math.tanh %118 : vector<2x32xf32>
    %120 = vector.extract_strided_slice %80 {offsets = [0, 96], sizes = [2, 32], strides = [1, 1]} : vector<2x128xf32> to vector<2x32xf32>
    %121 = arith.negf %120 : vector<2x32xf32>
    %122 = math.exp %121 : vector<2x32xf32>
    %cst_32 = arith.constant 1.000000e+00 : f32
    %123 = vector.broadcast %cst_32 : f32 to vector<2x32xf32>
    %124 = arith.addf %123, %122 : vector<2x32xf32>
    %125 = arith.divf %123, %124 : vector<2x32xf32>
    %126 = arith.mulf %117, %68 : vector<2x32xf32>
    %127 = arith.mulf %111, %119 : vector<2x32xf32>
    %128 = arith.addf %126, %127 : vector<2x32xf32>
    %129 = math.tanh %128 : vector<2x32xf32>
    %130 = arith.mulf %125, %129 : vector<2x32xf32>
    %c2 = arith.constant 2 : index
    %c0_33 = arith.constant 0 : index
    %131 = vector.load %arg12[%c2, %c0_33] : memref<16x32xf32, #tpu.memory_space<vmem>>, vector<2x32xf32>
    tpu.vector_store %arg12[%c2, %c0_33], %105 {strides = array<i32>} : memref<16x32xf32, #tpu.memory_space<vmem>>, vector<2x32xf32>,
    %c12 = arith.constant 12 : index
    %c0_34 = arith.constant 0 : index
    %132 = vector.load %arg13[%c12, %c0_34] : memref<16x32xf32, #tpu.memory_space<vmem>>, vector<2x32xf32>
    tpu.vector_store %arg13[%c12, %c0_34], %130 {strides = array<i32>} : memref<16x32xf32, #tpu.memory_space<vmem>>, vector<2x32xf32>,
    %133 = tpu.concatenate %105, %130 in 1 : vector<2x32xf32>, vector<2x32xf32> -> vector<2x64xf32>
    %cst_35 = arith.constant dense<0.000000e+00> : vector<2x256xf32>
    %134 = tpu.matmul %133, %10, %cst_35 {dimension_numbers = #tpu.dot_dimension_numbers<[1], [0], [0], [1], [0, 0, 1, 1], [], []>} : vector<2x64xf32>, vector<64x256xf32>, vector<2x256xf32> -> vector<2x256xf32>
    %135 = vector.extract_strided_slice %134 {offsets = [0, 0], sizes = [2, 128], strides = [1, 1]} : vector<2x256xf32> to vector<2x128xf32>
    %136 = vector.extract_strided_slice %9 {offsets = [4, 0], sizes = [2, 128], strides = [1, 1]} : vector<16x256xf32> to vector<2x128xf32>
    %137 = arith.addf %135, %136 : vector<2x128xf32>
    %138 = vector.extract_strided_slice %134 {offsets = [0, 128], sizes = [2, 128], strides = [1, 1]} : vector<2x256xf32> to vector<2x128xf32>
    %139 = vector.extract_strided_slice %9 {offsets = [10, 128], sizes = [2, 128], strides = [1, 1]} : vector<16x256xf32> to vector<2x128xf32>
    %140 = arith.addf %138, %139 : vector<2x128xf32>
    %141 = vector.extract_strided_slice %137 {offsets = [0, 0], sizes = [2, 32], strides = [1, 1]} : vector<2x128xf32> to vector<2x32xf32>
    %142 = arith.negf %141 : vector<2x32xf32>
    %143 = math.exp %142 : vector<2x32xf32>
    %cst_36 = arith.constant 1.000000e+00 : f32
    %144 = vector.broadcast %cst_36 : f32 to vector<2x32xf32>
    %145 = arith.addf %144, %143 : vector<2x32xf32>
    %146 = arith.divf %144, %145 : vector<2x32xf32>
    %147 = vector.extract_strided_slice %137 {offsets = [0, 32], sizes = [2, 32], strides = [1, 1]} : vector<2x128xf32> to vector<2x32xf32>
    %148 = arith.negf %147 : vector<2x32xf32>
    %149 = math.exp %148 : vector<2x32xf32>
    %cst_37 = arith.constant 1.000000e+00 : f32
    %150 = vector.broadcast %cst_37 : f32 to vector<2x32xf32>
    %151 = arith.addf %150, %149 : vector<2x32xf32>
    %152 = arith.divf %150, %151 : vector<2x32xf32>
    %153 = vector.extract_strided_slice %137 {offsets = [0, 64], sizes = [2, 32], strides = [1, 1]} : vector<2x128xf32> to vector<2x32xf32>
    %154 = math.tanh %153 : vector<2x32xf32>
    %155 = vector.extract_strided_slice %137 {offsets = [0, 96], sizes = [2, 32], strides = [1, 1]} : vector<2x128xf32> to vector<2x32xf32>
    %156 = arith.negf %155 : vector<2x32xf32>
    %157 = math.exp %156 : vector<2x32xf32>
    %cst_38 = arith.constant 1.000000e+00 : f32
    %158 = vector.broadcast %cst_38 : f32 to vector<2x32xf32>
    %159 = arith.addf %158, %157 : vector<2x32xf32>
    %160 = arith.divf %158, %159 : vector<2x32xf32>
    %161 = arith.mulf %152, %103 : vector<2x32xf32>
    %162 = arith.mulf %146, %154 : vector<2x32xf32>
    %163 = arith.addf %161, %162 : vector<2x32xf32>
    %164 = math.tanh %163 : vector<2x32xf32>
    %165 = arith.mulf %160, %164 : vector<2x32xf32>
    %166 = vector.extract_strided_slice %140 {offsets = [0, 0], sizes = [2, 32], strides = [1, 1]} : vector<2x128xf32> to vector<2x32xf32>
    %167 = arith.negf %166 : vector<2x32xf32>
    %168 = math.exp %167 : vector<2x32xf32>
    %cst_39 = arith.constant 1.000000e+00 : f32
    %169 = vector.broadcast %cst_39 : f32 to vector<2x32xf32>
    %170 = arith.addf %169, %168 : vector<2x32xf32>
    %171 = arith.divf %169, %170 : vector<2x32xf32>
    %172 = vector.extract_strided_slice %140 {offsets = [0, 32], sizes = [2, 32], strides = [1, 1]} : vector<2x128xf32> to vector<2x32xf32>
    %173 = arith.negf %172 : vector<2x32xf32>
    %174 = math.exp %173 : vector<2x32xf32>
    %cst_40 = arith.constant 1.000000e+00 : f32
    %175 = vector.broadcast %cst_40 : f32 to vector<2x32xf32>
    %176 = arith.addf %175, %174 : vector<2x32xf32>
    %177 = arith.divf %175, %176 : vector<2x32xf32>
    %178 = vector.extract_strided_slice %140 {offsets = [0, 64], sizes = [2, 32], strides = [1, 1]} : vector<2x128xf32> to vector<2x32xf32>
    %179 = math.tanh %178 : vector<2x32xf32>
    %180 = vector.extract_strided_slice %140 {offsets = [0, 96], sizes = [2, 32], strides = [1, 1]} : vector<2x128xf32> to vector<2x32xf32>
    %181 = arith.negf %180 : vector<2x32xf32>
    %182 = math.exp %181 : vector<2x32xf32>
    %cst_41 = arith.constant 1.000000e+00 : f32
    %183 = vector.broadcast %cst_41 : f32 to vector<2x32xf32>
    %184 = arith.addf %183, %182 : vector<2x32xf32>
    %185 = arith.divf %183, %184 : vector<2x32xf32>
    %186 = arith.mulf %177, %128 : vector<2x32xf32>
    %187 = arith.mulf %171, %179 : vector<2x32xf32>
    %188 = arith.addf %186, %187 : vector<2x32xf32>
    %189 = math.tanh %188 : vector<2x32xf32>
    %190 = arith.mulf %185, %189 : vector<2x32xf32>
    %c4 = arith.constant 4 : index
    %c0_42 = arith.constant 0 : index
    %191 = vector.load %arg12[%c4, %c0_42] : memref<16x32xf32, #tpu.memory_space<vmem>>, vector<2x32xf32>
    tpu.vector_store %arg12[%c4, %c0_42], %165 {strides = array<i32>} : memref<16x32xf32, #tpu.memory_space<vmem>>, vector<2x32xf32>,
    %c10 = arith.constant 10 : index
    %c0_43 = arith.constant 0 : index
    %192 = vector.load %arg13[%c10, %c0_43] : memref<16x32xf32, #tpu.memory_space<vmem>>, vector<2x32xf32>
    tpu.vector_store %arg13[%c10, %c0_43], %190 {strides = array<i32>} : memref<16x32xf32, #tpu.memory_space<vmem>>, vector<2x32xf32>,
    %193 = tpu.concatenate %165, %190 in 1 : vector<2x32xf32>, vector<2x32xf32> -> vector<2x64xf32>
    %cst_44 = arith.constant dense<0.000000e+00> : vector<2x256xf32>
    %194 = tpu.matmul %193, %10, %cst_44 {dimension_numbers = #tpu.dot_dimension_numbers<[1], [0], [0], [1], [0, 0, 1, 1], [], []>} : vector<2x64xf32>, vector<64x256xf32>, vector<2x256xf32> -> vector<2x256xf32>
    %195 = vector.extract_strided_slice %194 {offsets = [0, 0], sizes = [2, 128], strides = [1, 1]} : vector<2x256xf32> to vector<2x128xf32>
    %196 = vector.extract_strided_slice %9 {offsets = [6, 0], sizes = [2, 128], strides = [1, 1]} : vector<16x256xf32> to vector<2x128xf32>
    %197 = arith.addf %195, %196 : vector<2x128xf32>
    %198 = vector.extract_strided_slice %194 {offsets = [0, 128], sizes = [2, 128], strides = [1, 1]} : vector<2x256xf32> to vector<2x128xf32>
    %199 = vector.extract_strided_slice %9 {offsets = [8, 128], sizes = [2, 128], strides = [1, 1]} : vector<16x256xf32> to vector<2x128xf32>
    %200 = arith.addf %198, %199 : vector<2x128xf32>
    %201 = vector.extract_strided_slice %197 {offsets = [0, 0], sizes = [2, 32], strides = [1, 1]} : vector<2x128xf32> to vector<2x32xf32>
    %202 = arith.negf %201 : vector<2x32xf32>
    %203 = math.exp %202 : vector<2x32xf32>
    %cst_45 = arith.constant 1.000000e+00 : f32
    %204 = vector.broadcast %cst_45 : f32 to vector<2x32xf32>
    %205 = arith.addf %204, %203 : vector<2x32xf32>
    %206 = arith.divf %204, %205 : vector<2x32xf32>
    %207 = vector.extract_strided_slice %197 {offsets = [0, 32], sizes = [2, 32], strides = [1, 1]} : vector<2x128xf32> to vector<2x32xf32>
    %208 = arith.negf %207 : vector<2x32xf32>
    %209 = math.exp %208 : vector<2x32xf32>
    %cst_46 = arith.constant 1.000000e+00 : f32
    %210 = vector.broadcast %cst_46 : f32 to vector<2x32xf32>
    %211 = arith.addf %210, %209 : vector<2x32xf32>
    %212 = arith.divf %210, %211 : vector<2x32xf32>
    %213 = vector.extract_strided_slice %197 {offsets = [0, 64], sizes = [2, 32], strides = [1, 1]} : vector<2x128xf32> to vector<2x32xf32>
    %214 = math.tanh %213 : vector<2x32xf32>
    %215 = vector.extract_strided_slice %197 {offsets = [0, 96], sizes = [2, 32], strides = [1, 1]} : vector<2x128xf32> to vector<2x32xf32>
    %216 = arith.negf %215 : vector<2x32xf32>
    %217 = math.exp %216 : vector<2x32xf32>
    %cst_47 = arith.constant 1.000000e+00 : f32
    %218 = vector.broadcast %cst_47 : f32 to vector<2x32xf32>
    %219 = arith.addf %218, %217 : vector<2x32xf32>
    %220 = arith.divf %218, %219 : vector<2x32xf32>
    %221 = arith.mulf %212, %163 : vector<2x32xf32>
    %222 = arith.mulf %206, %214 : vector<2x32xf32>
    %223 = arith.addf %221, %222 : vector<2x32xf32>
    %224 = math.tanh %223 : vector<2x32xf32>
    %225 = arith.mulf %220, %224 : vector<2x32xf32>
    %226 = vector.extract_strided_slice %200 {offsets = [0, 0], sizes = [2, 32], strides = [1, 1]} : vector<2x128xf32> to vector<2x32xf32>
    %227 = arith.negf %226 : vector<2x32xf32>
    %228 = math.exp %227 : vector<2x32xf32>
    %cst_48 = arith.constant 1.000000e+00 : f32
    %229 = vector.broadcast %cst_48 : f32 to vector<2x32xf32>
    %230 = arith.addf %229, %228 : vector<2x32xf32>
    %231 = arith.divf %229, %230 : vector<2x32xf32>
    %232 = vector.extract_strided_slice %200 {offsets = [0, 32], sizes = [2, 32], strides = [1, 1]} : vector<2x128xf32> to vector<2x32xf32>
    %233 = arith.negf %232 : vector<2x32xf32>
    %234 = math.exp %233 : vector<2x32xf32>
    %cst_49 = arith.constant 1.000000e+00 : f32
    %235 = vector.broadcast %cst_49 : f32 to vector<2x32xf32>
    %236 = arith.addf %235, %234 : vector<2x32xf32>
    %237 = arith.divf %235, %236 : vector<2x32xf32>
    %238 = vector.extract_strided_slice %200 {offsets = [0, 64], sizes = [2, 32], strides = [1, 1]} : vector<2x128xf32> to vector<2x32xf32>
    %239 = math.tanh %238 : vector<2x32xf32>
    %240 = vector.extract_strided_slice %200 {offsets = [0, 96], sizes = [2, 32], strides = [1, 1]} : vector<2x128xf32> to vector<2x32xf32>
    %241 = arith.negf %240 : vector<2x32xf32>
    %242 = math.exp %241 : vector<2x32xf32>
    %cst_50 = arith.constant 1.000000e+00 : f32
    %243 = vector.broadcast %cst_50 : f32 to vector<2x32xf32>
    %244 = arith.addf %243, %242 : vector<2x32xf32>
    %245 = arith.divf %243, %244 : vector<2x32xf32>
    %246 = arith.mulf %237, %188 : vector<2x32xf32>
    %247 = arith.mulf %231, %239 : vector<2x32xf32>
    %248 = arith.addf %246, %247 : vector<2x32xf32>
    %249 = math.tanh %248 : vector<2x32xf32>
    %250 = arith.mulf %245, %249 : vector<2x32xf32>
    %c6 = arith.constant 6 : index
    %c0_51 = arith.constant 0 : index
    %251 = vector.load %arg12[%c6, %c0_51] : memref<16x32xf32, #tpu.memory_space<vmem>>, vector<2x32xf32>
    tpu.vector_store %arg12[%c6, %c0_51], %225 {strides = array<i32>} : memref<16x32xf32, #tpu.memory_space<vmem>>, vector<2x32xf32>,
    %c8 = arith.constant 8 : index
    %c0_52 = arith.constant 0 : index
    %252 = vector.load %arg13[%c8, %c0_52] : memref<16x32xf32, #tpu.memory_space<vmem>>, vector<2x32xf32>
    tpu.vector_store %arg13[%c8, %c0_52], %250 {strides = array<i32>} : memref<16x32xf32, #tpu.memory_space<vmem>>, vector<2x32xf32>,
    %253 = tpu.concatenate %225, %250 in 1 : vector<2x32xf32>, vector<2x32xf32> -> vector<2x64xf32>
    %cst_53 = arith.constant dense<0.000000e+00> : vector<2x256xf32>
    %254 = tpu.matmul %253, %10, %cst_53 {dimension_numbers = #tpu.dot_dimension_numbers<[1], [0], [0], [1], [0, 0, 1, 1], [], []>} : vector<2x64xf32>, vector<64x256xf32>, vector<2x256xf32> -> vector<2x256xf32>
    %255 = vector.extract_strided_slice %254 {offsets = [0, 0], sizes = [2, 128], strides = [1, 1]} : vector<2x256xf32> to vector<2x128xf32>
    %256 = vector.extract_strided_slice %9 {offsets = [8, 0], sizes = [2, 128], strides = [1, 1]} : vector<16x256xf32> to vector<2x128xf32>
    %257 = arith.addf %255, %256 : vector<2x128xf32>
    %258 = vector.extract_strided_slice %254 {offsets = [0, 128], sizes = [2, 128], strides = [1, 1]} : vector<2x256xf32> to vector<2x128xf32>
    %259 = vector.extract_strided_slice %9 {offsets = [6, 128], sizes = [2, 128], strides = [1, 1]} : vector<16x256xf32> to vector<2x128xf32>
    %260 = arith.addf %258, %259 : vector<2x128xf32>
    %261 = vector.extract_strided_slice %257 {offsets = [0, 0], sizes = [2, 32], strides = [1, 1]} : vector<2x128xf32> to vector<2x32xf32>
    %262 = arith.negf %261 : vector<2x32xf32>
    %263 = math.exp %262 : vector<2x32xf32>
    %cst_54 = arith.constant 1.000000e+00 : f32
    %264 = vector.broadcast %cst_54 : f32 to vector<2x32xf32>
    %265 = arith.addf %264, %263 : vector<2x32xf32>
    %266 = arith.divf %264, %265 : vector<2x32xf32>
    %267 = vector.extract_strided_slice %257 {offsets = [0, 32], sizes = [2, 32], strides = [1, 1]} : vector<2x128xf32> to vector<2x32xf32>
    %268 = arith.negf %267 : vector<2x32xf32>
    %269 = math.exp %268 : vector<2x32xf32>
    %cst_55 = arith.constant 1.000000e+00 : f32
    %270 = vector.broadcast %cst_55 : f32 to vector<2x32xf32>
    %271 = arith.addf %270, %269 : vector<2x32xf32>
    %272 = arith.divf %270, %271 : vector<2x32xf32>
    %273 = vector.extract_strided_slice %257 {offsets = [0, 64], sizes = [2, 32], strides = [1, 1]} : vector<2x128xf32> to vector<2x32xf32>
    %274 = math.tanh %273 : vector<2x32xf32>
    %275 = vector.extract_strided_slice %257 {offsets = [0, 96], sizes = [2, 32], strides = [1, 1]} : vector<2x128xf32> to vector<2x32xf32>
    %276 = arith.negf %275 : vector<2x32xf32>
    %277 = math.exp %276 : vector<2x32xf32>
    %cst_56 = arith.constant 1.000000e+00 : f32
    %278 = vector.broadcast %cst_56 : f32 to vector<2x32xf32>
    %279 = arith.addf %278, %277 : vector<2x32xf32>
    %280 = arith.divf %278, %279 : vector<2x32xf32>
    %281 = arith.mulf %272, %223 : vector<2x32xf32>
    %282 = arith.mulf %266, %274 : vector<2x32xf32>
    %283 = arith.addf %281, %282 : vector<2x32xf32>
    %284 = math.tanh %283 : vector<2x32xf32>
    %285 = arith.mulf %280, %284 : vector<2x32xf32>
    %286 = vector.extract_strided_slice %260 {offsets = [0, 0], sizes = [2, 32], strides = [1, 1]} : vector<2x128xf32> to vector<2x32xf32>
    %287 = arith.negf %286 : vector<2x32xf32>
    %288 = math.exp %287 : vector<2x32xf32>
    %cst_57 = arith.constant 1.000000e+00 : f32
    %289 = vector.broadcast %cst_57 : f32 to vector<2x32xf32>
    %290 = arith.addf %289, %288 : vector<2x32xf32>
    %291 = arith.divf %289, %290 : vector<2x32xf32>
    %292 = vector.extract_strided_slice %260 {offsets = [0, 32], sizes = [2, 32], strides = [1, 1]} : vector<2x128xf32> to vector<2x32xf32>
    %293 = arith.negf %292 : vector<2x32xf32>
    %294 = math.exp %293 : vector<2x32xf32>
    %cst_58 = arith.constant 1.000000e+00 : f32
    %295 = vector.broadcast %cst_58 : f32 to vector<2x32xf32>
    %296 = arith.addf %295, %294 : vector<2x32xf32>
    %297 = arith.divf %295, %296 : vector<2x32xf32>
    %298 = vector.extract_strided_slice %260 {offsets = [0, 64], sizes = [2, 32], strides = [1, 1]} : vector<2x128xf32> to vector<2x32xf32>
    %299 = math.tanh %298 : vector<2x32xf32>
    %300 = vector.extract_strided_slice %260 {offsets = [0, 96], sizes = [2, 32], strides = [1, 1]} : vector<2x128xf32> to vector<2x32xf32>
    %301 = arith.negf %300 : vector<2x32xf32>
    %302 = math.exp %301 : vector<2x32xf32>
    %cst_59 = arith.constant 1.000000e+00 : f32
    %303 = vector.broadcast %cst_59 : f32 to vector<2x32xf32>
    %304 = arith.addf %303, %302 : vector<2x32xf32>
    %305 = arith.divf %303, %304 : vector<2x32xf32>
    %306 = arith.mulf %297, %248 : vector<2x32xf32>
    %307 = arith.mulf %291, %299 : vector<2x32xf32>
    %308 = arith.addf %306, %307 : vector<2x32xf32>
    %309 = math.tanh %308 : vector<2x32xf32>
    %310 = arith.mulf %305, %309 : vector<2x32xf32>
    %c8_60 = arith.constant 8 : index
    %c0_61 = arith.constant 0 : index
    %311 = vector.load %arg12[%c8_60, %c0_61] : memref<16x32xf32, #tpu.memory_space<vmem>>, vector<2x32xf32>
    tpu.vector_store %arg12[%c8_60, %c0_61], %285 {strides = array<i32>} : memref<16x32xf32, #tpu.memory_space<vmem>>, vector<2x32xf32>,
    %c6_62 = arith.constant 6 : index
    %c0_63 = arith.constant 0 : index
    %312 = vector.load %arg13[%c6_62, %c0_63] : memref<16x32xf32, #tpu.memory_space<vmem>>, vector<2x32xf32>
    tpu.vector_store %arg13[%c6_62, %c0_63], %310 {strides = array<i32>} : memref<16x32xf32, #tpu.memory_space<vmem>>, vector<2x32xf32>,
    %313 = tpu.concatenate %285, %310 in 1 : vector<2x32xf32>, vector<2x32xf32> -> vector<2x64xf32>
    %cst_64 = arith.constant dense<0.000000e+00> : vector<2x256xf32>
    %314 = tpu.matmul %313, %10, %cst_64 {dimension_numbers = #tpu.dot_dimension_numbers<[1], [0], [0], [1], [0, 0, 1, 1], [], []>} : vector<2x64xf32>, vector<64x256xf32>, vector<2x256xf32> -> vector<2x256xf32>
    %315 = vector.extract_strided_slice %314 {offsets = [0, 0], sizes = [2, 128], strides = [1, 1]} : vector<2x256xf32> to vector<2x128xf32>
    %316 = vector.extract_strided_slice %9 {offsets = [10, 0], sizes = [2, 128], strides = [1, 1]} : vector<16x256xf32> to vector<2x128xf32>
    %317 = arith.addf %315, %316 : vector<2x128xf32>
    %318 = vector.extract_strided_slice %314 {offsets = [0, 128], sizes = [2, 128], strides = [1, 1]} : vector<2x256xf32> to vector<2x128xf32>
    %319 = vector.extract_strided_slice %9 {offsets = [4, 128], sizes = [2, 128], strides = [1, 1]} : vector<16x256xf32> to vector<2x128xf32>
    %320 = arith.addf %318, %319 : vector<2x128xf32>
    %321 = vector.extract_strided_slice %317 {offsets = [0, 0], sizes = [2, 32], strides = [1, 1]} : vector<2x128xf32> to vector<2x32xf32>
    %322 = arith.negf %321 : vector<2x32xf32>
    %323 = math.exp %322 : vector<2x32xf32>
    %cst_65 = arith.constant 1.000000e+00 : f32
    %324 = vector.broadcast %cst_65 : f32 to vector<2x32xf32>
    %325 = arith.addf %324, %323 : vector<2x32xf32>
    %326 = arith.divf %324, %325 : vector<2x32xf32>
    %327 = vector.extract_strided_slice %317 {offsets = [0, 32], sizes = [2, 32], strides = [1, 1]} : vector<2x128xf32> to vector<2x32xf32>
    %328 = arith.negf %327 : vector<2x32xf32>
    %329 = math.exp %328 : vector<2x32xf32>
    %cst_66 = arith.constant 1.000000e+00 : f32
    %330 = vector.broadcast %cst_66 : f32 to vector<2x32xf32>
    %331 = arith.addf %330, %329 : vector<2x32xf32>
    %332 = arith.divf %330, %331 : vector<2x32xf32>
    %333 = vector.extract_strided_slice %317 {offsets = [0, 64], sizes = [2, 32], strides = [1, 1]} : vector<2x128xf32> to vector<2x32xf32>
    %334 = math.tanh %333 : vector<2x32xf32>
    %335 = vector.extract_strided_slice %317 {offsets = [0, 96], sizes = [2, 32], strides = [1, 1]} : vector<2x128xf32> to vector<2x32xf32>
    %336 = arith.negf %335 : vector<2x32xf32>
    %337 = math.exp %336 : vector<2x32xf32>
    %cst_67 = arith.constant 1.000000e+00 : f32
    %338 = vector.broadcast %cst_67 : f32 to vector<2x32xf32>
    %339 = arith.addf %338, %337 : vector<2x32xf32>
    %340 = arith.divf %338, %339 : vector<2x32xf32>
    %341 = arith.mulf %332, %283 : vector<2x32xf32>
    %342 = arith.mulf %326, %334 : vector<2x32xf32>
    %343 = arith.addf %341, %342 : vector<2x32xf32>
    %344 = math.tanh %343 : vector<2x32xf32>
    %345 = arith.mulf %340, %344 : vector<2x32xf32>
    %346 = vector.extract_strided_slice %320 {offsets = [0, 0], sizes = [2, 32], strides = [1, 1]} : vector<2x128xf32> to vector<2x32xf32>
    %347 = arith.negf %346 : vector<2x32xf32>
    %348 = math.exp %347 : vector<2x32xf32>
    %cst_68 = arith.constant 1.000000e+00 : f32
    %349 = vector.broadcast %cst_68 : f32 to vector<2x32xf32>
    %350 = arith.addf %349, %348 : vector<2x32xf32>
    %351 = arith.divf %349, %350 : vector<2x32xf32>
    %352 = vector.extract_strided_slice %320 {offsets = [0, 32], sizes = [2, 32], strides = [1, 1]} : vector<2x128xf32> to vector<2x32xf32>
    %353 = arith.negf %352 : vector<2x32xf32>
    %354 = math.exp %353 : vector<2x32xf32>
    %cst_69 = arith.constant 1.000000e+00 : f32
    %355 = vector.broadcast %cst_69 : f32 to vector<2x32xf32>
    %356 = arith.addf %355, %354 : vector<2x32xf32>
    %357 = arith.divf %355, %356 : vector<2x32xf32>
    %358 = vector.extract_strided_slice %320 {offsets = [0, 64], sizes = [2, 32], strides = [1, 1]} : vector<2x128xf32> to vector<2x32xf32>
    %359 = math.tanh %358 : vector<2x32xf32>
    %360 = vector.extract_strided_slice %320 {offsets = [0, 96], sizes = [2, 32], strides = [1, 1]} : vector<2x128xf32> to vector<2x32xf32>
    %361 = arith.negf %360 : vector<2x32xf32>
    %362 = math.exp %361 : vector<2x32xf32>
    %cst_70 = arith.constant 1.000000e+00 : f32
    %363 = vector.broadcast %cst_70 : f32 to vector<2x32xf32>
    %364 = arith.addf %363, %362 : vector<2x32xf32>
    %365 = arith.divf %363, %364 : vector<2x32xf32>
    %366 = arith.mulf %357, %308 : vector<2x32xf32>
    %367 = arith.mulf %351, %359 : vector<2x32xf32>
    %368 = arith.addf %366, %367 : vector<2x32xf32>
    %369 = math.tanh %368 : vector<2x32xf32>
    %370 = arith.mulf %365, %369 : vector<2x32xf32>
    %c10_71 = arith.constant 10 : index
    %c0_72 = arith.constant 0 : index
    %371 = vector.load %arg12[%c10_71, %c0_72] : memref<16x32xf32, #tpu.memory_space<vmem>>, vector<2x32xf32>
    tpu.vector_store %arg12[%c10_71, %c0_72], %345 {strides = array<i32>} : memref<16x32xf32, #tpu.memory_space<vmem>>, vector<2x32xf32>,
    %c4_73 = arith.constant 4 : index
    %c0_74 = arith.constant 0 : index
    %372 = vector.load %arg13[%c4_73, %c0_74] : memref<16x32xf32, #tpu.memory_space<vmem>>, vector<2x32xf32>
    tpu.vector_store %arg13[%c4_73, %c0_74], %370 {strides = array<i32>} : memref<16x32xf32, #tpu.memory_space<vmem>>, vector<2x32xf32>,
    %373 = tpu.concatenate %345, %370 in 1 : vector<2x32xf32>, vector<2x32xf32> -> vector<2x64xf32>
    %cst_75 = arith.constant dense<0.000000e+00> : vector<2x256xf32>
    %374 = tpu.matmul %373, %10, %cst_75 {dimension_numbers = #tpu.dot_dimension_numbers<[1], [0], [0], [1], [0, 0, 1, 1], [], []>} : vector<2x64xf32>, vector<64x256xf32>, vector<2x256xf32> -> vector<2x256xf32>
    %375 = vector.extract_strided_slice %374 {offsets = [0, 0], sizes = [2, 128], strides = [1, 1]} : vector<2x256xf32> to vector<2x128xf32>
    %376 = vector.extract_strided_slice %9 {offsets = [12, 0], sizes = [2, 128], strides = [1, 1]} : vector<16x256xf32> to vector<2x128xf32>
    %377 = arith.addf %375, %376 : vector<2x128xf32>
    %378 = vector.extract_strided_slice %374 {offsets = [0, 128], sizes = [2, 128], strides = [1, 1]} : vector<2x256xf32> to vector<2x128xf32>
    %379 = vector.extract_strided_slice %9 {offsets = [2, 128], sizes = [2, 128], strides = [1, 1]} : vector<16x256xf32> to vector<2x128xf32>
    %380 = arith.addf %378, %379 : vector<2x128xf32>
    %381 = vector.extract_strided_slice %377 {offsets = [0, 0], sizes = [2, 32], strides = [1, 1]} : vector<2x128xf32> to vector<2x32xf32>
    %382 = arith.negf %381 : vector<2x32xf32>
    %383 = math.exp %382 : vector<2x32xf32>
    %cst_76 = arith.constant 1.000000e+00 : f32
    %384 = vector.broadcast %cst_76 : f32 to vector<2x32xf32>
    %385 = arith.addf %384, %383 : vector<2x32xf32>
    %386 = arith.divf %384, %385 : vector<2x32xf32>
    %387 = vector.extract_strided_slice %377 {offsets = [0, 32], sizes = [2, 32], strides = [1, 1]} : vector<2x128xf32> to vector<2x32xf32>
    %388 = arith.negf %387 : vector<2x32xf32>
    %389 = math.exp %388 : vector<2x32xf32>
    %cst_77 = arith.constant 1.000000e+00 : f32
    %390 = vector.broadcast %cst_77 : f32 to vector<2x32xf32>
    %391 = arith.addf %390, %389 : vector<2x32xf32>
    %392 = arith.divf %390, %391 : vector<2x32xf32>
    %393 = vector.extract_strided_slice %377 {offsets = [0, 64], sizes = [2, 32], strides = [1, 1]} : vector<2x128xf32> to vector<2x32xf32>
    %394 = math.tanh %393 : vector<2x32xf32>
    %395 = vector.extract_strided_slice %377 {offsets = [0, 96], sizes = [2, 32], strides = [1, 1]} : vector<2x128xf32> to vector<2x32xf32>
    %396 = arith.negf %395 : vector<2x32xf32>
    %397 = math.exp %396 : vector<2x32xf32>
    %cst_78 = arith.constant 1.000000e+00 : f32
    %398 = vector.broadcast %cst_78 : f32 to vector<2x32xf32>
    %399 = arith.addf %398, %397 : vector<2x32xf32>
    %400 = arith.divf %398, %399 : vector<2x32xf32>
    %401 = arith.mulf %392, %343 : vector<2x32xf32>
    %402 = arith.mulf %386, %394 : vector<2x32xf32>
    %403 = arith.addf %401, %402 : vector<2x32xf32>
    %404 = math.tanh %403 : vector<2x32xf32>
    %405 = arith.mulf %400, %404 : vector<2x32xf32>
    %406 = vector.extract_strided_slice %380 {offsets = [0, 0], sizes = [2, 32], strides = [1, 1]} : vector<2x128xf32> to vector<2x32xf32>
    %407 = arith.negf %406 : vector<2x32xf32>
    %408 = math.exp %407 : vector<2x32xf32>
    %cst_79 = arith.constant 1.000000e+00 : f32
    %409 = vector.broadcast %cst_79 : f32 to vector<2x32xf32>
    %410 = arith.addf %409, %408 : vector<2x32xf32>
    %411 = arith.divf %409, %410 : vector<2x32xf32>
    %412 = vector.extract_strided_slice %380 {offsets = [0, 32], sizes = [2, 32], strides = [1, 1]} : vector<2x128xf32> to vector<2x32xf32>
    %413 = arith.negf %412 : vector<2x32xf32>
    %414 = math.exp %413 : vector<2x32xf32>
    %cst_80 = arith.constant 1.000000e+00 : f32
    %415 = vector.broadcast %cst_80 : f32 to vector<2x32xf32>
    %416 = arith.addf %415, %414 : vector<2x32xf32>
    %417 = arith.divf %415, %416 : vector<2x32xf32>
    %418 = vector.extract_strided_slice %380 {offsets = [0, 64], sizes = [2, 32], strides = [1, 1]} : vector<2x128xf32> to vector<2x32xf32>
    %419 = math.tanh %418 : vector<2x32xf32>
    %420 = vector.extract_strided_slice %380 {offsets = [0, 96], sizes = [2, 32], strides = [1, 1]} : vector<2x128xf32> to vector<2x32xf32>
    %421 = arith.negf %420 : vector<2x32xf32>
    %422 = math.exp %421 : vector<2x32xf32>
    %cst_81 = arith.constant 1.000000e+00 : f32
    %423 = vector.broadcast %cst_81 : f32 to vector<2x32xf32>
    %424 = arith.addf %423, %422 : vector<2x32xf32>
    %425 = arith.divf %423, %424 : vector<2x32xf32>
    %426 = arith.mulf %417, %368 : vector<2x32xf32>
    %427 = arith.mulf %411, %419 : vector<2x32xf32>
    %428 = arith.addf %426, %427 : vector<2x32xf32>
    %429 = math.tanh %428 : vector<2x32xf32>
    %430 = arith.mulf %425, %429 : vector<2x32xf32>
    %c12_82 = arith.constant 12 : index
    %c0_83 = arith.constant 0 : index
    %431 = vector.load %arg12[%c12_82, %c0_83] : memref<16x32xf32, #tpu.memory_space<vmem>>, vector<2x32xf32>
    tpu.vector_store %arg12[%c12_82, %c0_83], %405 {strides = array<i32>} : memref<16x32xf32, #tpu.memory_space<vmem>>, vector<2x32xf32>,
    %c2_84 = arith.constant 2 : index
    %c0_85 = arith.constant 0 : index
    %432 = vector.load %arg13[%c2_84, %c0_85] : memref<16x32xf32, #tpu.memory_space<vmem>>, vector<2x32xf32>
    tpu.vector_store %arg13[%c2_84, %c0_85], %430 {strides = array<i32>} : memref<16x32xf32, #tpu.memory_space<vmem>>, vector<2x32xf32>,
    %433 = tpu.concatenate %405, %430 in 1 : vector<2x32xf32>, vector<2x32xf32> -> vector<2x64xf32>
    %cst_86 = arith.constant dense<0.000000e+00> : vector<2x256xf32>
    %434 = tpu.matmul %433, %10, %cst_86 {dimension_numbers = #tpu.dot_dimension_numbers<[1], [0], [0], [1], [0, 0, 1, 1], [], []>} : vector<2x64xf32>, vector<64x256xf32>, vector<2x256xf32> -> vector<2x256xf32>
    %435 = vector.extract_strided_slice %434 {offsets = [0, 0], sizes = [2, 128], strides = [1, 1]} : vector<2x256xf32> to vector<2x128xf32>
    %436 = vector.extract_strided_slice %9 {offsets = [14, 0], sizes = [2, 128], strides = [1, 1]} : vector<16x256xf32> to vector<2x128xf32>
    %437 = arith.addf %435, %436 : vector<2x128xf32>
    %438 = vector.extract_strided_slice %434 {offsets = [0, 128], sizes = [2, 128], strides = [1, 1]} : vector<2x256xf32> to vector<2x128xf32>
    %439 = vector.extract_strided_slice %9 {offsets = [0, 128], sizes = [2, 128], strides = [1, 1]} : vector<16x256xf32> to vector<2x128xf32>
    %440 = arith.addf %438, %439 : vector<2x128xf32>
    %441 = vector.extract_strided_slice %437 {offsets = [0, 0], sizes = [2, 32], strides = [1, 1]} : vector<2x128xf32> to vector<2x32xf32>
    %442 = arith.negf %441 : vector<2x32xf32>
    %443 = math.exp %442 : vector<2x32xf32>
    %cst_87 = arith.constant 1.000000e+00 : f32
    %444 = vector.broadcast %cst_87 : f32 to vector<2x32xf32>
    %445 = arith.addf %444, %443 : vector<2x32xf32>
    %446 = arith.divf %444, %445 : vector<2x32xf32>
    %447 = vector.extract_strided_slice %437 {offsets = [0, 32], sizes = [2, 32], strides = [1, 1]} : vector<2x128xf32> to vector<2x32xf32>
    %448 = arith.negf %447 : vector<2x32xf32>
    %449 = math.exp %448 : vector<2x32xf32>
    %cst_88 = arith.constant 1.000000e+00 : f32
    %450 = vector.broadcast %cst_88 : f32 to vector<2x32xf32>
    %451 = arith.addf %450, %449 : vector<2x32xf32>
    %452 = arith.divf %450, %451 : vector<2x32xf32>
    %453 = vector.extract_strided_slice %437 {offsets = [0, 64], sizes = [2, 32], strides = [1, 1]} : vector<2x128xf32> to vector<2x32xf32>
    %454 = math.tanh %453 : vector<2x32xf32>
    %455 = vector.extract_strided_slice %437 {offsets = [0, 96], sizes = [2, 32], strides = [1, 1]} : vector<2x128xf32> to vector<2x32xf32>
    %456 = arith.negf %455 : vector<2x32xf32>
    %457 = math.exp %456 : vector<2x32xf32>
    %cst_89 = arith.constant 1.000000e+00 : f32
    %458 = vector.broadcast %cst_89 : f32 to vector<2x32xf32>
    %459 = arith.addf %458, %457 : vector<2x32xf32>
    %460 = arith.divf %458, %459 : vector<2x32xf32>
    %461 = arith.mulf %452, %403 : vector<2x32xf32>
    %462 = arith.mulf %446, %454 : vector<2x32xf32>
    %463 = arith.addf %461, %462 : vector<2x32xf32>
    %464 = math.tanh %463 : vector<2x32xf32>
    %465 = arith.mulf %460, %464 : vector<2x32xf32>
    %466 = vector.extract_strided_slice %440 {offsets = [0, 0], sizes = [2, 32], strides = [1, 1]} : vector<2x128xf32> to vector<2x32xf32>
    %467 = arith.negf %466 : vector<2x32xf32>
    %468 = math.exp %467 : vector<2x32xf32>
    %cst_90 = arith.constant 1.000000e+00 : f32
    %469 = vector.broadcast %cst_90 : f32 to vector<2x32xf32>
    %470 = arith.addf %469, %468 : vector<2x32xf32>
    %471 = arith.divf %469, %470 : vector<2x32xf32>
    %472 = vector.extract_strided_slice %440 {offsets = [0, 32], sizes = [2, 32], strides = [1, 1]} : vector<2x128xf32> to vector<2x32xf32>
    %473 = arith.negf %472 : vector<2x32xf32>
    %474 = math.exp %473 : vector<2x32xf32>
    %cst_91 = arith.constant 1.000000e+00 : f32
    %475 = vector.broadcast %cst_91 : f32 to vector<2x32xf32>
    %476 = arith.addf %475, %474 : vector<2x32xf32>
    %477 = arith.divf %475, %476 : vector<2x32xf32>
    %478 = vector.extract_strided_slice %440 {offsets = [0, 64], sizes = [2, 32], strides = [1, 1]} : vector<2x128xf32> to vector<2x32xf32>
    %479 = math.tanh %478 : vector<2x32xf32>
    %480 = vector.extract_strided_slice %440 {offsets = [0, 96], sizes = [2, 32], strides = [1, 1]} : vector<2x128xf32> to vector<2x32xf32>
    %481 = arith.negf %480 : vector<2x32xf32>
    %482 = math.exp %481 : vector<2x32xf32>
    %cst_92 = arith.constant 1.000000e+00 : f32
    %483 = vector.broadcast %cst_92 : f32 to vector<2x32xf32>
    %484 = arith.addf %483, %482 : vector<2x32xf32>
    %485 = arith.divf %483, %484 : vector<2x32xf32>
    %486 = arith.mulf %477, %428 : vector<2x32xf32>
    %487 = arith.mulf %471, %479 : vector<2x32xf32>
    %488 = arith.addf %486, %487 : vector<2x32xf32>
    %489 = math.tanh %488 : vector<2x32xf32>
    %490 = arith.mulf %485, %489 : vector<2x32xf32>
    %c14_93 = arith.constant 14 : index
    %c0_94 = arith.constant 0 : index
    %491 = vector.load %arg12[%c14_93, %c0_94] : memref<16x32xf32, #tpu.memory_space<vmem>>, vector<2x32xf32>
    tpu.vector_store %arg12[%c14_93, %c0_94], %465 {strides = array<i32>} : memref<16x32xf32, #tpu.memory_space<vmem>>, vector<2x32xf32>,
    %c0_95 = arith.constant 0 : index
    %c0_96 = arith.constant 0 : index
    %492 = vector.load %arg13[%c0_95, %c0_96] : memref<16x32xf32, #tpu.memory_space<vmem>>, vector<2x32xf32>
    tpu.vector_store %arg13[%c0_95, %c0_96], %490 {strides = array<i32>} : memref<16x32xf32, #tpu.memory_space<vmem>>, vector<2x32xf32>,
    %c0_97 = arith.constant 0 : index
    %c0_98 = arith.constant 0 : index
    %493 = vector.load %arg6[%c0_97, %c0_98] : memref<64x256xf32, #tpu.memory_space<vmem>>, vector<64x256xf32>
    %c0_99 = arith.constant 0 : index
    %c0_100 = arith.constant 0 : index
    %494 = vector.load %arg12[%c0_99, %c0_100] : memref<16x32xf32, #tpu.memory_space<vmem>>, vector<16x32xf32>
    %495 = vector.extract_strided_slice %493 {offsets = [0, 0], sizes = [32, 256], strides = [1, 1]} : vector<64x256xf32> to vector<32x256xf32>
    %cst_101 = arith.constant dense<0.000000e+00> : vector<16x256xf32>
    %496 = tpu.matmul %494, %495, %cst_101 {dimension_numbers = #tpu.dot_dimension_numbers<[1], [0], [0], [1], [0, 0, 1, 1], [], []>} : vector<16x32xf32>, vector<32x256xf32>, vector<16x256xf32> -> vector<16x256xf32>
    %c0_102 = arith.constant 0 : index
    %c0_103 = arith.constant 0 : index
    %497 = vector.load %arg13[%c0_102, %c0_103] : memref<16x32xf32, #tpu.memory_space<vmem>>, vector<16x32xf32>
    %498 = vector.extract_strided_slice %493 {offsets = [32, 0], sizes = [32, 256], strides = [1, 1]} : vector<64x256xf32> to vector<32x256xf32>
    %cst_104 = arith.constant dense<0.000000e+00> : vector<16x256xf32>
    %499 = tpu.matmul %497, %498, %cst_104 {dimension_numbers = #tpu.dot_dimension_numbers<[1], [0], [0], [1], [0, 0, 1, 1], [], []>} : vector<16x32xf32>, vector<32x256xf32>, vector<16x256xf32> -> vector<16x256xf32>
    %500 = arith.addf %496, %499 : vector<16x256xf32>
    %c0_105 = arith.constant 0 : index
    %c0_106 = arith.constant 0 : index
    %501 = vector.load %arg8[%c0_105, %c0_106] : memref<1x256xf32, #tpu.memory_space<vmem>>, vector<1x256xf32>
    %502 = vector.broadcast %501 : vector<1x256xf32> to vector<16x256xf32>
    %503 = arith.addf %500, %502 : vector<16x256xf32>
    %c0_107 = arith.constant 0 : index
    %c0_108 = arith.constant 0 : index
    %504 = vector.load %arg7[%c0_107, %c0_108] : memref<64x256xf32, #tpu.memory_space<vmem>>, vector<64x256xf32>
    %cst_109 = arith.constant 0.000000e+00 : f32
    %505 = vector.broadcast %cst_109 : f32 to vector<2x64xf32>
    %cst_110 = arith.constant 0.000000e+00 : f32
    %506 = vector.broadcast %cst_110 : f32 to vector<2x32xf32>
    %cst_111 = arith.constant 0.000000e+00 : f32
    %507 = vector.broadcast %cst_111 : f32 to vector<2x32xf32>
    %cst_112 = arith.constant dense<0.000000e+00> : vector<2x256xf32>
    %508 = tpu.matmul %505, %504, %cst_112 {dimension_numbers = #tpu.dot_dimension_numbers<[1], [0], [0], [1], [0, 0, 1, 1], [], []>} : vector<2x64xf32>, vector<64x256xf32>, vector<2x256xf32> -> vector<2x256xf32>
    %509 = vector.extract_strided_slice %508 {offsets = [0, 0], sizes = [2, 128], strides = [1, 1]} : vector<2x256xf32> to vector<2x128xf32>
    %510 = vector.extract_strided_slice %503 {offsets = [0, 0], sizes = [2, 128], strides = [1, 1]} : vector<16x256xf32> to vector<2x128xf32>
    %511 = arith.addf %509, %510 : vector<2x128xf32>
    %512 = vector.extract_strided_slice %508 {offsets = [0, 128], sizes = [2, 128], strides = [1, 1]} : vector<2x256xf32> to vector<2x128xf32>
    %513 = vector.extract_strided_slice %503 {offsets = [14, 128], sizes = [2, 128], strides = [1, 1]} : vector<16x256xf32> to vector<2x128xf32>
    %514 = arith.addf %512, %513 : vector<2x128xf32>
    %515 = vector.extract_strided_slice %511 {offsets = [0, 0], sizes = [2, 32], strides = [1, 1]} : vector<2x128xf32> to vector<2x32xf32>
    %516 = arith.negf %515 : vector<2x32xf32>
    %517 = math.exp %516 : vector<2x32xf32>
    %cst_113 = arith.constant 1.000000e+00 : f32
    %518 = vector.broadcast %cst_113 : f32 to vector<2x32xf32>
    %519 = arith.addf %518, %517 : vector<2x32xf32>
    %520 = arith.divf %518, %519 : vector<2x32xf32>
    %521 = vector.extract_strided_slice %511 {offsets = [0, 32], sizes = [2, 32], strides = [1, 1]} : vector<2x128xf32> to vector<2x32xf32>
    %522 = arith.negf %521 : vector<2x32xf32>
    %523 = math.exp %522 : vector<2x32xf32>
    %cst_114 = arith.constant 1.000000e+00 : f32
    %524 = vector.broadcast %cst_114 : f32 to vector<2x32xf32>
    %525 = arith.addf %524, %523 : vector<2x32xf32>
    %526 = arith.divf %524, %525 : vector<2x32xf32>
    %527 = vector.extract_strided_slice %511 {offsets = [0, 64], sizes = [2, 32], strides = [1, 1]} : vector<2x128xf32> to vector<2x32xf32>
    %528 = math.tanh %527 : vector<2x32xf32>
    %529 = vector.extract_strided_slice %511 {offsets = [0, 96], sizes = [2, 32], strides = [1, 1]} : vector<2x128xf32> to vector<2x32xf32>
    %530 = arith.negf %529 : vector<2x32xf32>
    %531 = math.exp %530 : vector<2x32xf32>
    %cst_115 = arith.constant 1.000000e+00 : f32
    %532 = vector.broadcast %cst_115 : f32 to vector<2x32xf32>
    %533 = arith.addf %532, %531 : vector<2x32xf32>
    %534 = arith.divf %532, %533 : vector<2x32xf32>
    %535 = arith.mulf %526, %506 : vector<2x32xf32>
    %536 = arith.mulf %520, %528 : vector<2x32xf32>
    %537 = arith.addf %535, %536 : vector<2x32xf32>
    %538 = math.tanh %537 : vector<2x32xf32>
    %539 = arith.mulf %534, %538 : vector<2x32xf32>
    %540 = vector.extract_strided_slice %514 {offsets = [0, 0], sizes = [2, 32], strides = [1, 1]} : vector<2x128xf32> to vector<2x32xf32>
    %541 = arith.negf %540 : vector<2x32xf32>
    %542 = math.exp %541 : vector<2x32xf32>
    %cst_116 = arith.constant 1.000000e+00 : f32
    %543 = vector.broadcast %cst_116 : f32 to vector<2x32xf32>
    %544 = arith.addf %543, %542 : vector<2x32xf32>
    %545 = arith.divf %543, %544 : vector<2x32xf32>
    %546 = vector.extract_strided_slice %514 {offsets = [0, 32], sizes = [2, 32], strides = [1, 1]} : vector<2x128xf32> to vector<2x32xf32>
    %547 = arith.negf %546 : vector<2x32xf32>
    %548 = math.exp %547 : vector<2x32xf32>
    %cst_117 = arith.constant 1.000000e+00 : f32
    %549 = vector.broadcast %cst_117 : f32 to vector<2x32xf32>
    %550 = arith.addf %549, %548 : vector<2x32xf32>
    %551 = arith.divf %549, %550 : vector<2x32xf32>
    %552 = vector.extract_strided_slice %514 {offsets = [0, 64], sizes = [2, 32], strides = [1, 1]} : vector<2x128xf32> to vector<2x32xf32>
    %553 = math.tanh %552 : vector<2x32xf32>
    %554 = vector.extract_strided_slice %514 {offsets = [0, 96], sizes = [2, 32], strides = [1, 1]} : vector<2x128xf32> to vector<2x32xf32>
    %555 = arith.negf %554 : vector<2x32xf32>
    %556 = math.exp %555 : vector<2x32xf32>
    %cst_118 = arith.constant 1.000000e+00 : f32
    %557 = vector.broadcast %cst_118 : f32 to vector<2x32xf32>
    %558 = arith.addf %557, %556 : vector<2x32xf32>
    %559 = arith.divf %557, %558 : vector<2x32xf32>
    %560 = arith.mulf %551, %507 : vector<2x32xf32>
    %561 = arith.mulf %545, %553 : vector<2x32xf32>
    %562 = arith.addf %560, %561 : vector<2x32xf32>
    %563 = math.tanh %562 : vector<2x32xf32>
    %564 = arith.mulf %559, %563 : vector<2x32xf32>
    %c0_119 = arith.constant 0 : index
    %c0_120 = arith.constant 0 : index
    %565 = vector.load %arg12[%c0_119, %c0_120] : memref<16x32xf32, #tpu.memory_space<vmem>>, vector<2x32xf32>
    tpu.vector_store %arg12[%c0_119, %c0_120], %539 {strides = array<i32>} : memref<16x32xf32, #tpu.memory_space<vmem>>, vector<2x32xf32>,
    %c14_121 = arith.constant 14 : index
    %c0_122 = arith.constant 0 : index
    %566 = vector.load %arg13[%c14_121, %c0_122] : memref<16x32xf32, #tpu.memory_space<vmem>>, vector<2x32xf32>
    tpu.vector_store %arg13[%c14_121, %c0_122], %564 {strides = array<i32>} : memref<16x32xf32, #tpu.memory_space<vmem>>, vector<2x32xf32>,
    %567 = tpu.concatenate %539, %564 in 1 : vector<2x32xf32>, vector<2x32xf32> -> vector<2x64xf32>
    %cst_123 = arith.constant dense<0.000000e+00> : vector<2x256xf32>
    %568 = tpu.matmul %567, %504, %cst_123 {dimension_numbers = #tpu.dot_dimension_numbers<[1], [0], [0], [1], [0, 0, 1, 1], [], []>} : vector<2x64xf32>, vector<64x256xf32>, vector<2x256xf32> -> vector<2x256xf32>
    %569 = vector.extract_strided_slice %568 {offsets = [0, 0], sizes = [2, 128], strides = [1, 1]} : vector<2x256xf32> to vector<2x128xf32>
    %570 = vector.extract_strided_slice %503 {offsets = [2, 0], sizes = [2, 128], strides = [1, 1]} : vector<16x256xf32> to vector<2x128xf32>
    %571 = arith.addf %569, %570 : vector<2x128xf32>
    %572 = vector.extract_strided_slice %568 {offsets = [0, 128], sizes = [2, 128], strides = [1, 1]} : vector<2x256xf32> to vector<2x128xf32>
    %573 = vector.extract_strided_slice %503 {offsets = [12, 128], sizes = [2, 128], strides = [1, 1]} : vector<16x256xf32> to vector<2x128xf32>
    %574 = arith.addf %572, %573 : vector<2x128xf32>
    %575 = vector.extract_strided_slice %571 {offsets = [0, 0], sizes = [2, 32], strides = [1, 1]} : vector<2x128xf32> to vector<2x32xf32>
    %576 = arith.negf %575 : vector<2x32xf32>
    %577 = math.exp %576 : vector<2x32xf32>
    %cst_124 = arith.constant 1.000000e+00 : f32
    %578 = vector.broadcast %cst_124 : f32 to vector<2x32xf32>
    %579 = arith.addf %578, %577 : vector<2x32xf32>
    %580 = arith.divf %578, %579 : vector<2x32xf32>
    %581 = vector.extract_strided_slice %571 {offsets = [0, 32], sizes = [2, 32], strides = [1, 1]} : vector<2x128xf32> to vector<2x32xf32>
    %582 = arith.negf %581 : vector<2x32xf32>
    %583 = math.exp %582 : vector<2x32xf32>
    %cst_125 = arith.constant 1.000000e+00 : f32
    %584 = vector.broadcast %cst_125 : f32 to vector<2x32xf32>
    %585 = arith.addf %584, %583 : vector<2x32xf32>
    %586 = arith.divf %584, %585 : vector<2x32xf32>
    %587 = vector.extract_strided_slice %571 {offsets = [0, 64], sizes = [2, 32], strides = [1, 1]} : vector<2x128xf32> to vector<2x32xf32>
    %588 = math.tanh %587 : vector<2x32xf32>
    %589 = vector.extract_strided_slice %571 {offsets = [0, 96], sizes = [2, 32], strides = [1, 1]} : vector<2x128xf32> to vector<2x32xf32>
    %590 = arith.negf %589 : vector<2x32xf32>
    %591 = math.exp %590 : vector<2x32xf32>
    %cst_126 = arith.constant 1.000000e+00 : f32
    %592 = vector.broadcast %cst_126 : f32 to vector<2x32xf32>
    %593 = arith.addf %592, %591 : vector<2x32xf32>
    %594 = arith.divf %592, %593 : vector<2x32xf32>
    %595 = arith.mulf %586, %537 : vector<2x32xf32>
    %596 = arith.mulf %580, %588 : vector<2x32xf32>
    %597 = arith.addf %595, %596 : vector<2x32xf32>
    %598 = math.tanh %597 : vector<2x32xf32>
    %599 = arith.mulf %594, %598 : vector<2x32xf32>
    %600 = vector.extract_strided_slice %574 {offsets = [0, 0], sizes = [2, 32], strides = [1, 1]} : vector<2x128xf32> to vector<2x32xf32>
    %601 = arith.negf %600 : vector<2x32xf32>
    %602 = math.exp %601 : vector<2x32xf32>
    %cst_127 = arith.constant 1.000000e+00 : f32
    %603 = vector.broadcast %cst_127 : f32 to vector<2x32xf32>
    %604 = arith.addf %603, %602 : vector<2x32xf32>
    %605 = arith.divf %603, %604 : vector<2x32xf32>
    %606 = vector.extract_strided_slice %574 {offsets = [0, 32], sizes = [2, 32], strides = [1, 1]} : vector<2x128xf32> to vector<2x32xf32>
    %607 = arith.negf %606 : vector<2x32xf32>
    %608 = math.exp %607 : vector<2x32xf32>
    %cst_128 = arith.constant 1.000000e+00 : f32
    %609 = vector.broadcast %cst_128 : f32 to vector<2x32xf32>
    %610 = arith.addf %609, %608 : vector<2x32xf32>
    %611 = arith.divf %609, %610 : vector<2x32xf32>
    %612 = vector.extract_strided_slice %574 {offsets = [0, 64], sizes = [2, 32], strides = [1, 1]} : vector<2x128xf32> to vector<2x32xf32>
    %613 = math.tanh %612 : vector<2x32xf32>
    %614 = vector.extract_strided_slice %574 {offsets = [0, 96], sizes = [2, 32], strides = [1, 1]} : vector<2x128xf32> to vector<2x32xf32>
    %615 = arith.negf %614 : vector<2x32xf32>
    %616 = math.exp %615 : vector<2x32xf32>
    %cst_129 = arith.constant 1.000000e+00 : f32
    %617 = vector.broadcast %cst_129 : f32 to vector<2x32xf32>
    %618 = arith.addf %617, %616 : vector<2x32xf32>
    %619 = arith.divf %617, %618 : vector<2x32xf32>
    %620 = arith.mulf %611, %562 : vector<2x32xf32>
    %621 = arith.mulf %605, %613 : vector<2x32xf32>
    %622 = arith.addf %620, %621 : vector<2x32xf32>
    %623 = math.tanh %622 : vector<2x32xf32>
    %624 = arith.mulf %619, %623 : vector<2x32xf32>
    %c2_130 = arith.constant 2 : index
    %c0_131 = arith.constant 0 : index
    %625 = vector.load %arg12[%c2_130, %c0_131] : memref<16x32xf32, #tpu.memory_space<vmem>>, vector<2x32xf32>
    tpu.vector_store %arg12[%c2_130, %c0_131], %599 {strides = array<i32>} : memref<16x32xf32, #tpu.memory_space<vmem>>, vector<2x32xf32>,
    %c12_132 = arith.constant 12 : index
    %c0_133 = arith.constant 0 : index
    %626 = vector.load %arg13[%c12_132, %c0_133] : memref<16x32xf32, #tpu.memory_space<vmem>>, vector<2x32xf32>
    tpu.vector_store %arg13[%c12_132, %c0_133], %624 {strides = array<i32>} : memref<16x32xf32, #tpu.memory_space<vmem>>, vector<2x32xf32>,
    %627 = tpu.concatenate %599, %624 in 1 : vector<2x32xf32>, vector<2x32xf32> -> vector<2x64xf32>
    %cst_134 = arith.constant dense<0.000000e+00> : vector<2x256xf32>
    %628 = tpu.matmul %627, %504, %cst_134 {dimension_numbers = #tpu.dot_dimension_numbers<[1], [0], [0], [1], [0, 0, 1, 1], [], []>} : vector<2x64xf32>, vector<64x256xf32>, vector<2x256xf32> -> vector<2x256xf32>
    %629 = vector.extract_strided_slice %628 {offsets = [0, 0], sizes = [2, 128], strides = [1, 1]} : vector<2x256xf32> to vector<2x128xf32>
    %630 = vector.extract_strided_slice %503 {offsets = [4, 0], sizes = [2, 128], strides = [1, 1]} : vector<16x256xf32> to vector<2x128xf32>
    %631 = arith.addf %629, %630 : vector<2x128xf32>
    %632 = vector.extract_strided_slice %628 {offsets = [0, 128], sizes = [2, 128], strides = [1, 1]} : vector<2x256xf32> to vector<2x128xf32>
    %633 = vector.extract_strided_slice %503 {offsets = [10, 128], sizes = [2, 128], strides = [1, 1]} : vector<16x256xf32> to vector<2x128xf32>
    %634 = arith.addf %632, %633 : vector<2x128xf32>
    %635 = vector.extract_strided_slice %631 {offsets = [0, 0], sizes = [2, 32], strides = [1, 1]} : vector<2x128xf32> to vector<2x32xf32>
    %636 = arith.negf %635 : vector<2x32xf32>
    %637 = math.exp %636 : vector<2x32xf32>
    %cst_135 = arith.constant 1.000000e+00 : f32
    %638 = vector.broadcast %cst_135 : f32 to vector<2x32xf32>
    %639 = arith.addf %638, %637 : vector<2x32xf32>
    %640 = arith.divf %638, %639 : vector<2x32xf32>
    %641 = vector.extract_strided_slice %631 {offsets = [0, 32], sizes = [2, 32], strides = [1, 1]} : vector<2x128xf32> to vector<2x32xf32>
    %642 = arith.negf %641 : vector<2x32xf32>
    %643 = math.exp %642 : vector<2x32xf32>
    %cst_136 = arith.constant 1.000000e+00 : f32
    %644 = vector.broadcast %cst_136 : f32 to vector<2x32xf32>
    %645 = arith.addf %644, %643 : vector<2x32xf32>
    %646 = arith.divf %644, %645 : vector<2x32xf32>
    %647 = vector.extract_strided_slice %631 {offsets = [0, 64], sizes = [2, 32], strides = [1, 1]} : vector<2x128xf32> to vector<2x32xf32>
    %648 = math.tanh %647 : vector<2x32xf32>
    %649 = vector.extract_strided_slice %631 {offsets = [0, 96], sizes = [2, 32], strides = [1, 1]} : vector<2x128xf32> to vector<2x32xf32>
    %650 = arith.negf %649 : vector<2x32xf32>
    %651 = math.exp %650 : vector<2x32xf32>
    %cst_137 = arith.constant 1.000000e+00 : f32
    %652 = vector.broadcast %cst_137 : f32 to vector<2x32xf32>
    %653 = arith.addf %652, %651 : vector<2x32xf32>
    %654 = arith.divf %652, %653 : vector<2x32xf32>
    %655 = arith.mulf %646, %597 : vector<2x32xf32>
    %656 = arith.mulf %640, %648 : vector<2x32xf32>
    %657 = arith.addf %655, %656 : vector<2x32xf32>
    %658 = math.tanh %657 : vector<2x32xf32>
    %659 = arith.mulf %654, %658 : vector<2x32xf32>
    %660 = vector.extract_strided_slice %634 {offsets = [0, 0], sizes = [2, 32], strides = [1, 1]} : vector<2x128xf32> to vector<2x32xf32>
    %661 = arith.negf %660 : vector<2x32xf32>
    %662 = math.exp %661 : vector<2x32xf32>
    %cst_138 = arith.constant 1.000000e+00 : f32
    %663 = vector.broadcast %cst_138 : f32 to vector<2x32xf32>
    %664 = arith.addf %663, %662 : vector<2x32xf32>
    %665 = arith.divf %663, %664 : vector<2x32xf32>
    %666 = vector.extract_strided_slice %634 {offsets = [0, 32], sizes = [2, 32], strides = [1, 1]} : vector<2x128xf32> to vector<2x32xf32>
    %667 = arith.negf %666 : vector<2x32xf32>
    %668 = math.exp %667 : vector<2x32xf32>
    %cst_139 = arith.constant 1.000000e+00 : f32
    %669 = vector.broadcast %cst_139 : f32 to vector<2x32xf32>
    %670 = arith.addf %669, %668 : vector<2x32xf32>
    %671 = arith.divf %669, %670 : vector<2x32xf32>
    %672 = vector.extract_strided_slice %634 {offsets = [0, 64], sizes = [2, 32], strides = [1, 1]} : vector<2x128xf32> to vector<2x32xf32>
    %673 = math.tanh %672 : vector<2x32xf32>
    %674 = vector.extract_strided_slice %634 {offsets = [0, 96], sizes = [2, 32], strides = [1, 1]} : vector<2x128xf32> to vector<2x32xf32>
    %675 = arith.negf %674 : vector<2x32xf32>
    %676 = math.exp %675 : vector<2x32xf32>
    %cst_140 = arith.constant 1.000000e+00 : f32
    %677 = vector.broadcast %cst_140 : f32 to vector<2x32xf32>
    %678 = arith.addf %677, %676 : vector<2x32xf32>
    %679 = arith.divf %677, %678 : vector<2x32xf32>
    %680 = arith.mulf %671, %622 : vector<2x32xf32>
    %681 = arith.mulf %665, %673 : vector<2x32xf32>
    %682 = arith.addf %680, %681 : vector<2x32xf32>
    %683 = math.tanh %682 : vector<2x32xf32>
    %684 = arith.mulf %679, %683 : vector<2x32xf32>
    %c4_141 = arith.constant 4 : index
    %c0_142 = arith.constant 0 : index
    %685 = vector.load %arg12[%c4_141, %c0_142] : memref<16x32xf32, #tpu.memory_space<vmem>>, vector<2x32xf32>
    tpu.vector_store %arg12[%c4_141, %c0_142], %659 {strides = array<i32>} : memref<16x32xf32, #tpu.memory_space<vmem>>, vector<2x32xf32>,
    %c10_143 = arith.constant 10 : index
    %c0_144 = arith.constant 0 : index
    %686 = vector.load %arg13[%c10_143, %c0_144] : memref<16x32xf32, #tpu.memory_space<vmem>>, vector<2x32xf32>
    tpu.vector_store %arg13[%c10_143, %c0_144], %684 {strides = array<i32>} : memref<16x32xf32, #tpu.memory_space<vmem>>, vector<2x32xf32>,
    %687 = tpu.concatenate %659, %684 in 1 : vector<2x32xf32>, vector<2x32xf32> -> vector<2x64xf32>
    %cst_145 = arith.constant dense<0.000000e+00> : vector<2x256xf32>
    %688 = tpu.matmul %687, %504, %cst_145 {dimension_numbers = #tpu.dot_dimension_numbers<[1], [0], [0], [1], [0, 0, 1, 1], [], []>} : vector<2x64xf32>, vector<64x256xf32>, vector<2x256xf32> -> vector<2x256xf32>
    %689 = vector.extract_strided_slice %688 {offsets = [0, 0], sizes = [2, 128], strides = [1, 1]} : vector<2x256xf32> to vector<2x128xf32>
    %690 = vector.extract_strided_slice %503 {offsets = [6, 0], sizes = [2, 128], strides = [1, 1]} : vector<16x256xf32> to vector<2x128xf32>
    %691 = arith.addf %689, %690 : vector<2x128xf32>
    %692 = vector.extract_strided_slice %688 {offsets = [0, 128], sizes = [2, 128], strides = [1, 1]} : vector<2x256xf32> to vector<2x128xf32>
    %693 = vector.extract_strided_slice %503 {offsets = [8, 128], sizes = [2, 128], strides = [1, 1]} : vector<16x256xf32> to vector<2x128xf32>
    %694 = arith.addf %692, %693 : vector<2x128xf32>
    %695 = vector.extract_strided_slice %691 {offsets = [0, 0], sizes = [2, 32], strides = [1, 1]} : vector<2x128xf32> to vector<2x32xf32>
    %696 = arith.negf %695 : vector<2x32xf32>
    %697 = math.exp %696 : vector<2x32xf32>
    %cst_146 = arith.constant 1.000000e+00 : f32
    %698 = vector.broadcast %cst_146 : f32 to vector<2x32xf32>
    %699 = arith.addf %698, %697 : vector<2x32xf32>
    %700 = arith.divf %698, %699 : vector<2x32xf32>
    %701 = vector.extract_strided_slice %691 {offsets = [0, 32], sizes = [2, 32], strides = [1, 1]} : vector<2x128xf32> to vector<2x32xf32>
    %702 = arith.negf %701 : vector<2x32xf32>
    %703 = math.exp %702 : vector<2x32xf32>
    %cst_147 = arith.constant 1.000000e+00 : f32
    %704 = vector.broadcast %cst_147 : f32 to vector<2x32xf32>
    %705 = arith.addf %704, %703 : vector<2x32xf32>
    %706 = arith.divf %704, %705 : vector<2x32xf32>
    %707 = vector.extract_strided_slice %691 {offsets = [0, 64], sizes = [2, 32], strides = [1, 1]} : vector<2x128xf32> to vector<2x32xf32>
    %708 = math.tanh %707 : vector<2x32xf32>
    %709 = vector.extract_strided_slice %691 {offsets = [0, 96], sizes = [2, 32], strides = [1, 1]} : vector<2x128xf32> to vector<2x32xf32>
    %710 = arith.negf %709 : vector<2x32xf32>
    %711 = math.exp %710 : vector<2x32xf32>
    %cst_148 = arith.constant 1.000000e+00 : f32
    %712 = vector.broadcast %cst_148 : f32 to vector<2x32xf32>
    %713 = arith.addf %712, %711 : vector<2x32xf32>
    %714 = arith.divf %712, %713 : vector<2x32xf32>
    %715 = arith.mulf %706, %657 : vector<2x32xf32>
    %716 = arith.mulf %700, %708 : vector<2x32xf32>
    %717 = arith.addf %715, %716 : vector<2x32xf32>
    %718 = math.tanh %717 : vector<2x32xf32>
    %719 = arith.mulf %714, %718 : vector<2x32xf32>
    %720 = vector.extract_strided_slice %694 {offsets = [0, 0], sizes = [2, 32], strides = [1, 1]} : vector<2x128xf32> to vector<2x32xf32>
    %721 = arith.negf %720 : vector<2x32xf32>
    %722 = math.exp %721 : vector<2x32xf32>
    %cst_149 = arith.constant 1.000000e+00 : f32
    %723 = vector.broadcast %cst_149 : f32 to vector<2x32xf32>
    %724 = arith.addf %723, %722 : vector<2x32xf32>
    %725 = arith.divf %723, %724 : vector<2x32xf32>
    %726 = vector.extract_strided_slice %694 {offsets = [0, 32], sizes = [2, 32], strides = [1, 1]} : vector<2x128xf32> to vector<2x32xf32>
    %727 = arith.negf %726 : vector<2x32xf32>
    %728 = math.exp %727 : vector<2x32xf32>
    %cst_150 = arith.constant 1.000000e+00 : f32
    %729 = vector.broadcast %cst_150 : f32 to vector<2x32xf32>
    %730 = arith.addf %729, %728 : vector<2x32xf32>
    %731 = arith.divf %729, %730 : vector<2x32xf32>
    %732 = vector.extract_strided_slice %694 {offsets = [0, 64], sizes = [2, 32], strides = [1, 1]} : vector<2x128xf32> to vector<2x32xf32>
    %733 = math.tanh %732 : vector<2x32xf32>
    %734 = vector.extract_strided_slice %694 {offsets = [0, 96], sizes = [2, 32], strides = [1, 1]} : vector<2x128xf32> to vector<2x32xf32>
    %735 = arith.negf %734 : vector<2x32xf32>
    %736 = math.exp %735 : vector<2x32xf32>
    %cst_151 = arith.constant 1.000000e+00 : f32
    %737 = vector.broadcast %cst_151 : f32 to vector<2x32xf32>
    %738 = arith.addf %737, %736 : vector<2x32xf32>
    %739 = arith.divf %737, %738 : vector<2x32xf32>
    %740 = arith.mulf %731, %682 : vector<2x32xf32>
    %741 = arith.mulf %725, %733 : vector<2x32xf32>
    %742 = arith.addf %740, %741 : vector<2x32xf32>
    %743 = math.tanh %742 : vector<2x32xf32>
    %744 = arith.mulf %739, %743 : vector<2x32xf32>
    %c6_152 = arith.constant 6 : index
    %c0_153 = arith.constant 0 : index
    %745 = vector.load %arg12[%c6_152, %c0_153] : memref<16x32xf32, #tpu.memory_space<vmem>>, vector<2x32xf32>
    tpu.vector_store %arg12[%c6_152, %c0_153], %719 {strides = array<i32>} : memref<16x32xf32, #tpu.memory_space<vmem>>, vector<2x32xf32>,
    %c8_154 = arith.constant 8 : index
    %c0_155 = arith.constant 0 : index
    %746 = vector.load %arg13[%c8_154, %c0_155] : memref<16x32xf32, #tpu.memory_space<vmem>>, vector<2x32xf32>
    tpu.vector_store %arg13[%c8_154, %c0_155], %744 {strides = array<i32>} : memref<16x32xf32, #tpu.memory_space<vmem>>, vector<2x32xf32>,
    %747 = tpu.concatenate %719, %744 in 1 : vector<2x32xf32>, vector<2x32xf32> -> vector<2x64xf32>
    %cst_156 = arith.constant dense<0.000000e+00> : vector<2x256xf32>
    %748 = tpu.matmul %747, %504, %cst_156 {dimension_numbers = #tpu.dot_dimension_numbers<[1], [0], [0], [1], [0, 0, 1, 1], [], []>} : vector<2x64xf32>, vector<64x256xf32>, vector<2x256xf32> -> vector<2x256xf32>
    %749 = vector.extract_strided_slice %748 {offsets = [0, 0], sizes = [2, 128], strides = [1, 1]} : vector<2x256xf32> to vector<2x128xf32>
    %750 = vector.extract_strided_slice %503 {offsets = [8, 0], sizes = [2, 128], strides = [1, 1]} : vector<16x256xf32> to vector<2x128xf32>
    %751 = arith.addf %749, %750 : vector<2x128xf32>
    %752 = vector.extract_strided_slice %748 {offsets = [0, 128], sizes = [2, 128], strides = [1, 1]} : vector<2x256xf32> to vector<2x128xf32>
    %753 = vector.extract_strided_slice %503 {offsets = [6, 128], sizes = [2, 128], strides = [1, 1]} : vector<16x256xf32> to vector<2x128xf32>
    %754 = arith.addf %752, %753 : vector<2x128xf32>
    %755 = vector.extract_strided_slice %751 {offsets = [0, 0], sizes = [2, 32], strides = [1, 1]} : vector<2x128xf32> to vector<2x32xf32>
    %756 = arith.negf %755 : vector<2x32xf32>
    %757 = math.exp %756 : vector<2x32xf32>
    %cst_157 = arith.constant 1.000000e+00 : f32
    %758 = vector.broadcast %cst_157 : f32 to vector<2x32xf32>
    %759 = arith.addf %758, %757 : vector<2x32xf32>
    %760 = arith.divf %758, %759 : vector<2x32xf32>
    %761 = vector.extract_strided_slice %751 {offsets = [0, 32], sizes = [2, 32], strides = [1, 1]} : vector<2x128xf32> to vector<2x32xf32>
    %762 = arith.negf %761 : vector<2x32xf32>
    %763 = math.exp %762 : vector<2x32xf32>
    %cst_158 = arith.constant 1.000000e+00 : f32
    %764 = vector.broadcast %cst_158 : f32 to vector<2x32xf32>
    %765 = arith.addf %764, %763 : vector<2x32xf32>
    %766 = arith.divf %764, %765 : vector<2x32xf32>
    %767 = vector.extract_strided_slice %751 {offsets = [0, 64], sizes = [2, 32], strides = [1, 1]} : vector<2x128xf32> to vector<2x32xf32>
    %768 = math.tanh %767 : vector<2x32xf32>
    %769 = vector.extract_strided_slice %751 {offsets = [0, 96], sizes = [2, 32], strides = [1, 1]} : vector<2x128xf32> to vector<2x32xf32>
    %770 = arith.negf %769 : vector<2x32xf32>
    %771 = math.exp %770 : vector<2x32xf32>
    %cst_159 = arith.constant 1.000000e+00 : f32
    %772 = vector.broadcast %cst_159 : f32 to vector<2x32xf32>
    %773 = arith.addf %772, %771 : vector<2x32xf32>
    %774 = arith.divf %772, %773 : vector<2x32xf32>
    %775 = arith.mulf %766, %717 : vector<2x32xf32>
    %776 = arith.mulf %760, %768 : vector<2x32xf32>
    %777 = arith.addf %775, %776 : vector<2x32xf32>
    %778 = math.tanh %777 : vector<2x32xf32>
    %779 = arith.mulf %774, %778 : vector<2x32xf32>
    %780 = vector.extract_strided_slice %754 {offsets = [0, 0], sizes = [2, 32], strides = [1, 1]} : vector<2x128xf32> to vector<2x32xf32>
    %781 = arith.negf %780 : vector<2x32xf32>
    %782 = math.exp %781 : vector<2x32xf32>
    %cst_160 = arith.constant 1.000000e+00 : f32
    %783 = vector.broadcast %cst_160 : f32 to vector<2x32xf32>
    %784 = arith.addf %783, %782 : vector<2x32xf32>
    %785 = arith.divf %783, %784 : vector<2x32xf32>
    %786 = vector.extract_strided_slice %754 {offsets = [0, 32], sizes = [2, 32], strides = [1, 1]} : vector<2x128xf32> to vector<2x32xf32>
    %787 = arith.negf %786 : vector<2x32xf32>
    %788 = math.exp %787 : vector<2x32xf32>
    %cst_161 = arith.constant 1.000000e+00 : f32
    %789 = vector.broadcast %cst_161 : f32 to vector<2x32xf32>
    %790 = arith.addf %789, %788 : vector<2x32xf32>
    %791 = arith.divf %789, %790 : vector<2x32xf32>
    %792 = vector.extract_strided_slice %754 {offsets = [0, 64], sizes = [2, 32], strides = [1, 1]} : vector<2x128xf32> to vector<2x32xf32>
    %793 = math.tanh %792 : vector<2x32xf32>
    %794 = vector.extract_strided_slice %754 {offsets = [0, 96], sizes = [2, 32], strides = [1, 1]} : vector<2x128xf32> to vector<2x32xf32>
    %795 = arith.negf %794 : vector<2x32xf32>
    %796 = math.exp %795 : vector<2x32xf32>
    %cst_162 = arith.constant 1.000000e+00 : f32
    %797 = vector.broadcast %cst_162 : f32 to vector<2x32xf32>
    %798 = arith.addf %797, %796 : vector<2x32xf32>
    %799 = arith.divf %797, %798 : vector<2x32xf32>
    %800 = arith.mulf %791, %742 : vector<2x32xf32>
    %801 = arith.mulf %785, %793 : vector<2x32xf32>
    %802 = arith.addf %800, %801 : vector<2x32xf32>
    %803 = math.tanh %802 : vector<2x32xf32>
    %804 = arith.mulf %799, %803 : vector<2x32xf32>
    %c8_163 = arith.constant 8 : index
    %c0_164 = arith.constant 0 : index
    %805 = vector.load %arg12[%c8_163, %c0_164] : memref<16x32xf32, #tpu.memory_space<vmem>>, vector<2x32xf32>
    tpu.vector_store %arg12[%c8_163, %c0_164], %779 {strides = array<i32>} : memref<16x32xf32, #tpu.memory_space<vmem>>, vector<2x32xf32>,
    %c6_165 = arith.constant 6 : index
    %c0_166 = arith.constant 0 : index
    %806 = vector.load %arg13[%c6_165, %c0_166] : memref<16x32xf32, #tpu.memory_space<vmem>>, vector<2x32xf32>
    tpu.vector_store %arg13[%c6_165, %c0_166], %804 {strides = array<i32>} : memref<16x32xf32, #tpu.memory_space<vmem>>, vector<2x32xf32>,
    %807 = tpu.concatenate %779, %804 in 1 : vector<2x32xf32>, vector<2x32xf32> -> vector<2x64xf32>
    %cst_167 = arith.constant dense<0.000000e+00> : vector<2x256xf32>
    %808 = tpu.matmul %807, %504, %cst_167 {dimension_numbers = #tpu.dot_dimension_numbers<[1], [0], [0], [1], [0, 0, 1, 1], [], []>} : vector<2x64xf32>, vector<64x256xf32>, vector<2x256xf32> -> vector<2x256xf32>
    %809 = vector.extract_strided_slice %808 {offsets = [0, 0], sizes = [2, 128], strides = [1, 1]} : vector<2x256xf32> to vector<2x128xf32>
    %810 = vector.extract_strided_slice %503 {offsets = [10, 0], sizes = [2, 128], strides = [1, 1]} : vector<16x256xf32> to vector<2x128xf32>
    %811 = arith.addf %809, %810 : vector<2x128xf32>
    %812 = vector.extract_strided_slice %808 {offsets = [0, 128], sizes = [2, 128], strides = [1, 1]} : vector<2x256xf32> to vector<2x128xf32>
    %813 = vector.extract_strided_slice %503 {offsets = [4, 128], sizes = [2, 128], strides = [1, 1]} : vector<16x256xf32> to vector<2x128xf32>
    %814 = arith.addf %812, %813 : vector<2x128xf32>
    %815 = vector.extract_strided_slice %811 {offsets = [0, 0], sizes = [2, 32], strides = [1, 1]} : vector<2x128xf32> to vector<2x32xf32>
    %816 = arith.negf %815 : vector<2x32xf32>
    %817 = math.exp %816 : vector<2x32xf32>
    %cst_168 = arith.constant 1.000000e+00 : f32
    %818 = vector.broadcast %cst_168 : f32 to vector<2x32xf32>
    %819 = arith.addf %818, %817 : vector<2x32xf32>
    %820 = arith.divf %818, %819 : vector<2x32xf32>
    %821 = vector.extract_strided_slice %811 {offsets = [0, 32], sizes = [2, 32], strides = [1, 1]} : vector<2x128xf32> to vector<2x32xf32>
    %822 = arith.negf %821 : vector<2x32xf32>
    %823 = math.exp %822 : vector<2x32xf32>
    %cst_169 = arith.constant 1.000000e+00 : f32
    %824 = vector.broadcast %cst_169 : f32 to vector<2x32xf32>
    %825 = arith.addf %824, %823 : vector<2x32xf32>
    %826 = arith.divf %824, %825 : vector<2x32xf32>
    %827 = vector.extract_strided_slice %811 {offsets = [0, 64], sizes = [2, 32], strides = [1, 1]} : vector<2x128xf32> to vector<2x32xf32>
    %828 = math.tanh %827 : vector<2x32xf32>
    %829 = vector.extract_strided_slice %811 {offsets = [0, 96], sizes = [2, 32], strides = [1, 1]} : vector<2x128xf32> to vector<2x32xf32>
    %830 = arith.negf %829 : vector<2x32xf32>
    %831 = math.exp %830 : vector<2x32xf32>
    %cst_170 = arith.constant 1.000000e+00 : f32
    %832 = vector.broadcast %cst_170 : f32 to vector<2x32xf32>
    %833 = arith.addf %832, %831 : vector<2x32xf32>
    %834 = arith.divf %832, %833 : vector<2x32xf32>
    %835 = arith.mulf %826, %777 : vector<2x32xf32>
    %836 = arith.mulf %820, %828 : vector<2x32xf32>
    %837 = arith.addf %835, %836 : vector<2x32xf32>
    %838 = math.tanh %837 : vector<2x32xf32>
    %839 = arith.mulf %834, %838 : vector<2x32xf32>
    %840 = vector.extract_strided_slice %814 {offsets = [0, 0], sizes = [2, 32], strides = [1, 1]} : vector<2x128xf32> to vector<2x32xf32>
    %841 = arith.negf %840 : vector<2x32xf32>
    %842 = math.exp %841 : vector<2x32xf32>
    %cst_171 = arith.constant 1.000000e+00 : f32
    %843 = vector.broadcast %cst_171 : f32 to vector<2x32xf32>
    %844 = arith.addf %843, %842 : vector<2x32xf32>
    %845 = arith.divf %843, %844 : vector<2x32xf32>
    %846 = vector.extract_strided_slice %814 {offsets = [0, 32], sizes = [2, 32], strides = [1, 1]} : vector<2x128xf32> to vector<2x32xf32>
    %847 = arith.negf %846 : vector<2x32xf32>
    %848 = math.exp %847 : vector<2x32xf32>
    %cst_172 = arith.constant 1.000000e+00 : f32
    %849 = vector.broadcast %cst_172 : f32 to vector<2x32xf32>
    %850 = arith.addf %849, %848 : vector<2x32xf32>
    %851 = arith.divf %849, %850 : vector<2x32xf32>
    %852 = vector.extract_strided_slice %814 {offsets = [0, 64], sizes = [2, 32], strides = [1, 1]} : vector<2x128xf32> to vector<2x32xf32>
    %853 = math.tanh %852 : vector<2x32xf32>
    %854 = vector.extract_strided_slice %814 {offsets = [0, 96], sizes = [2, 32], strides = [1, 1]} : vector<2x128xf32> to vector<2x32xf32>
    %855 = arith.negf %854 : vector<2x32xf32>
    %856 = math.exp %855 : vector<2x32xf32>
    %cst_173 = arith.constant 1.000000e+00 : f32
    %857 = vector.broadcast %cst_173 : f32 to vector<2x32xf32>
    %858 = arith.addf %857, %856 : vector<2x32xf32>
    %859 = arith.divf %857, %858 : vector<2x32xf32>
    %860 = arith.mulf %851, %802 : vector<2x32xf32>
    %861 = arith.mulf %845, %853 : vector<2x32xf32>
    %862 = arith.addf %860, %861 : vector<2x32xf32>
    %863 = math.tanh %862 : vector<2x32xf32>
    %864 = arith.mulf %859, %863 : vector<2x32xf32>
    %c10_174 = arith.constant 10 : index
    %c0_175 = arith.constant 0 : index
    %865 = vector.load %arg12[%c10_174, %c0_175] : memref<16x32xf32, #tpu.memory_space<vmem>>, vector<2x32xf32>
    tpu.vector_store %arg12[%c10_174, %c0_175], %839 {strides = array<i32>} : memref<16x32xf32, #tpu.memory_space<vmem>>, vector<2x32xf32>,
    %c4_176 = arith.constant 4 : index
    %c0_177 = arith.constant 0 : index
    %866 = vector.load %arg13[%c4_176, %c0_177] : memref<16x32xf32, #tpu.memory_space<vmem>>, vector<2x32xf32>
    tpu.vector_store %arg13[%c4_176, %c0_177], %864 {strides = array<i32>} : memref<16x32xf32, #tpu.memory_space<vmem>>, vector<2x32xf32>,
    %867 = tpu.concatenate %839, %864 in 1 : vector<2x32xf32>, vector<2x32xf32> -> vector<2x64xf32>
    %cst_178 = arith.constant dense<0.000000e+00> : vector<2x256xf32>
    %868 = tpu.matmul %867, %504, %cst_178 {dimension_numbers = #tpu.dot_dimension_numbers<[1], [0], [0], [1], [0, 0, 1, 1], [], []>} : vector<2x64xf32>, vector<64x256xf32>, vector<2x256xf32> -> vector<2x256xf32>
    %869 = vector.extract_strided_slice %868 {offsets = [0, 0], sizes = [2, 128], strides = [1, 1]} : vector<2x256xf32> to vector<2x128xf32>
    %870 = vector.extract_strided_slice %503 {offsets = [12, 0], sizes = [2, 128], strides = [1, 1]} : vector<16x256xf32> to vector<2x128xf32>
    %871 = arith.addf %869, %870 : vector<2x128xf32>
    %872 = vector.extract_strided_slice %868 {offsets = [0, 128], sizes = [2, 128], strides = [1, 1]} : vector<2x256xf32> to vector<2x128xf32>
    %873 = vector.extract_strided_slice %503 {offsets = [2, 128], sizes = [2, 128], strides = [1, 1]} : vector<16x256xf32> to vector<2x128xf32>
    %874 = arith.addf %872, %873 : vector<2x128xf32>
    %875 = vector.extract_strided_slice %871 {offsets = [0, 0], sizes = [2, 32], strides = [1, 1]} : vector<2x128xf32> to vector<2x32xf32>
    %876 = arith.negf %875 : vector<2x32xf32>
    %877 = math.exp %876 : vector<2x32xf32>
    %cst_179 = arith.constant 1.000000e+00 : f32
    %878 = vector.broadcast %cst_179 : f32 to vector<2x32xf32>
    %879 = arith.addf %878, %877 : vector<2x32xf32>
    %880 = arith.divf %878, %879 : vector<2x32xf32>
    %881 = vector.extract_strided_slice %871 {offsets = [0, 32], sizes = [2, 32], strides = [1, 1]} : vector<2x128xf32> to vector<2x32xf32>
    %882 = arith.negf %881 : vector<2x32xf32>
    %883 = math.exp %882 : vector<2x32xf32>
    %cst_180 = arith.constant 1.000000e+00 : f32
    %884 = vector.broadcast %cst_180 : f32 to vector<2x32xf32>
    %885 = arith.addf %884, %883 : vector<2x32xf32>
    %886 = arith.divf %884, %885 : vector<2x32xf32>
    %887 = vector.extract_strided_slice %871 {offsets = [0, 64], sizes = [2, 32], strides = [1, 1]} : vector<2x128xf32> to vector<2x32xf32>
    %888 = math.tanh %887 : vector<2x32xf32>
    %889 = vector.extract_strided_slice %871 {offsets = [0, 96], sizes = [2, 32], strides = [1, 1]} : vector<2x128xf32> to vector<2x32xf32>
    %890 = arith.negf %889 : vector<2x32xf32>
    %891 = math.exp %890 : vector<2x32xf32>
    %cst_181 = arith.constant 1.000000e+00 : f32
    %892 = vector.broadcast %cst_181 : f32 to vector<2x32xf32>
    %893 = arith.addf %892, %891 : vector<2x32xf32>
    %894 = arith.divf %892, %893 : vector<2x32xf32>
    %895 = arith.mulf %886, %837 : vector<2x32xf32>
    %896 = arith.mulf %880, %888 : vector<2x32xf32>
    %897 = arith.addf %895, %896 : vector<2x32xf32>
    %898 = math.tanh %897 : vector<2x32xf32>
    %899 = arith.mulf %894, %898 : vector<2x32xf32>
    %900 = vector.extract_strided_slice %874 {offsets = [0, 0], sizes = [2, 32], strides = [1, 1]} : vector<2x128xf32> to vector<2x32xf32>
    %901 = arith.negf %900 : vector<2x32xf32>
    %902 = math.exp %901 : vector<2x32xf32>
    %cst_182 = arith.constant 1.000000e+00 : f32
    %903 = vector.broadcast %cst_182 : f32 to vector<2x32xf32>
    %904 = arith.addf %903, %902 : vector<2x32xf32>
    %905 = arith.divf %903, %904 : vector<2x32xf32>
    %906 = vector.extract_strided_slice %874 {offsets = [0, 32], sizes = [2, 32], strides = [1, 1]} : vector<2x128xf32> to vector<2x32xf32>
    %907 = arith.negf %906 : vector<2x32xf32>
    %908 = math.exp %907 : vector<2x32xf32>
    %cst_183 = arith.constant 1.000000e+00 : f32
    %909 = vector.broadcast %cst_183 : f32 to vector<2x32xf32>
    %910 = arith.addf %909, %908 : vector<2x32xf32>
    %911 = arith.divf %909, %910 : vector<2x32xf32>
    %912 = vector.extract_strided_slice %874 {offsets = [0, 64], sizes = [2, 32], strides = [1, 1]} : vector<2x128xf32> to vector<2x32xf32>
    %913 = math.tanh %912 : vector<2x32xf32>
    %914 = vector.extract_strided_slice %874 {offsets = [0, 96], sizes = [2, 32], strides = [1, 1]} : vector<2x128xf32> to vector<2x32xf32>
    %915 = arith.negf %914 : vector<2x32xf32>
    %916 = math.exp %915 : vector<2x32xf32>
    %cst_184 = arith.constant 1.000000e+00 : f32
    %917 = vector.broadcast %cst_184 : f32 to vector<2x32xf32>
    %918 = arith.addf %917, %916 : vector<2x32xf32>
    %919 = arith.divf %917, %918 : vector<2x32xf32>
    %920 = arith.mulf %911, %862 : vector<2x32xf32>
    %921 = arith.mulf %905, %913 : vector<2x32xf32>
    %922 = arith.addf %920, %921 : vector<2x32xf32>
    %923 = math.tanh %922 : vector<2x32xf32>
    %924 = arith.mulf %919, %923 : vector<2x32xf32>
    %c12_185 = arith.constant 12 : index
    %c0_186 = arith.constant 0 : index
    %925 = vector.load %arg12[%c12_185, %c0_186] : memref<16x32xf32, #tpu.memory_space<vmem>>, vector<2x32xf32>
    tpu.vector_store %arg12[%c12_185, %c0_186], %899 {strides = array<i32>} : memref<16x32xf32, #tpu.memory_space<vmem>>, vector<2x32xf32>,
    %c2_187 = arith.constant 2 : index
    %c0_188 = arith.constant 0 : index
    %926 = vector.load %arg13[%c2_187, %c0_188] : memref<16x32xf32, #tpu.memory_space<vmem>>, vector<2x32xf32>
    tpu.vector_store %arg13[%c2_187, %c0_188], %924 {strides = array<i32>} : memref<16x32xf32, #tpu.memory_space<vmem>>, vector<2x32xf32>,
    %927 = tpu.concatenate %899, %924 in 1 : vector<2x32xf32>, vector<2x32xf32> -> vector<2x64xf32>
    %cst_189 = arith.constant dense<0.000000e+00> : vector<2x256xf32>
    %928 = tpu.matmul %927, %504, %cst_189 {dimension_numbers = #tpu.dot_dimension_numbers<[1], [0], [0], [1], [0, 0, 1, 1], [], []>} : vector<2x64xf32>, vector<64x256xf32>, vector<2x256xf32> -> vector<2x256xf32>
    %929 = vector.extract_strided_slice %928 {offsets = [0, 0], sizes = [2, 128], strides = [1, 1]} : vector<2x256xf32> to vector<2x128xf32>
    %930 = vector.extract_strided_slice %503 {offsets = [14, 0], sizes = [2, 128], strides = [1, 1]} : vector<16x256xf32> to vector<2x128xf32>
    %931 = arith.addf %929, %930 : vector<2x128xf32>
    %932 = vector.extract_strided_slice %928 {offsets = [0, 128], sizes = [2, 128], strides = [1, 1]} : vector<2x256xf32> to vector<2x128xf32>
    %933 = vector.extract_strided_slice %503 {offsets = [0, 128], sizes = [2, 128], strides = [1, 1]} : vector<16x256xf32> to vector<2x128xf32>
    %934 = arith.addf %932, %933 : vector<2x128xf32>
    %935 = vector.extract_strided_slice %931 {offsets = [0, 0], sizes = [2, 32], strides = [1, 1]} : vector<2x128xf32> to vector<2x32xf32>
    %936 = arith.negf %935 : vector<2x32xf32>
    %937 = math.exp %936 : vector<2x32xf32>
    %cst_190 = arith.constant 1.000000e+00 : f32
    %938 = vector.broadcast %cst_190 : f32 to vector<2x32xf32>
    %939 = arith.addf %938, %937 : vector<2x32xf32>
    %940 = arith.divf %938, %939 : vector<2x32xf32>
    %941 = vector.extract_strided_slice %931 {offsets = [0, 32], sizes = [2, 32], strides = [1, 1]} : vector<2x128xf32> to vector<2x32xf32>
    %942 = arith.negf %941 : vector<2x32xf32>
    %943 = math.exp %942 : vector<2x32xf32>
    %cst_191 = arith.constant 1.000000e+00 : f32
    %944 = vector.broadcast %cst_191 : f32 to vector<2x32xf32>
    %945 = arith.addf %944, %943 : vector<2x32xf32>
    %946 = arith.divf %944, %945 : vector<2x32xf32>
    %947 = vector.extract_strided_slice %931 {offsets = [0, 64], sizes = [2, 32], strides = [1, 1]} : vector<2x128xf32> to vector<2x32xf32>
    %948 = math.tanh %947 : vector<2x32xf32>
    %949 = vector.extract_strided_slice %931 {offsets = [0, 96], sizes = [2, 32], strides = [1, 1]} : vector<2x128xf32> to vector<2x32xf32>
    %950 = arith.negf %949 : vector<2x32xf32>
    %951 = math.exp %950 : vector<2x32xf32>
    %cst_192 = arith.constant 1.000000e+00 : f32
    %952 = vector.broadcast %cst_192 : f32 to vector<2x32xf32>
    %953 = arith.addf %952, %951 : vector<2x32xf32>
    %954 = arith.divf %952, %953 : vector<2x32xf32>
    %955 = arith.mulf %946, %897 : vector<2x32xf32>
    %956 = arith.mulf %940, %948 : vector<2x32xf32>
    %957 = arith.addf %955, %956 : vector<2x32xf32>
    %958 = math.tanh %957 : vector<2x32xf32>
    %959 = arith.mulf %954, %958 : vector<2x32xf32>
    %960 = vector.extract_strided_slice %934 {offsets = [0, 0], sizes = [2, 32], strides = [1, 1]} : vector<2x128xf32> to vector<2x32xf32>
    %961 = arith.negf %960 : vector<2x32xf32>
    %962 = math.exp %961 : vector<2x32xf32>
    %cst_193 = arith.constant 1.000000e+00 : f32
    %963 = vector.broadcast %cst_193 : f32 to vector<2x32xf32>
    %964 = arith.addf %963, %962 : vector<2x32xf32>
    %965 = arith.divf %963, %964 : vector<2x32xf32>
    %966 = vector.extract_strided_slice %934 {offsets = [0, 32], sizes = [2, 32], strides = [1, 1]} : vector<2x128xf32> to vector<2x32xf32>
    %967 = arith.negf %966 : vector<2x32xf32>
    %968 = math.exp %967 : vector<2x32xf32>
    %cst_194 = arith.constant 1.000000e+00 : f32
    %969 = vector.broadcast %cst_194 : f32 to vector<2x32xf32>
    %970 = arith.addf %969, %968 : vector<2x32xf32>
    %971 = arith.divf %969, %970 : vector<2x32xf32>
    %972 = vector.extract_strided_slice %934 {offsets = [0, 64], sizes = [2, 32], strides = [1, 1]} : vector<2x128xf32> to vector<2x32xf32>
    %973 = math.tanh %972 : vector<2x32xf32>
    %974 = vector.extract_strided_slice %934 {offsets = [0, 96], sizes = [2, 32], strides = [1, 1]} : vector<2x128xf32> to vector<2x32xf32>
    %975 = arith.negf %974 : vector<2x32xf32>
    %976 = math.exp %975 : vector<2x32xf32>
    %cst_195 = arith.constant 1.000000e+00 : f32
    %977 = vector.broadcast %cst_195 : f32 to vector<2x32xf32>
    %978 = arith.addf %977, %976 : vector<2x32xf32>
    %979 = arith.divf %977, %978 : vector<2x32xf32>
    %980 = arith.mulf %971, %922 : vector<2x32xf32>
    %981 = arith.mulf %965, %973 : vector<2x32xf32>
    %982 = arith.addf %980, %981 : vector<2x32xf32>
    %983 = math.tanh %982 : vector<2x32xf32>
    %984 = arith.mulf %979, %983 : vector<2x32xf32>
    %c14_196 = arith.constant 14 : index
    %c0_197 = arith.constant 0 : index
    %985 = vector.load %arg12[%c14_196, %c0_197] : memref<16x32xf32, #tpu.memory_space<vmem>>, vector<2x32xf32>
    tpu.vector_store %arg12[%c14_196, %c0_197], %959 {strides = array<i32>} : memref<16x32xf32, #tpu.memory_space<vmem>>, vector<2x32xf32>,
    %c0_198 = arith.constant 0 : index
    %c0_199 = arith.constant 0 : index
    %986 = vector.load %arg13[%c0_198, %c0_199] : memref<16x32xf32, #tpu.memory_space<vmem>>, vector<2x32xf32>
    tpu.vector_store %arg13[%c0_198, %c0_199], %984 {strides = array<i32>} : memref<16x32xf32, #tpu.memory_space<vmem>>, vector<2x32xf32>,
    %c0_200 = arith.constant 0 : index
    %c0_201 = arith.constant 0 : index
    %987 = vector.load %arg9[%c0_200, %c0_201] : memref<64x128xf32, #tpu.memory_space<vmem>>, vector<64x128xf32>
    %c0_202 = arith.constant 0 : index
    %c0_203 = arith.constant 0 : index
    %988 = vector.load %arg12[%c0_202, %c0_203] : memref<16x32xf32, #tpu.memory_space<vmem>>, vector<16x32xf32>
    %989 = vector.extract_strided_slice %987 {offsets = [0, 0], sizes = [32, 128], strides = [1, 1]} : vector<64x128xf32> to vector<32x128xf32>
    %cst_204 = arith.constant dense<0.000000e+00> : vector<16x128xf32>
    %990 = tpu.matmul %988, %989, %cst_204 {dimension_numbers = #tpu.dot_dimension_numbers<[1], [0], [0], [1], [0, 0, 1, 1], [], []>} : vector<16x32xf32>, vector<32x128xf32>, vector<16x128xf32> -> vector<16x128xf32>
    %c0_205 = arith.constant 0 : index
    %c0_206 = arith.constant 0 : index
    %991 = vector.load %arg13[%c0_205, %c0_206] : memref<16x32xf32, #tpu.memory_space<vmem>>, vector<16x32xf32>
    %992 = vector.extract_strided_slice %987 {offsets = [32, 0], sizes = [32, 128], strides = [1, 1]} : vector<64x128xf32> to vector<32x128xf32>
    %cst_207 = arith.constant dense<0.000000e+00> : vector<16x128xf32>
    %993 = tpu.matmul %991, %992, %cst_207 {dimension_numbers = #tpu.dot_dimension_numbers<[1], [0], [0], [1], [0, 0, 1, 1], [], []>} : vector<16x32xf32>, vector<32x128xf32>, vector<16x128xf32> -> vector<16x128xf32>
    %994 = arith.addf %990, %993 : vector<16x128xf32>
    %c0_208 = arith.constant 0 : index
    %c0_209 = arith.constant 0 : index
    %995 = vector.load %arg10[%c0_208, %c0_209] : memref<1x128xf32, #tpu.memory_space<vmem>>, vector<1x128xf32>
    %996 = vector.broadcast %995 : vector<1x128xf32> to vector<16x128xf32>
    %997 = arith.addf %994, %996 : vector<16x128xf32>
    %cst_210 = arith.constant dense<0xFF800000> : vector<16xf32>
    %998 = vector.multi_reduction <maximumf>, %997, %cst_210 [1] : vector<16x128xf32> to vector<16xf32>
    %999 = vector.shape_cast %998 : vector<16xf32> to vector<16x1xf32>
    %1000 = vector.broadcast %999 : vector<16x1xf32> to vector<16x128xf32>
    %1001 = arith.subf %997, %1000 : vector<16x128xf32>
    %1002 = math.exp %1001 : vector<16x128xf32>
    %cst_211 = arith.constant dense<0.000000e+00> : vector<16xf32>
    %1003 = vector.multi_reduction <add>, %1002, %cst_211 [1] : vector<16x128xf32> to vector<16xf32>
    %1004 = vector.shape_cast %1003 : vector<16xf32> to vector<16x1xf32>
    %1005 = math.log %1004 : vector<16x1xf32>
    %1006 = vector.broadcast %1005 : vector<16x1xf32> to vector<16x128xf32>
    %1007 = arith.subf %1001, %1006 : vector<16x128xf32>
    %c0_212 = arith.constant 0 : index
    %c0_213 = arith.constant 0 : index
    %1008 = vector.load %arg11[%c0_212, %c0_213] : memref<16x128xf32, #tpu.memory_space<vmem>>, vector<16x128xf32>
    tpu.vector_store %arg11[%c0_212, %c0_213], %1007 {strides = array<i32>} : memref<16x128xf32, #tpu.memory_space<vmem>>, vector<16x128xf32>,
    return
  }
}

</mosaic_0001>

<llo_original>
// kernel: lstm_block_forward.1
$region0: #{lstm_block_forward.1}
  #allocation0 [shape = 'u32[]', space=smem, size = 0x4, offset = 0x4, fixed_abs, tag = 'smem constant byte address 0x4 - core index']
  #allocation1 [shape = 'u32[144,128]{1,0:T(1,128)}', space=vmem, size = 0x12000, scoped, tag = 'internal scratch']
  #allocation2 [shape = 'f32[16,32]{1,0:T(8,128)}', space=vmem, size = 0x2000, scoped, tag = 'scratch operand']
  #allocation3 [shape = 'f32[16,32]{1,0:T(8,128)}', space=vmem, size = 0x2000, scoped, tag = 'scratch operand']
  %s0 = inlined_call_operand.vmem [shape: f32[40,48], index: 0, kind: input, shape index: {}]
  %s1 = inlined_call_operand.vmem [shape: f32[48,32], index: 1, kind: input, shape index: {}]
  %s2 = inlined_call_operand.hbm [shape: f32[16,40], index: 2, kind: input, shape index: {}]
  %s3 = inlined_call_operand.hbm [shape: f32[32,256], index: 3, kind: input, shape index: {}]
  %s4 = inlined_call_operand.vmem [shape: f32[64,256], index: 4, kind: input, shape index: {}]
  %s5 = inlined_call_operand.hbm [shape: f32[1,256], index: 5, kind: input, shape index: {}]
  %s6 = inlined_call_operand.vmem [shape: f32[64,256], index: 6, kind: input, shape index: {}]
  %s7 = inlined_call_operand.hbm [shape: f32[64,256], index: 7, kind: input, shape index: {}]
  %s8 = inlined_call_operand.hbm [shape: f32[1,256], index: 8, kind: input, shape index: {}]
  %s9 = inlined_call_operand.hbm [shape: f32[64,128], index: 9, kind: input, shape index: {}]
  %s10 = inlined_call_operand.vmem [shape: f32[1,128], index: 10, kind: input, shape index: {}]
  %s11 = inlined_call_operand.hbm [shape: f32[16,128], index: 11, kind: output, shape index: {}]
  %s12 = sld [smem:[#allocation0]]
  $region78: #{lstm_block_forward.1} parent=0
    _
  %s14 = ssub.s32 1, %s12
  %s15 = scalar_select 0, %s14, %s12
  $region1: #{lstm_block_forward.1} parent=0
    #allocation4 [shape = 'u8[8192]{0}', space=vmem, size = 0x2000, scoped, tag = 'input window, operand 2, single buffered']
    #allocation5 [shape = 's32[1]{0}', space=sflag, size = 0x4, scoped, tag = 'scoped memory for lstm_block_forward.1']
    #allocation6 [shape = 's32[1]{0}', space=sflag, size = 0x4, scoped, tag = 'scoped memory for lstm_block_forward.1']
    #allocation7 [shape = 'u8[32768]{0}', space=vmem, size = 0x8000, scoped, tag = 'input window, operand 3, single buffered']
    #allocation8 [shape = 's32[1]{0}', space=sflag, size = 0x4, scoped, tag = 'scoped memory for lstm_block_forward.1']
    #allocation9 [shape = 'u8[1024]{0}', space=vmem, size = 0x400, scoped, tag = 'input window, operand 5, single buffered']
    #allocation10 [shape = 'u8[65536]{0}', space=vmem, size = 0x10000, scoped, tag = 'input window, operand 7, single buffered']
    #allocation11 [shape = 's32[1]{0}', space=sflag, size = 0x4, scoped, tag = 'scoped memory for lstm_block_forward.1']
    #allocation12 [shape = 'u8[1024]{0}', space=vmem, size = 0x400, scoped, tag = 'input window, operand 8, single buffered']
    #allocation13 [shape = 'u8[32768]{0}', space=vmem, size = 0x8000, scoped, tag = 'input window, operand 9, single buffered']
    #allocation14 [shape = 's32[1]{0}', space=sflag, size = 0x4, scoped, tag = 'scoped memory for lstm_block_forward.1']
    #allocation15 [shape = 'u8[8192]{0}', space=vmem, size = 0x2000, scoped, tag = 'output window, operand 0, single buffered']
    %16 = vsyncpa [#allocation5], 0
    %17 = vsyncpa [#allocation8], 0
    %18 = vsyncpa [#allocation11], 0
    %19 = vsyncpa [#allocation14], 0
    %20 = vsyncpa [#allocation6], 0
    // Predicated region
    $region2: #{lstm_block_forward.1} parent=1 // pred_check
      _
    $region3: #{lstm_block_forward.1} parent=1 // pred_check_branch
      %22 = sbr.rel (0) target = $region5
    $region4: #{lstm_block_forward.1} parent=1 // pred_region
      _
    $region5: #{lstm_block_forward.1} parent=1 // pred_fallthru
      _
    // Predicated region
    $region6: #{lstm_block_forward.1} parent=1 // pred_check
      _
    $region7: #{lstm_block_forward.1} parent=1 // pred_check_branch
      %24 = sbr.rel (0) target = $region9
    $region8: #{lstm_block_forward.1} parent=1 // pred_region
      _
    $region9: #{lstm_block_forward.1} parent=1 // pred_fallthru
      _
    // Predicated region
    $region10: #{lstm_block_forward.1} parent=1 // pred_check
      _
    $region11: #{lstm_block_forward.1} parent=1 // pred_check_branch
      %26 = sbr.rel (0) target = $region13
    $region12: #{lstm_block_forward.1} parent=1 // pred_region
      %s28 = ssub.s32 256, 256
      %29 = vsyncadd [#allocation5], %s28
      %s30 = sshll.u32 [#allocation4], 4
      %s31 = int_to_ptr.vmem [resolvable:$true] %s30
      %36 = dma.hbm_to_vmem [thread:$0]  %s2, 256, %s31, [#allocation5], 128, 128, 8
    $region13: #{lstm_block_forward.1} parent=1 // pred_fallthru
      _
    // Predicated region
    $region14: #{lstm_block_forward.1} parent=1 // pred_check
      _
    $region15: #{lstm_block_forward.1} parent=1 // pred_check_branch
      %38 = sbr.rel (0) target = $region17
    $region16: #{lstm_block_forward.1} parent=1 // pred_region
      %s40 = ssub.s32 1024, 1024
      %41 = vsyncadd [#allocation8], %s40
      %s42 = sshll.u32 [#allocation7], 4
      %s43 = int_to_ptr.vmem [resolvable:$true] %s42
      %48 = dma.hbm_to_vmem [thread:$0]  %s3, 1024, %s43, [#allocation8], 256, 256, 16
    $region17: #{lstm_block_forward.1} parent=1 // pred_fallthru
      _
    // Predicated region
    $region18: #{lstm_block_forward.1} parent=1 // pred_check
      _
    $region19: #{lstm_block_forward.1} parent=1 // pred_check_branch
      %50 = sbr.rel (0) target = $region21
    $region20: #{lstm_block_forward.1} parent=1 // pred_region
      _
    $region21: #{lstm_block_forward.1} parent=1 // pred_fallthru
      _
    // Predicated region
    $region22: #{lstm_block_forward.1} parent=1 // pred_check
      _
    $region23: #{lstm_block_forward.1} parent=1 // pred_check_branch
      %52 = sbr.rel (0) target = $region25
    $region24: #{lstm_block_forward.1} parent=1 // pred_region
      %s54 = ssub.s32 32, 32
      %55 = vsyncadd [#allocation8], %s54
      %s57 = sshll.u32 [#allocation9], 4
      %s58 = int_to_ptr.vmem [resolvable:$true] %s57
      %60 = dma.hbm_to_vmem [thread:$0]  %s5, 32, %s58, [#allocation8]
    $region25: #{lstm_block_forward.1} parent=1 // pred_fallthru
      _
    // Predicated region
    $region26: #{lstm_block_forward.1} parent=1 // pred_check
      _
    $region27: #{lstm_block_forward.1} parent=1 // pred_check_branch
      %62 = sbr.rel (0) target = $region29
    $region28: #{lstm_block_forward.1} parent=1 // pred_region
      _
    $region29: #{lstm_block_forward.1} parent=1 // pred_fallthru
      _
    // Predicated region
    $region30: #{lstm_block_forward.1} parent=1 // pred_check
      _
    $region31: #{lstm_block_forward.1} parent=1 // pred_check_branch
      %64 = sbr.rel (0) target = $region33
    $region32: #{lstm_block_forward.1} parent=1 // pred_region
      %s66 = ssub.s32 2048, 2048
      %67 = vsyncadd [#allocation11], %s66
      %s68 = sshll.u32 [#allocation10], 4
      %s69 = int_to_ptr.vmem [resolvable:$true] %s68
      %74 = dma.hbm_to_vmem [thread:$0]  %s7, 2048, %s69, [#allocation11], 256, 256, 16
    $region33: #{lstm_block_forward.1} parent=1 // pred_fallthru
      _
    // Predicated region
    $region34: #{lstm_block_forward.1} parent=1 // pred_check
      _
    $region35: #{lstm_block_forward.1} parent=1 // pred_check_branch
      %76 = sbr.rel (0) target = $region37
    $region36: #{lstm_block_forward.1} parent=1 // pred_region
      %s78 = ssub.s32 32, 32
      %79 = vsyncadd [#allocation11], %s78
      %s81 = sshll.u32 [#allocation12], 4
      %s82 = int_to_ptr.vmem [resolvable:$true] %s81
      %84 = dma.hbm_to_vmem [thread:$0]  %s8, 32, %s82, [#allocation11]
    $region37: #{lstm_block_forward.1} parent=1 // pred_fallthru
      _
    // Predicated region
    $region38: #{lstm_block_forward.1} parent=1 // pred_check
      _
    $region39: #{lstm_block_forward.1} parent=1 // pred_check_branch
      %86 = sbr.rel (0) target = $region41
    $region40: #{lstm_block_forward.1} parent=1 // pred_region
      %s88 = ssub.s32 1024, 1024
      %89 = vsyncadd [#allocation14], %s88
      %s90 = sshll.u32 [#allocation13], 4
      %s91 = int_to_ptr.vmem [resolvable:$true] %s90
      %96 = dma.hbm_to_vmem [thread:$0]  %s9, 1024, %s91, [#allocation14], 128, 128, 8
    $region41: #{lstm_block_forward.1} parent=1 // pred_fallthru
      _
    // Predicated region
    $region42: #{lstm_block_forward.1} parent=1 // pred_check
      _
    $region43: #{lstm_block_forward.1} parent=1 // pred_check_branch
      %98 = sbr.rel (0) target = $region45
    $region44: #{lstm_block_forward.1} parent=1 // pred_region
      _
    $region45: #{lstm_block_forward.1} parent=1 // pred_fallthru
      _
    // Predicated region
    $region46: #{lstm_block_forward.1} parent=1 // pred_check
      _
    $region47: #{lstm_block_forward.1} parent=1 // pred_check_branch
      %100 = sbr.rel (0) target = $region49
    $region48: #{lstm_block_forward.1} parent=1 // pred_region
      %101 = dma.done [#allocation5], 256
    $region49: #{lstm_block_forward.1} parent=1 // pred_fallthru
      _
    // Predicated region
    $region50: #{lstm_block_forward.1} parent=1 // pred_check
      _
    $region51: #{lstm_block_forward.1} parent=1 // pred_check_branch
      %103 = sbr.rel (0) target = $region53
    $region52: #{lstm_block_forward.1} parent=1 // pred_region
      %104 = dma.done [#allocation8], 1024
    $region53: #{lstm_block_forward.1} parent=1 // pred_fallthru
      _
    // Predicated region
    $region54: #{lstm_block_forward.1} parent=1 // pred_check
      _
    $region55: #{lstm_block_forward.1} parent=1 // pred_check_branch
      %106 = sbr.rel (0) target = $region57
    $region56: #{lstm_block_forward.1} parent=1 // pred_region
      %107 = dma.done [#allocation8], 32
    $region57: #{lstm_block_forward.1} parent=1 // pred_fallthru
      _
    // Predicated region
    $region58: #{lstm_block_forward.1} parent=1 // pred_check
      _
    $region59: #{lstm_block_forward.1} parent=1 // pred_check_branch
      %109 = sbr.rel (0) target = $region61
    $region60: #{lstm_block_forward.1} parent=1 // pred_region
      %110 = dma.done [#allocation11], 2048
    $region61: #{lstm_block_forward.1} parent=1 // pred_fallthru
      _
    // Predicated region
    $region62: #{lstm_block_forward.1} parent=1 // pred_check
      _
    $region63: #{lstm_block_forward.1} parent=1 // pred_check_branch
      %112 = sbr.rel (0) target = $region65
    $region64: #{lstm_block_forward.1} parent=1 // pred_region
      %113 = dma.done [#allocation11], 32
    $region65: #{lstm_block_forward.1} parent=1 // pred_fallthru
      _
    // Predicated region
    $region66: #{lstm_block_forward.1} parent=1 // pred_check
      _
    $region67: #{lstm_block_forward.1} parent=1 // pred_check_branch
      %115 = sbr.rel (0) target = $region69
    $region68: #{lstm_block_forward.1} parent=1 // pred_region
      %116 = dma.done [#allocation14], 1024
    $region69: #{lstm_block_forward.1} parent=1 // pred_fallthru
      _
    %v117 = vld [vmem:[%s0] sm:$0xff]
    %v118 = vld [vmem:[%s0 + $0x8] sm:$0xff]
    %v119 = vld [vmem:[%s0 + $0x10] sm:$0xff]
    %v120 = vld [vmem:[%s0 + $0x18] sm:$0xff]
    %v121 = vld [vmem:[%s0 + $0x20] sm:$0xff]
    %v122 = vld [vmem:[%s1] sm:$0xff]
    %v123 = vld [vmem:[%s1 + $0x8] sm:$0xff]
    %v124 = vld [vmem:[%s1 + $0x10] sm:$0xff]
    %v125 = vld [vmem:[%s1 + $0x18] sm:$0xff]
    %v126 = vld [vmem:[%s1 + $0x20] sm:$0xff]
    %v127 = vld [vmem:[%s1 + $0x28] sm:$0xff]
    %vm128 = vcmask 392192
    %v130 = vsel %vm128, %v117, 0
    %v133 = vsel %vm128, %v118, 0
    %v136 = vsel %vm128, %v119, 0
    %v139 = vsel %vm128, %v120, 0
    %v142 = vsel %vm128, %v121, 0
    %144 = vmatprep.subr.mxu0 0.0
    %145 = vmatpush1.msra.mxu0 %v122
    %146 = vmatprep.subr.mxu0 0.0
    %147 = vmatpush1.msra.mxu0 %v123
    %148 = vmatprep.subr.mxu0 0.0
    %149 = vmatpush1.msra.mxu0 %v124
    %150 = vmatprep.subr.mxu0 0.0
    %151 = vmatpush1.msra.mxu0 %v125
    %152 = vmatprep.subr.mxu0 0.0
    %153 = vmatpush1.msra.mxu0 %v126
    %154 = vmatprep.subr.mxu0 0.0
    %155 = vmatpush1.msra.mxu0 %v127
    %156 = vmatprep.subr.mxu0 0.0
    %157 = vmatpush1.msra.mxu0 0.0
    %158 = vmatprep.subr.mxu0 0.0
    %159 = vmatpush1.msra.mxu0 0.0
    %160 = vmatprep.subr.mxu0 0.0
    %161 = vmatpush1.msra.mxu0 0.0
    %162 = vmatprep.subr.mxu0 0.0
    %163 = vmatpush1.msra.mxu0 0.0
    %164 = vmatprep.subr.mxu0 0.0
    %165 = vmatpush1.msra.mxu0 0.0
    %166 = vmatprep.subr.mxu0 0.0
    %167 = vmatpush1.msra.mxu0 0.0
    %168 = vmatprep.subr.mxu0 0.0
    %169 = vmatpush1.msra.mxu0 0.0
    %170 = vmatprep.subr.mxu0 0.0
    %171 = vmatpush1.msra.mxu0 0.0
    %172 = vmatprep.subr.mxu0 0.0
    %173 = vmatpush1.msra.mxu0 0.0
    %174 = vmatprep.subr.mxu0 0.0
    %175 = vmatpush1.msra.mxu0 0.0
    %176 = vmatprep.subr.mxu0 0.0
    %177 = vmatpush1.msra.mxu0 0.0
    %178 = vmatprep.subr.mxu0 0.0
    %179 = vmatpush1.msra.mxu0 0.0
    %180 = vmatprep.subr.mxu0 0.0
    %181 = vmatpush1.msra.mxu0 0.0
    %182 = vmatprep.subr.mxu0 0.0
    %183 = vmatpush1.msra.mxu0 0.0
    %184 = vmatprep.subr.mxu0 0.0
    %185 = vmatpush1.msra.mxu0 0.0
    %186 = vmatprep.subr.mxu0 0.0
    %187 = vmatpush1.msra.mxu0 0.0
    %188 = vmatprep.subr.mxu0 0.0
    %189 = vmatpush1.msra.mxu0 0.0
    %190 = vmatprep.subr.mxu0 0.0
    %191 = vmatpush1.msra.mxu0 0.0
    %192 = vmatprep.subr.mxu0 0.0
    %193 = vmatpush1.msra.mxu0 0.0
    %194 = vmatprep.subr.mxu0 0.0
    %195 = vmatpush1.msra.mxu0 0.0
    %196 = vmatprep.subr.mxu0 0.0
    %197 = vmatpush1.msra.mxu0 0.0
    %198 = vmatprep.subr.mxu0 0.0
    %199 = vmatpush1.msra.mxu0 0.0
    %200 = vmatprep.subr.mxu0 0.0
    %201 = vmatpush1.msra.mxu0 0.0
    %202 = vmatprep.subr.mxu0 0.0
    %203 = vmatpush1.msra.mxu0 0.0
    %204 = vmatprep.subr.mxu0 0.0
    %205 = vmatpush1.msra.mxu0 0.0
    %206 = vmatprep.subr.mxu0 0.0
    %207 = vmatpush1.msra.mxu0 0.0
    %208 = vmatprep.mubr.f32.mxu0 0.0
    %209 = vmatmul.mubr.f32.gmra.mrb[0].mxu0 %v130
    %v210 = vpop.f32.mrb[0].mxu0
    %v211 = vadd.f32 0.0, %v210
    %v212 = vpop.f32.mrb[0].mxu0
    %213 = vmatprep.mubr.f32.mxu0 0.0
    %214 = vmatmul.mubr.f32.gmra.mrb[0].mxu0 %v133
    %v215 = vpop.f32.mrb[0].mxu0
    %v216 = vadd.f32 0.0, %v215
    %v217 = vpop.f32.mrb[0].mxu0
    %218 = vmatprep.mubr.f32.mxu0 0.0
    %219 = vmatmul.mubr.f32.gmra.mrb[0].mxu0 %v136
    %v220 = vpop.f32.mrb[0].mxu0
    %v221 = vadd.f32 0.0, %v220
    %v222 = vpop.f32.mrb[0].mxu0
    %223 = vmatprep.mubr.f32.mxu0 0.0
    %224 = vmatmul.mubr.f32.gmra.mrb[0].mxu0 %v139
    %v225 = vpop.f32.mrb[0].mxu0
    %v226 = vadd.f32 0.0, %v225
    %v227 = vpop.f32.mrb[0].mxu0
    %228 = vmatprep.mubr.f32.mxu0 0.0
    %229 = vmatmul.mubr.f32.gmra.mrb[0].mxu0 %v142
    %v230 = vpop.f32.mrb[0].mxu0
    %v231 = vadd.f32 0.0, %v230
    %v232 = vpop.f32.mrb[0].mxu0
    %233 = vdwg.mxu0
    %v234 = vld [vmem:[#allocation4] sm:$0xff]
    %v235 = vld [vmem:[#allocation4 + $0x8] sm:$0xff]
    %vm236 = vcmask 326656
    %v238 = vsel %vm236, %v234, 0
    %v241 = vsel %vm236, %v235, 0
    %243 = vmatprep.subr.mxu0 0.0
    %244 = vmatpush1.msra.mxu0 %v211
    %245 = vmatprep.subr.mxu0 0.0
    %246 = vmatpush1.msra.mxu0 %v216
    %247 = vmatprep.subr.mxu0 0.0
    %248 = vmatpush1.msra.mxu0 %v221
    %249 = vmatprep.subr.mxu0 0.0
    %250 = vmatpush1.msra.mxu0 %v226
    %251 = vmatprep.subr.mxu0 0.0
    %252 = vmatpush1.msra.mxu0 %v231
    %253 = vmatprep.subr.mxu0 0.0
    %254 = vmatpush1.msra.mxu0 0.0
    %255 = vmatprep.subr.mxu0 0.0
    %256 = vmatpush1.msra.mxu0 0.0
    %257 = vmatprep.subr.mxu0 0.0
    %258 = vmatpush1.msra.mxu0 0.0
    %259 = vmatprep.subr.mxu0 0.0
    %260 = vmatpush1.msra.mxu0 0.0
    %261 = vmatprep.subr.mxu0 0.0
    %262 = vmatpush1.msra.mxu0 0.0
    %263 = vmatprep.subr.mxu0 0.0
    %264 = vmatpush1.msra.mxu0 0.0
    %265 = vmatprep.subr.mxu0 0.0
    %266 = vmatpush1.msra.mxu0 0.0
    %267 = vmatprep.subr.mxu0 0.0
    %268 = vmatpush1.msra.mxu0 0.0
    %269 = vmatprep.subr.mxu0 0.0
    %270 = vmatpush1.msra.mxu0 0.0
    %271 = vmatprep.subr.mxu0 0.0
    %272 = vmatpush1.msra.mxu0 0.0
    %273 = vmatprep.subr.mxu0 0.0
    %274 = vmatpush1.msra.mxu0 0.0
    %275 = vmatprep.subr.mxu0 0.0
    %276 = vmatpush1.msra.mxu0 0.0
    %277 = vmatprep.subr.mxu0 0.0
    %278 = vmatpush1.msra.mxu0 0.0
    %279 = vmatprep.subr.mxu0 0.0
    %280 = vmatpush1.msra.mxu0 0.0
    %281 = vmatprep.subr.mxu0 0.0
    %282 = vmatpush1.msra.mxu0 0.0
    %283 = vmatprep.subr.mxu0 0.0
    %284 = vmatpush1.msra.mxu0 0.0
    %285 = vmatprep.subr.mxu0 0.0
    %286 = vmatpush1.msra.mxu0 0.0
    %287 = vmatprep.subr.mxu0 0.0
    %288 = vmatpush1.msra.mxu0 0.0
    %289 = vmatprep.subr.mxu0 0.0
    %290 = vmatpush1.msra.mxu0 0.0
    %291 = vmatprep.subr.mxu0 0.0
    %292 = vmatpush1.msra.mxu0 0.0
    %293 = vmatprep.subr.mxu0 0.0
    %294 = vmatpush1.msra.mxu0 0.0
    %295 = vmatprep.subr.mxu0 0.0
    %296 = vmatpush1.msra.mxu0 0.0
    %297 = vmatprep.subr.mxu0 0.0
    %298 = vmatpush1.msra.mxu0 0.0
    %299 = vmatprep.subr.mxu0 0.0
    %300 = vmatpush1.msra.mxu0 0.0
    %301 = vmatprep.subr.mxu0 0.0
    %302 = vmatpush1.msra.mxu0 0.0
    %303 = vmatprep.subr.mxu0 0.0
    %304 = vmatpush1.msra.mxu0 0.0
    %305 = vmatprep.subr.mxu0 0.0
    %306 = vmatpush1.msra.mxu0 0.0
    %307 = vmatprep.mubr.f32.mxu0 0.0
    %308 = vmatmul.mubr.f32.gmra.mrb[0].mxu0 %v238
    %v309 = vpop.f32.mrb[0].mxu0
    %v310 = vadd.f32 0.0, %v309
    %v311 = vpop.f32.mrb[0].mxu0
    %312 = vmatprep.mubr.f32.mxu0 0.0
    %313 = vmatmul.mubr.f32.gmra.mrb[0].mxu0 %v241
    %v314 = vpop.f32.mrb[0].mxu0
    %v315 = vadd.f32 0.0, %v314
    %v316 = vpop.f32.mrb[0].mxu0
    %317 = vdwg.mxu0
    %v318 = vld [vmem:[#allocation7] sm:$0xff]
    %v319 = vld [vmem:[#allocation7 + $0x8] sm:$0xff]
    %v320 = vld [vmem:[#allocation7 + $0x10] sm:$0xff]
    %v321 = vld [vmem:[#allocation7 + $0x18] sm:$0xff]
    %v322 = vld [vmem:[#allocation7 + $0x20] sm:$0xff]
    %v323 = vld [vmem:[#allocation7 + $0x28] sm:$0xff]
    %v324 = vld [vmem:[#allocation7 + $0x30] sm:$0xff]
    %v325 = vld [vmem:[#allocation7 + $0x38] sm:$0xff]
    %v326 = vld [vmem:[#allocation9] sm:$0x3]
    %v328 = vlaneseq
    %v329 = vshrl.u32 %v328, 7
    %v330 = vsub.s32 0, %v329
    %v331 = vrot.slane %v326, %v330
    %v332 = vlaneseq
    %v333 = vshrl.u32 %v332, 7
    %v334 = vsub.s32 1, %v333
    %v335 = vrot.slane %v326, %v334
    %vm338 = vcmask 261120
    %v340 = vsel %vm338, %v310, 0
    %v343 = vsel %vm338, %v315, 0
    %345 = vmatprep.subr.mxu0 %v319
    %346 = vmatpush1.msra.mxu0 %v318
    %347 = vmatprep.subr.mxu0 %v321
    %348 = vmatpush1.msra.mxu0 %v320
    %349 = vmatprep.subr.mxu0 %v323
    %350 = vmatpush1.msra.mxu0 %v322
    %351 = vmatprep.subr.mxu0 %v325
    %352 = vmatpush1.msra.mxu0 %v324
    %353 = vmatprep.subr.mxu0 0.0
    %354 = vmatpush1.msra.mxu0 0.0
    %355 = vmatprep.subr.mxu0 0.0
    %356 = vmatpush1.msra.mxu0 0.0
    %357 = vmatprep.subr.mxu0 0.0
    %358 = vmatpush1.msra.mxu0 0.0
    %359 = vmatprep.subr.mxu0 0.0
    %360 = vmatpush1.msra.mxu0 0.0
    %361 = vmatprep.subr.mxu0 0.0
    %362 = vmatpush1.msra.mxu0 0.0
    %363 = vmatprep.subr.mxu0 0.0
    %364 = vmatpush1.msra.mxu0 0.0
    %365 = vmatprep.subr.mxu0 0.0
    %366 = vmatpush1.msra.mxu0 0.0
    %367 = vmatprep.subr.mxu0 0.0
    %368 = vmatpush1.msra.mxu0 0.0
    %369 = vmatprep.subr.mxu0 0.0
    %370 = vmatpush1.msra.mxu0 0.0
    %371 = vmatprep.subr.mxu0 0.0
    %372 = vmatpush1.msra.mxu0 0.0
    %373 = vmatprep.subr.mxu0 0.0
    %374 = vmatpush1.msra.mxu0 0.0
    %375 = vmatprep.subr.mxu0 0.0
    %376 = vmatpush1.msra.mxu0 0.0
    %377 = vmatprep.subr.mxu0 0.0
    %378 = vmatpush1.msra.mxu0 0.0
    %379 = vmatprep.subr.mxu0 0.0
    %380 = vmatpush1.msra.mxu0 0.0
    %381 = vmatprep.subr.mxu0 0.0
    %382 = vmatpush1.msra.mxu0 0.0
    %383 = vmatprep.subr.mxu0 0.0
    %384 = vmatpush1.msra.mxu0 0.0
    %385 = vmatprep.subr.mxu0 0.0
    %386 = vmatpush1.msra.mxu0 0.0
    %387 = vmatprep.subr.mxu0 0.0
    %388 = vmatpush1.msra.mxu0 0.0
    %389 = vmatprep.subr.mxu0 0.0
    %390 = vmatpush1.msra.mxu0 0.0
    %391 = vmatprep.subr.mxu0 0.0
    %392 = vmatpush1.msra.mxu0 0.0
    %393 = vmatprep.subr.mxu0 0.0
    %394 = vmatpush1.msra.mxu0 0.0
    %395 = vmatprep.subr.mxu0 0.0
    %396 = vmatpush1.msra.mxu0 0.0
    %397 = vmatprep.subr.mxu0 0.0
    %398 = vmatpush1.msra.mxu0 0.0
    %399 = vmatprep.subr.mxu0 0.0
    %400 = vmatpush1.msra.mxu0 0.0
    %401 = vmatprep.subr.mxu0 0.0
    %402 = vmatpush1.msra.mxu0 0.0
    %403 = vmatprep.subr.mxu0 0.0
    %404 = vmatpush1.msra.mxu0 0.0
    %405 = vmatprep.subr.mxu0 0.0
    %406 = vmatpush1.msra.mxu0 0.0
    %407 = vmatprep.subr.mxu0 0.0
    %408 = vmatpush1.msra.mxu0 0.0
    %409 = vmatprep.mubr.f32.mxu0 0.0
    %410 = vmatmul.mubr.f32.gmra.mrb[0].mxu0 %v340
    %v411 = vpop.f32.mrb[0].mxu0
    %v412 = vadd.f32 %v331, %v411
    %v413 = vpop.f32.mrb[0].mxu0
    %v414 = vadd.f32 %v335, %v413
    %415 = vmatprep.mubr.f32.mxu0 0.0
    %416 = vmatmul.mubr.f32.gmra.mrb[0].mxu0 %v343
    %v417 = vpop.f32.mrb[0].mxu0
    %v418 = vadd.f32 %v331, %v417
    %v419 = vpop.f32.mrb[0].mxu0
    %v420 = vadd.f32 %v335, %v419
    %421 = vdwg.mxu0
    %v422 = vld [vmem:[%s4] sm:$0xff]
    %v423 = vld [vmem:[%s4 + $0x8] sm:$0xff]
    %v424 = vld [vmem:[%s4 + $0x10] sm:$0xff]
    %v425 = vld [vmem:[%s4 + $0x18] sm:$0xff]
    %v426 = vld [vmem:[%s4 + $0x20] sm:$0xff]
    %v427 = vld [vmem:[%s4 + $0x28] sm:$0xff]
    %v428 = vld [vmem:[%s4 + $0x30] sm:$0xff]
    %v429 = vld [vmem:[%s4 + $0x38] sm:$0xff]
    %v430 = vld [vmem:[%s4 + $0x40] sm:$0xff]
    %v431 = vld [vmem:[%s4 + $0x48] sm:$0xff]
    %v432 = vld [vmem:[%s4 + $0x50] sm:$0xff]
    %v433 = vld [vmem:[%s4 + $0x58] sm:$0xff]
    %v434 = vld [vmem:[%s4 + $0x60] sm:$0xff]
    %v435 = vld [vmem:[%s4 + $0x68] sm:$0xff]
    %v436 = vld [vmem:[%s4 + $0x70] sm:$0xff]
    %v437 = vld [vmem:[%s4 + $0x78] sm:$0xff]
    %vm438 = vcmask 523264
    %v440 = vsel %vm438, 0.0, 0
    %442 = vmatprep.subr.mxu0 %v423
    %443 = vmatpush1.msra.mxu0 %v422
    %444 = vmatprep.subr.mxu0 %v425
    %445 = vmatpush1.msra.mxu0 %v424
    %446 = vmatprep.subr.mxu0 %v427
    %447 = vmatpush1.msra.mxu0 %v426
    %448 = vmatprep.subr.mxu0 %v429
    %449 = vmatpush1.msra.mxu0 %v428
    %450 = vmatprep.subr.mxu0 %v431
    %451 = vmatpush1.msra.mxu0 %v430
    %452 = vmatprep.subr.mxu0 %v433
    %453 = vmatpush1.msra.mxu0 %v432
    %454 = vmatprep.subr.mxu0 %v435
    %455 = vmatpush1.msra.mxu0 %v434
    %456 = vmatprep.subr.mxu0 %v437
    %457 = vmatpush1.msra.mxu0 %v436
    %458 = vmatprep.subr.mxu0 0.0
    %459 = vmatpush1.msra.mxu0 0.0
    %460 = vmatprep.subr.mxu0 0.0
    %461 = vmatpush1.msra.mxu0 0.0
    %462 = vmatprep.subr.mxu0 0.0
    %463 = vmatpush1.msra.mxu0 0.0
    %464 = vmatprep.subr.mxu0 0.0
    %465 = vmatpush1.msra.mxu0 0.0
    %466 = vmatprep.subr.mxu0 0.0
    %467 = vmatpush1.msra.mxu0 0.0
    %468 = vmatprep.subr.mxu0 0.0
    %469 = vmatpush1.msra.mxu0 0.0
    %470 = vmatprep.subr.mxu0 0.0
    %471 = vmatpush1.msra.mxu0 0.0
    %472 = vmatprep.subr.mxu0 0.0
    %473 = vmatpush1.msra.mxu0 0.0
    %474 = vmatprep.subr.mxu0 0.0
    %475 = vmatpush1.msra.mxu0 0.0
    %476 = vmatprep.subr.mxu0 0.0
    %477 = vmatpush1.msra.mxu0 0.0
    %478 = vmatprep.subr.mxu0 0.0
    %479 = vmatpush1.msra.mxu0 0.0
    %480 = vmatprep.subr.mxu0 0.0
    %481 = vmatpush1.msra.mxu0 0.0
    %482 = vmatprep.subr.mxu0 0.0
    %483 = vmatpush1.msra.mxu0 0.0
    %484 = vmatprep.subr.mxu0 0.0
    %485 = vmatpush1.msra.mxu0 0.0
    %486 = vmatprep.subr.mxu0 0.0
    %487 = vmatpush1.msra.mxu0 0.0
    %488 = vmatprep.subr.mxu0 0.0
    %489 = vmatpush1.msra.mxu0 0.0
    %490 = vmatprep.subr.mxu0 0.0
    %491 = vmatpush1.msra.mxu0 0.0
    %492 = vmatprep.subr.mxu0 0.0
    %493 = vmatpush1.msra.mxu0 0.0
    %494 = vmatprep.subr.mxu0 0.0
    %495 = vmatpush1.msra.mxu0 0.0
    %496 = vmatprep.subr.mxu0 0.0
    %497 = vmatpush1.msra.mxu0 0.0
    %498 = vmatprep.subr.mxu0 0.0
    %499 = vmatpush1.msra.mxu0 0.0
    %500 = vmatprep.subr.mxu0 0.0
    %501 = vmatpush1.msra.mxu0 0.0
    %502 = vmatprep.subr.mxu0 0.0
    %503 = vmatpush1.msra.mxu0 0.0
    %504 = vmatprep.subr.mxu0 0.0
    %505 = vmatpush1.msra.mxu0 0.0
    %506 = vmatprep.mubr.f32.mxu0 0.0
    %507 = vmatmul.mubr.f32.gmra.mrb[0].mxu0 %v440
    %v508 = vpop.f32.mrb[0].mxu0
    %v509 = vadd.f32 0.0, %v508
    %v510 = vpop.f32.mrb[0].mxu0
    %v511 = vadd.f32 0.0, %v510
    %512 = vdwg.mxu0
    %v513 = vadd.f32 %v509, %v412
    %v515 = vrot.slane %v420, 6
    %v517 = vadd.f32 %v511, %v515
    %v518 = vxor.u32 %v513, 2147483648
    %v519 = vmul.f32 %v518, 1.442695
    %v520 = vpow.pop %v519
    %v521 = vadd.f32 %v520, 1.0
    %v522 = vrcp.pop %v521
    %v523 = vmul.f32 1.0, %v522
    %v524 = vtanh.pop %v513
    %v525 = vmul.f32 %v523, 0.0
    %527 = vrot.lane.b32.xlu0 %v524, 64
    %v528 = vpop.permute.xlu0 %527
    %v530 = vmul.f32 %v523, %v528
    %532 = vrot.lane.b32.xlu0 %v530, 32
    %v533 = vpop.permute.xlu0 %532
    %v535 = vadd.f32 %v525, %v533
    %v536 = vtanh.pop %v535
    %538 = vrot.lane.b32.xlu0 %v536, 64
    %v539 = vpop.permute.xlu0 %538
    %v541 = vmul.f32 %v523, %v539
    %v542 = vxor.u32 %v517, 2147483648
    %v543 = vmul.f32 %v542, 1.442695
    %v544 = vpow.pop %v543
    %v545 = vadd.f32 %v544, 1.0
    %v546 = vrcp.pop %v545
    %v547 = vmul.f32 1.0, %v546
    %v548 = vtanh.pop %v517
    %v549 = vmul.f32 %v547, 0.0
    %551 = vrot.lane.b32.xlu0 %v548, 64
    %v552 = vpop.permute.xlu0 %551
    %v554 = vmul.f32 %v547, %v552
    %556 = vrot.lane.b32.xlu0 %v554, 32
    %v557 = vpop.permute.xlu0 %556
    %v559 = vadd.f32 %v549, %v557
    %v560 = vtanh.pop %v559
    %562 = vrot.lane.b32.xlu0 %v560, 64
    %v563 = vpop.permute.xlu0 %562
    %v565 = vmul.f32 %v547, %v563
    %567 = vrot.lane.b32.xlu0 %v541, 32
    %v568 = vpop.permute.xlu0 %567
    %vm570 = vcmask 254976
    %571 = vst.msk [vmem:[#allocation2] sm:$0x3] %vm570, %v568
    %573 = vrot.lane.b32.xlu0 %v565, 32
    %v574 = vpop.permute.xlu0 %573
    %576 = vst.msk [vmem:[#allocation3 + $0xe] sm:$0x3] %vm570, %v574
    %577 = vrot.lane.b32.xlu0 %v565, 64
    %v578 = vpop.permute.xlu0 %577
    %v580 = vsel %vm338, %v568, %v578
    %v582 = vsel %vm438, %v580, 0
    %584 = vmatprep.subr.mxu0 %v423
    %585 = vmatpush1.msra.mxu0 %v422
    %586 = vmatprep.subr.mxu0 %v425
    %587 = vmatpush1.msra.mxu0 %v424
    %588 = vmatprep.subr.mxu0 %v427
    %589 = vmatpush1.msra.mxu0 %v426
    %590 = vmatprep.subr.mxu0 %v429
    %591 = vmatpush1.msra.mxu0 %v428
    %592 = vmatprep.subr.mxu0 %v431
    %593 = vmatpush1.msra.mxu0 %v430
    %594 = vmatprep.subr.mxu0 %v433
    %595 = vmatpush1.msra.mxu0 %v432
    %596 = vmatprep.subr.mxu0 %v435
    %597 = vmatpush1.msra.mxu0 %v434
    %598 = vmatprep.subr.mxu0 %v437
    %599 = vmatpush1.msra.mxu0 %v436
    %600 = vmatprep.subr.mxu0 0.0
    %601 = vmatpush1.msra.mxu0 0.0
    %602 = vmatprep.subr.mxu0 0.0
    %603 = vmatpush1.msra.mxu0 0.0
    %604 = vmatprep.subr.mxu0 0.0
    %605 = vmatpush1.msra.mxu0 0.0
    %606 = vmatprep.subr.mxu0 0.0
    %607 = vmatpush1.msra.mxu0 0.0
    %608 = vmatprep.subr.mxu0 0.0
    %609 = vmatpush1.msra.mxu0 0.0
    %610 = vmatprep.subr.mxu0 0.0
    %611 = vmatpush1.msra.mxu0 0.0
    %612 = vmatprep.subr.mxu0 0.0
    %613 = vmatpush1.msra.mxu0 0.0
    %614 = vmatprep.subr.mxu0 0.0
    %615 = vmatpush1.msra.mxu0 0.0
    %616 = vmatprep.subr.mxu0 0.0
    %617 = vmatpush1.msra.mxu0 0.0
    %618 = vmatprep.subr.mxu0 0.0
    %619 = vmatpush1.msra.mxu0 0.0
    %620 = vmatprep.subr.mxu0 0.0
    %621 = vmatpush1.msra.mxu0 0.0
    %622 = vmatprep.subr.mxu0 0.0
    %623 = vmatpush1.msra.mxu0 0.0
    %624 = vmatprep.subr.mxu0 0.0
    %625 = vmatpush1.msra.mxu0 0.0
    %626 = vmatprep.subr.mxu0 0.0
    %627 = vmatpush1.msra.mxu0 0.0
    %628 = vmatprep.subr.mxu0 0.0
    %629 = vmatpush1.msra.mxu0 0.0
    %630 = vmatprep.subr.mxu0 0.0
    %631 = vmatpush1.msra.mxu0 0.0
    %632 = vmatprep.subr.mxu0 0.0
    %633 = vmatpush1.msra.mxu0 0.0
    %634 = vmatprep.subr.mxu0 0.0
    %635 = vmatpush1.msra.mxu0 0.0
    %636 = vmatprep.subr.mxu0 0.0
    %637 = vmatpush1.msra.mxu0 0.0
    %638 = vmatprep.subr.mxu0 0.0
    %639 = vmatpush1.msra.mxu0 0.0
    %640 = vmatprep.subr.mxu0 0.0
    %641 = vmatpush1.msra.mxu0 0.0
    %642 = vmatprep.subr.mxu0 0.0
    %643 = vmatpush1.msra.mxu0 0.0
    %644 = vmatprep.subr.mxu0 0.0
    %645 = vmatpush1.msra.mxu0 0.0
    %646 = vmatprep.subr.mxu0 0.0
    %647 = vmatpush1.msra.mxu0 0.0
    %648 = vmatprep.mubr.f32.mxu0 0.0
    %649 = vmatmul.mubr.f32.gmra.mrb[0].mxu0 %v582
    %v650 = vpop.f32.mrb[0].mxu0
    %v651 = vadd.f32 0.0, %v650
    %v652 = vpop.f32.mrb[0].mxu0
    %v653 = vadd.f32 0.0, %v652
    %654 = vdwg.mxu0
    %v656 = vrot.slane %v412, 2
    %v658 = vadd.f32 %v651, %v656
    %v659 = vrot.slane %v420, 4
    %v661 = vadd.f32 %v653, %v659
    %v662 = vxor.u32 %v658, 2147483648
    %v663 = vmul.f32 %v662, 1.442695
    %v664 = vpow.pop %v663
    %v665 = vadd.f32 %v664, 1.0
    %v666 = vrcp.pop %v665
    %v667 = vmul.f32 1.0, %v666
    %v668 = vtanh.pop %v658
    %v669 = vmul.f32 %v667, %v535
    %671 = vrot.lane.b32.xlu0 %v668, 64
    %v672 = vpop.permute.xlu0 %671
    %v674 = vmul.f32 %v667, %v672
    %676 = vrot.lane.b32.xlu0 %v674, 32
    %v677 = vpop.permute.xlu0 %676
    %v679 = vadd.f32 %v669, %v677
    %v680 = vtanh.pop %v679
    %682 = vrot.lane.b32.xlu0 %v680, 64
    %v683 = vpop.permute.xlu0 %682
    %v685 = vmul.f32 %v667, %v683
    %v686 = vxor.u32 %v661, 2147483648
    %v687 = vmul.f32 %v686, 1.442695
    %v688 = vpow.pop %v687
    %v689 = vadd.f32 %v688, 1.0
    %v690 = vrcp.pop %v689
    %v691 = vmul.f32 1.0, %v690
    %v692 = vtanh.pop %v661
    %v693 = vmul.f32 %v691, %v559
    %695 = vrot.lane.b32.xlu0 %v692, 64
    %v696 = vpop.permute.xlu0 %695
    %v698 = vmul.f32 %v691, %v696
    %700 = vrot.lane.b32.xlu0 %v698, 32
    %v701 = vpop.permute.xlu0 %700
    %v703 = vadd.f32 %v693, %v701
    %v704 = vtanh.pop %v703
    %706 = vrot.lane.b32.xlu0 %v704, 64
    %v707 = vpop.permute.xlu0 %706
    %v709 = vmul.f32 %v691, %v707
    %711 = vrot.lane.b32.xlu0 %v685, 32
    %v712 = vpop.permute.xlu0 %711
    %714 = vst.msk [vmem:[#allocation2 + $0x2] sm:$0x3] %vm570, %v712
    %716 = vrot.lane.b32.xlu0 %v709, 32
    %v717 = vpop.permute.xlu0 %716
    %719 = vst.msk [vmem:[#allocation3 + $0xc] sm:$0x3] %vm570, %v717
    %720 = vrot.lane.b32.xlu0 %v709, 64
    %v721 = vpop.permute.xlu0 %720
    %v723 = vsel %vm338, %v712, %v721
    %v725 = vsel %vm438, %v723, 0
    %727 = vmatprep.subr.mxu0 %v423
    %728 = vmatpush1.msra.mxu0 %v422
    %729 = vmatprep.subr.mxu0 %v425
    %730 = vmatpush1.msra.mxu0 %v424
    %731 = vmatprep.subr.mxu0 %v427
    %732 = vmatpush1.msra.mxu0 %v426
    %733 = vmatprep.subr.mxu0 %v429
    %734 = vmatpush1.msra.mxu0 %v428
    %735 = vmatprep.subr.mxu0 %v431
    %736 = vmatpush1.msra.mxu0 %v430
    %737 = vmatprep.subr.mxu0 %v433
    %738 = vmatpush1.msra.mxu0 %v432
    %739 = vmatprep.subr.mxu0 %v435
    %740 = vmatpush1.msra.mxu0 %v434
    %741 = vmatprep.subr.mxu0 %v437
    %742 = vmatpush1.msra.mxu0 %v436
    %743 = vmatprep.subr.mxu0 0.0
    %744 = vmatpush1.msra.mxu0 0.0
    %745 = vmatprep.subr.mxu0 0.0
    %746 = vmatpush1.msra.mxu0 0.0
    %747 = vmatprep.subr.mxu0 0.0
    %748 = vmatpush1.msra.mxu0 0.0
    %749 = vmatprep.subr.mxu0 0.0
    %750 = vmatpush1.msra.mxu0 0.0
    %751 = vmatprep.subr.mxu0 0.0
    %752 = vmatpush1.msra.mxu0 0.0
    %753 = vmatprep.subr.mxu0 0.0
    %754 = vmatpush1.msra.mxu0 0.0
    %755 = vmatprep.subr.mxu0 0.0
    %756 = vmatpush1.msra.mxu0 0.0
    %757 = vmatprep.subr.mxu0 0.0
    %758 = vmatpush1.msra.mxu0 0.0
    %759 = vmatprep.subr.mxu0 0.0
    %760 = vmatpush1.msra.mxu0 0.0
    %761 = vmatprep.subr.mxu0 0.0
    %762 = vmatpush1.msra.mxu0 0.0
    %763 = vmatprep.subr.mxu0 0.0
    %764 = vmatpush1.msra.mxu0 0.0
    %765 = vmatprep.subr.mxu0 0.0
    %766 = vmatpush1.msra.mxu0 0.0
    %767 = vmatprep.subr.mxu0 0.0
    %768 = vmatpush1.msra.mxu0 0.0
    %769 = vmatprep.subr.mxu0 0.0
    %770 = vmatpush1.msra.mxu0 0.0
    %771 = vmatprep.subr.mxu0 0.0
    %772 = vmatpush1.msra.mxu0 0.0
    %773 = vmatprep.subr.mxu0 0.0
    %774 = vmatpush1.msra.mxu0 0.0
    %775 = vmatprep.subr.mxu0 0.0
    %776 = vmatpush1.msra.mxu0 0.0
    %777 = vmatprep.subr.mxu0 0.0
    %778 = vmatpush1.msra.mxu0 0.0
    %779 = vmatprep.subr.mxu0 0.0
    %780 = vmatpush1.msra.mxu0 0.0
    %781 = vmatprep.subr.mxu0 0.0
    %782 = vmatpush1.msra.mxu0 0.0
    %783 = vmatprep.subr.mxu0 0.0
    %784 = vmatpush1.msra.mxu0 0.0
    %785 = vmatprep.subr.mxu0 0.0
    %786 = vmatpush1.msra.mxu0 0.0
    %787 = vmatprep.subr.mxu0 0.0
    %788 = vmatpush1.msra.mxu0 0.0
    %789 = vmatprep.subr.mxu0 0.0
    %790 = vmatpush1.msra.mxu0 0.0
    %791 = vmatprep.mubr.f32.mxu0 0.0
    %792 = vmatmul.mubr.f32.gmra.mrb[0].mxu0 %v725
    %v793 = vpop.f32.mrb[0].mxu0
    %v794 = vadd.f32 0.0, %v793
    %v795 = vpop.f32.mrb[0].mxu0
    %v796 = vadd.f32 0.0, %v795
    %797 = vdwg.mxu0
    %v798 = vrot.slane %v412, 4
    %v800 = vadd.f32 %v794, %v798
    %v801 = vrot.slane %v420, 2
    %v803 = vadd.f32 %v796, %v801
    %v804 = vxor.u32 %v800, 2147483648
    %v805 = vmul.f32 %v804, 1.442695
    %v806 = vpow.pop %v805
    %v807 = vadd.f32 %v806, 1.0
    %v808 = vrcp.pop %v807
    %v809 = vmul.f32 1.0, %v808
    %v810 = vtanh.pop %v800
    %v811 = vmul.f32 %v809, %v679
    %813 = vrot.lane.b32.xlu0 %v810, 64
    %v814 = vpop.permute.xlu0 %813
    %v816 = vmul.f32 %v809, %v814
    %818 = vrot.lane.b32.xlu0 %v816, 32
    %v819 = vpop.permute.xlu0 %818
    %v821 = vadd.f32 %v811, %v819
    %v822 = vtanh.pop %v821
    %824 = vrot.lane.b32.xlu0 %v822, 64
    %v825 = vpop.permute.xlu0 %824
    %v827 = vmul.f32 %v809, %v825
    %v828 = vxor.u32 %v803, 2147483648
    %v829 = vmul.f32 %v828, 1.442695
    %v830 = vpow.pop %v829
    %v831 = vadd.f32 %v830, 1.0
    %v832 = vrcp.pop %v831
    %v833 = vmul.f32 1.0, %v832
    %v834 = vtanh.pop %v803
    %v835 = vmul.f32 %v833, %v703
    %837 = vrot.lane.b32.xlu0 %v834, 64
    %v838 = vpop.permute.xlu0 %837
    %v840 = vmul.f32 %v833, %v838
    %842 = vrot.lane.b32.xlu0 %v840, 32
    %v843 = vpop.permute.xlu0 %842
    %v845 = vadd.f32 %v835, %v843
    %v846 = vtanh.pop %v845
    %848 = vrot.lane.b32.xlu0 %v846, 64
    %v849 = vpop.permute.xlu0 %848
    %v851 = vmul.f32 %v833, %v849
    %853 = vrot.lane.b32.xlu0 %v827, 32
    %v854 = vpop.permute.xlu0 %853
    %856 = vst.msk [vmem:[#allocation2 + $0x4] sm:$0x3] %vm570, %v854
    %858 = vrot.lane.b32.xlu0 %v851, 32
    %v859 = vpop.permute.xlu0 %858
    %861 = vst.msk [vmem:[#allocation3 + $0xa] sm:$0x3] %vm570, %v859
    %862 = vrot.lane.b32.xlu0 %v851, 64
    %v863 = vpop.permute.xlu0 %862
    %v865 = vsel %vm338, %v854, %v863
    %v867 = vsel %vm438, %v865, 0
    %869 = vmatprep.subr.mxu0 %v423
    %870 = vmatpush1.msra.mxu0 %v422
    %871 = vmatprep.subr.mxu0 %v425
    %872 = vmatpush1.msra.mxu0 %v424
    %873 = vmatprep.subr.mxu0 %v427
    %874 = vmatpush1.msra.mxu0 %v426
    %875 = vmatprep.subr.mxu0 %v429
    %876 = vmatpush1.msra.mxu0 %v428
    %877 = vmatprep.subr.mxu0 %v431
    %878 = vmatpush1.msra.mxu0 %v430
    %879 = vmatprep.subr.mxu0 %v433
    %880 = vmatpush1.msra.mxu0 %v432
    %881 = vmatprep.subr.mxu0 %v435
    %882 = vmatpush1.msra.mxu0 %v434
    %883 = vmatprep.subr.mxu0 %v437
    %884 = vmatpush1.msra.mxu0 %v436
    %885 = vmatprep.subr.mxu0 0.0
    %886 = vmatpush1.msra.mxu0 0.0
    %887 = vmatprep.subr.mxu0 0.0
    %888 = vmatpush1.msra.mxu0 0.0
    %889 = vmatprep.subr.mxu0 0.0
    %890 = vmatpush1.msra.mxu0 0.0
    %891 = vmatprep.subr.mxu0 0.0
    %892 = vmatpush1.msra.mxu0 0.0
    %893 = vmatprep.subr.mxu0 0.0
    %894 = vmatpush1.msra.mxu0 0.0
    %895 = vmatprep.subr.mxu0 0.0
    %896 = vmatpush1.msra.mxu0 0.0
    %897 = vmatprep.subr.mxu0 0.0
    %898 = vmatpush1.msra.mxu0 0.0
    %899 = vmatprep.subr.mxu0 0.0
    %900 = vmatpush1.msra.mxu0 0.0
    %901 = vmatprep.subr.mxu0 0.0
    %902 = vmatpush1.msra.mxu0 0.0
    %903 = vmatprep.subr.mxu0 0.0
    %904 = vmatpush1.msra.mxu0 0.0
    %905 = vmatprep.subr.mxu0 0.0
    %906 = vmatpush1.msra.mxu0 0.0
    %907 = vmatprep.subr.mxu0 0.0
    %908 = vmatpush1.msra.mxu0 0.0
    %909 = vmatprep.subr.mxu0 0.0
    %910 = vmatpush1.msra.mxu0 0.0
    %911 = vmatprep.subr.mxu0 0.0
    %912 = vmatpush1.msra.mxu0 0.0
    %913 = vmatprep.subr.mxu0 0.0
    %914 = vmatpush1.msra.mxu0 0.0
    %915 = vmatprep.subr.mxu0 0.0
    %916 = vmatpush1.msra.mxu0 0.0
    %917 = vmatprep.subr.mxu0 0.0
    %918 = vmatpush1.msra.mxu0 0.0
    %919 = vmatprep.subr.mxu0 0.0
    %920 = vmatpush1.msra.mxu0 0.0
    %921 = vmatprep.subr.mxu0 0.0
    %922 = vmatpush1.msra.mxu0 0.0
    %923 = vmatprep.subr.mxu0 0.0
    %924 = vmatpush1.msra.mxu0 0.0
    %925 = vmatprep.subr.mxu0 0.0
    %926 = vmatpush1.msra.mxu0 0.0
    %927 = vmatprep.subr.mxu0 0.0
    %928 = vmatpush1.msra.mxu0 0.0
    %929 = vmatprep.subr.mxu0 0.0
    %930 = vmatpush1.msra.mxu0 0.0
    %931 = vmatprep.subr.mxu0 0.0
    %932 = vmatpush1.msra.mxu0 0.0
    %933 = vmatprep.mubr.f32.mxu0 0.0
    %934 = vmatmul.mubr.f32.gmra.mrb[0].mxu0 %v867
    %v935 = vpop.f32.mrb[0].mxu0
    %v936 = vadd.f32 0.0, %v935
    %v937 = vpop.f32.mrb[0].mxu0
    %v938 = vadd.f32 0.0, %v937
    %939 = vdwg.mxu0
    %v940 = vrot.slane %v412, 6
    %v942 = vadd.f32 %v936, %v940
    %v943 = vadd.f32 %v938, %v420
    %v944 = vxor.u32 %v942, 2147483648
    %v945 = vmul.f32 %v944, 1.442695
    %v946 = vpow.pop %v945
    %v947 = vadd.f32 %v946, 1.0
    %v948 = vrcp.pop %v947
    %v949 = vmul.f32 1.0, %v948
    %v950 = vtanh.pop %v942
    %v951 = vmul.f32 %v949, %v821
    %953 = vrot.lane.b32.xlu0 %v950, 64
    %v954 = vpop.permute.xlu0 %953
    %v956 = vmul.f32 %v949, %v954
    %958 = vrot.lane.b32.xlu0 %v956, 32
    %v959 = vpop.permute.xlu0 %958
    %v961 = vadd.f32 %v951, %v959
    %v962 = vtanh.pop %v961
    %964 = vrot.lane.b32.xlu0 %v962, 64
    %v965 = vpop.permute.xlu0 %964
    %v967 = vmul.f32 %v949, %v965
    %v968 = vxor.u32 %v943, 2147483648
    %v969 = vmul.f32 %v968, 1.442695
    %v970 = vpow.pop %v969
    %v971 = vadd.f32 %v970, 1.0
    %v972 = vrcp.pop %v971
    %v973 = vmul.f32 1.0, %v972
    %v974 = vtanh.pop %v943
    %v975 = vmul.f32 %v973, %v845
    %977 = vrot.lane.b32.xlu0 %v974, 64
    %v978 = vpop.permute.xlu0 %977
    %v980 = vmul.f32 %v973, %v978
    %982 = vrot.lane.b32.xlu0 %v980, 32
    %v983 = vpop.permute.xlu0 %982
    %v985 = vadd.f32 %v975, %v983
    %v986 = vtanh.pop %v985
    %988 = vrot.lane.b32.xlu0 %v986, 64
    %v989 = vpop.permute.xlu0 %988
    %v991 = vmul.f32 %v973, %v989
    %993 = vrot.lane.b32.xlu0 %v967, 32
    %v994 = vpop.permute.xlu0 %993
    %996 = vst.msk [vmem:[#allocation2 + $0x6] sm:$0x3] %vm570, %v994
    %998 = vrot.lane.b32.xlu0 %v991, 32
    %v999 = vpop.permute.xlu0 %998
    %1001 = vst.msk [vmem:[#allocation3 + $0x8] sm:$0x3] %vm570, %v999
    %1002 = vrot.lane.b32.xlu0 %v991, 64
    %v1003 = vpop.permute.xlu0 %1002
    %v1005 = vsel %vm338, %v994, %v1003
    %v1007 = vsel %vm438, %v1005, 0
    %1009 = vmatprep.subr.mxu0 %v423
    %1010 = vmatpush1.msra.mxu0 %v422
    %1011 = vmatprep.subr.mxu0 %v425
    %1012 = vmatpush1.msra.mxu0 %v424
    %1013 = vmatprep.subr.mxu0 %v427
    %1014 = vmatpush1.msra.mxu0 %v426
    %1015 = vmatprep.subr.mxu0 %v429
    %1016 = vmatpush1.msra.mxu0 %v428
    %1017 = vmatprep.subr.mxu0 %v431
    %1018 = vmatpush1.msra.mxu0 %v430
    %1019 = vmatprep.subr.mxu0 %v433
    %1020 = vmatpush1.msra.mxu0 %v432
    %1021 = vmatprep.subr.mxu0 %v435
    %1022 = vmatpush1.msra.mxu0 %v434
    %1023 = vmatprep.subr.mxu0 %v437
    %1024 = vmatpush1.msra.mxu0 %v436
    %1025 = vmatprep.subr.mxu0 0.0
    %1026 = vmatpush1.msra.mxu0 0.0
    %1027 = vmatprep.subr.mxu0 0.0
    %1028 = vmatpush1.msra.mxu0 0.0
    %1029 = vmatprep.subr.mxu0 0.0
    %1030 = vmatpush1.msra.mxu0 0.0
    %1031 = vmatprep.subr.mxu0 0.0
    %1032 = vmatpush1.msra.mxu0 0.0
    %1033 = vmatprep.subr.mxu0 0.0
    %1034 = vmatpush1.msra.mxu0 0.0
    %1035 = vmatprep.subr.mxu0 0.0
    %1036 = vmatpush1.msra.mxu0 0.0
    %1037 = vmatprep.subr.mxu0 0.0
    %1038 = vmatpush1.msra.mxu0 0.0
    %1039 = vmatprep.subr.mxu0 0.0
    %1040 = vmatpush1.msra.mxu0 0.0
    %1041 = vmatprep.subr.mxu0 0.0
    %1042 = vmatpush1.msra.mxu0 0.0
    %1043 = vmatprep.subr.mxu0 0.0
    %1044 = vmatpush1.msra.mxu0 0.0
    %1045 = vmatprep.subr.mxu0 0.0
    %1046 = vmatpush1.msra.mxu0 0.0
    %1047 = vmatprep.subr.mxu0 0.0
    %1048 = vmatpush1.msra.mxu0 0.0
    %1049 = vmatprep.subr.mxu0 0.0
    %1050 = vmatpush1.msra.mxu0 0.0
    %1051 = vmatprep.subr.mxu0 0.0
    %1052 = vmatpush1.msra.mxu0 0.0
    %1053 = vmatprep.subr.mxu0 0.0
    %1054 = vmatpush1.msra.mxu0 0.0
    %1055 = vmatprep.subr.mxu0 0.0
    %1056 = vmatpush1.msra.mxu0 0.0
    %1057 = vmatprep.subr.mxu0 0.0
    %1058 = vmatpush1.msra.mxu0 0.0
    %1059 = vmatprep.subr.mxu0 0.0
    %1060 = vmatpush1.msra.mxu0 0.0
    %1061 = vmatprep.subr.mxu0 0.0
    %1062 = vmatpush1.msra.mxu0 0.0
    %1063 = vmatprep.subr.mxu0 0.0
    %1064 = vmatpush1.msra.mxu0 0.0
    %1065 = vmatprep.subr.mxu0 0.0
    %1066 = vmatpush1.msra.mxu0 0.0
    %1067 = vmatprep.subr.mxu0 0.0
    %1068 = vmatpush1.msra.mxu0 0.0
    %1069 = vmatprep.subr.mxu0 0.0
    %1070 = vmatpush1.msra.mxu0 0.0
    %1071 = vmatprep.subr.mxu0 0.0
    %1072 = vmatpush1.msra.mxu0 0.0
    %1073 = vmatprep.mubr.f32.mxu0 0.0
    %1074 = vmatmul.mubr.f32.gmra.mrb[0].mxu0 %v1007
    %v1075 = vpop.f32.mrb[0].mxu0
    %v1076 = vadd.f32 0.0, %v1075
    %v1077 = vpop.f32.mrb[0].mxu0
    %v1078 = vadd.f32 0.0, %v1077
    %1079 = vdwg.mxu0
    %v1080 = vadd.f32 %v1076, %v418
    %v1082 = vrot.slane %v414, 6
    %v1084 = vadd.f32 %v1078, %v1082
    %v1085 = vxor.u32 %v1080, 2147483648
    %v1086 = vmul.f32 %v1085, 1.442695
    %v1087 = vpow.pop %v1086
    %v1088 = vadd.f32 %v1087, 1.0
    %v1089 = vrcp.pop %v1088
    %v1090 = vmul.f32 1.0, %v1089
    %v1091 = vtanh.pop %v1080
    %v1092 = vmul.f32 %v1090, %v961
    %1094 = vrot.lane.b32.xlu0 %v1091, 64
    %v1095 = vpop.permute.xlu0 %1094
    %v1097 = vmul.f32 %v1090, %v1095
    %1099 = vrot.lane.b32.xlu0 %v1097, 32
    %v1100 = vpop.permute.xlu0 %1099
    %v1102 = vadd.f32 %v1092, %v1100
    %v1103 = vtanh.pop %v1102
    %1105 = vrot.lane.b32.xlu0 %v1103, 64
    %v1106 = vpop.permute.xlu0 %1105
    %v1108 = vmul.f32 %v1090, %v1106
    %v1109 = vxor.u32 %v1084, 2147483648
    %v1110 = vmul.f32 %v1109, 1.442695
    %v1111 = vpow.pop %v1110
    %v1112 = vadd.f32 %v1111, 1.0
    %v1113 = vrcp.pop %v1112
    %v1114 = vmul.f32 1.0, %v1113
    %v1115 = vtanh.pop %v1084
    %v1116 = vmul.f32 %v1114, %v985
    %1118 = vrot.lane.b32.xlu0 %v1115, 64
    %v1119 = vpop.permute.xlu0 %1118
    %v1121 = vmul.f32 %v1114, %v1119
    %1123 = vrot.lane.b32.xlu0 %v1121, 32
    %v1124 = vpop.permute.xlu0 %1123
    %v1126 = vadd.f32 %v1116, %v1124
    %v1127 = vtanh.pop %v1126
    %1129 = vrot.lane.b32.xlu0 %v1127, 64
    %v1130 = vpop.permute.xlu0 %1129
    %v1132 = vmul.f32 %v1114, %v1130
    %1134 = vrot.lane.b32.xlu0 %v1108, 32
    %v1135 = vpop.permute.xlu0 %1134
    %1137 = vst.msk [vmem:[#allocation2 + $0x8] sm:$0x3] %vm570, %v1135
    %1139 = vrot.lane.b32.xlu0 %v1132, 32
    %v1140 = vpop.permute.xlu0 %1139
    %1142 = vst.msk [vmem:[#allocation3 + $0x6] sm:$0x3] %vm570, %v1140
    %1143 = vrot.lane.b32.xlu0 %v1132, 64
    %v1144 = vpop.permute.xlu0 %1143
    %v1146 = vsel %vm338, %v1135, %v1144
    %v1148 = vsel %vm438, %v1146, 0
    %1150 = vmatprep.subr.mxu0 %v423
    %1151 = vmatpush1.msra.mxu0 %v422
    %1152 = vmatprep.subr.mxu0 %v425
    %1153 = vmatpush1.msra.mxu0 %v424
    %1154 = vmatprep.subr.mxu0 %v427
    %1155 = vmatpush1.msra.mxu0 %v426
    %1156 = vmatprep.subr.mxu0 %v429
    %1157 = vmatpush1.msra.mxu0 %v428
    %1158 = vmatprep.subr.mxu0 %v431
    %1159 = vmatpush1.msra.mxu0 %v430
    %1160 = vmatprep.subr.mxu0 %v433
    %1161 = vmatpush1.msra.mxu0 %v432
    %1162 = vmatprep.subr.mxu0 %v435
    %1163 = vmatpush1.msra.mxu0 %v434
    %1164 = vmatprep.subr.mxu0 %v437
    %1165 = vmatpush1.msra.mxu0 %v436
    %1166 = vmatprep.subr.mxu0 0.0
    %1167 = vmatpush1.msra.mxu0 0.0
    %1168 = vmatprep.subr.mxu0 0.0
    %1169 = vmatpush1.msra.mxu0 0.0
    %1170 = vmatprep.subr.mxu0 0.0
    %1171 = vmatpush1.msra.mxu0 0.0
    %1172 = vmatprep.subr.mxu0 0.0
    %1173 = vmatpush1.msra.mxu0 0.0
    %1174 = vmatprep.subr.mxu0 0.0
    %1175 = vmatpush1.msra.mxu0 0.0
    %1176 = vmatprep.subr.mxu0 0.0
    %1177 = vmatpush1.msra.mxu0 0.0
    %1178 = vmatprep.subr.mxu0 0.0
    %1179 = vmatpush1.msra.mxu0 0.0
    %1180 = vmatprep.subr.mxu0 0.0
    %1181 = vmatpush1.msra.mxu0 0.0
    %1182 = vmatprep.subr.mxu0 0.0
    %1183 = vmatpush1.msra.mxu0 0.0
    %1184 = vmatprep.subr.mxu0 0.0
    %1185 = vmatpush1.msra.mxu0 0.0
    %1186 = vmatprep.subr.mxu0 0.0
    %1187 = vmatpush1.msra.mxu0 0.0
    %1188 = vmatprep.subr.mxu0 0.0
    %1189 = vmatpush1.msra.mxu0 0.0
    %1190 = vmatprep.subr.mxu0 0.0
    %1191 = vmatpush1.msra.mxu0 0.0
    %1192 = vmatprep.subr.mxu0 0.0
    %1193 = vmatpush1.msra.mxu0 0.0
    %1194 = vmatprep.subr.mxu0 0.0
    %1195 = vmatpush1.msra.mxu0 0.0
    %1196 = vmatprep.subr.mxu0 0.0
    %1197 = vmatpush1.msra.mxu0 0.0
    %1198 = vmatprep.subr.mxu0 0.0
    %1199 = vmatpush1.msra.mxu0 0.0
    %1200 = vmatprep.subr.mxu0 0.0
    %1201 = vmatpush1.msra.mxu0 0.0
    %1202 = vmatprep.subr.mxu0 0.0
    %1203 = vmatpush1.msra.mxu0 0.0
    %1204 = vmatprep.subr.mxu0 0.0
    %1205 = vmatpush1.msra.mxu0 0.0
    %1206 = vmatprep.subr.mxu0 0.0
    %1207 = vmatpush1.msra.mxu0 0.0
    %1208 = vmatprep.subr.mxu0 0.0
    %1209 = vmatpush1.msra.mxu0 0.0
    %1210 = vmatprep.subr.mxu0 0.0
    %1211 = vmatpush1.msra.mxu0 0.0
    %1212 = vmatprep.subr.mxu0 0.0
    %1213 = vmatpush1.msra.mxu0 0.0
    %1214 = vmatprep.mubr.f32.mxu0 0.0
    %1215 = vmatmul.mubr.f32.gmra.mrb[0].mxu0 %v1148
    %v1216 = vpop.f32.mrb[0].mxu0
    %v1217 = vadd.f32 0.0, %v1216
    %v1218 = vpop.f32.mrb[0].mxu0
    %v1219 = vadd.f32 0.0, %v1218
    %1220 = vdwg.mxu0
    %v1222 = vrot.slane %v418, 2
    %v1224 = vadd.f32 %v1217, %v1222
    %v1225 = vrot.slane %v414, 4
    %v1227 = vadd.f32 %v1219, %v1225
    %v1228 = vxor.u32 %v1224, 2147483648
    %v1229 = vmul.f32 %v1228, 1.442695
    %v1230 = vpow.pop %v1229
    %v1231 = vadd.f32 %v1230, 1.0
    %v1232 = vrcp.pop %v1231
    %v1233 = vmul.f32 1.0, %v1232
    %v1234 = vtanh.pop %v1224
    %v1235 = vmul.f32 %v1233, %v1102
    %1237 = vrot.lane.b32.xlu0 %v1234, 64
    %v1238 = vpop.permute.xlu0 %1237
    %v1240 = vmul.f32 %v1233, %v1238
    %1242 = vrot.lane.b32.xlu0 %v1240, 32
    %v1243 = vpop.permute.xlu0 %1242
    %v1245 = vadd.f32 %v1235, %v1243
    %v1246 = vtanh.pop %v1245
    %1248 = vrot.lane.b32.xlu0 %v1246, 64
    %v1249 = vpop.permute.xlu0 %1248
    %v1251 = vmul.f32 %v1233, %v1249
    %v1252 = vxor.u32 %v1227, 2147483648
    %v1253 = vmul.f32 %v1252, 1.442695
    %v1254 = vpow.pop %v1253
    %v1255 = vadd.f32 %v1254, 1.0
    %v1256 = vrcp.pop %v1255
    %v1257 = vmul.f32 1.0, %v1256
    %v1258 = vtanh.pop %v1227
    %v1259 = vmul.f32 %v1257, %v1126
    %1261 = vrot.lane.b32.xlu0 %v1258, 64
    %v1262 = vpop.permute.xlu0 %1261
    %v1264 = vmul.f32 %v1257, %v1262
    %1266 = vrot.lane.b32.xlu0 %v1264, 32
    %v1267 = vpop.permute.xlu0 %1266
    %v1269 = vadd.f32 %v1259, %v1267
    %v1270 = vtanh.pop %v1269
    %1272 = vrot.lane.b32.xlu0 %v1270, 64
    %v1273 = vpop.permute.xlu0 %1272
    %v1275 = vmul.f32 %v1257, %v1273
    %1277 = vrot.lane.b32.xlu0 %v1251, 32
    %v1278 = vpop.permute.xlu0 %1277
    %1280 = vst.msk [vmem:[#allocation2 + $0xa] sm:$0x3] %vm570, %v1278
    %1282 = vrot.lane.b32.xlu0 %v1275, 32
    %v1283 = vpop.permute.xlu0 %1282
    %1285 = vst.msk [vmem:[#allocation3 + $0x4] sm:$0x3] %vm570, %v1283
    %1286 = vrot.lane.b32.xlu0 %v1275, 64
    %v1287 = vpop.permute.xlu0 %1286
    %v1289 = vsel %vm338, %v1278, %v1287
    %v1291 = vsel %vm438, %v1289, 0
    %1293 = vmatprep.subr.mxu0 %v423
    %1294 = vmatpush1.msra.mxu0 %v422
    %1295 = vmatprep.subr.mxu0 %v425
    %1296 = vmatpush1.msra.mxu0 %v424
    %1297 = vmatprep.subr.mxu0 %v427
    %1298 = vmatpush1.msra.mxu0 %v426
    %1299 = vmatprep.subr.mxu0 %v429
    %1300 = vmatpush1.msra.mxu0 %v428
    %1301 = vmatprep.subr.mxu0 %v431
    %1302 = vmatpush1.msra.mxu0 %v430
    %1303 = vmatprep.subr.mxu0 %v433
    %1304 = vmatpush1.msra.mxu0 %v432
    %1305 = vmatprep.subr.mxu0 %v435
    %1306 = vmatpush1.msra.mxu0 %v434
    %1307 = vmatprep.subr.mxu0 %v437
    %1308 = vmatpush1.msra.mxu0 %v436
    %1309 = vmatprep.subr.mxu0 0.0
    %1310 = vmatpush1.msra.mxu0 0.0
    %1311 = vmatprep.subr.mxu0 0.0
    %1312 = vmatpush1.msra.mxu0 0.0
    %1313 = vmatprep.subr.mxu0 0.0
    %1314 = vmatpush1.msra.mxu0 0.0
    %1315 = vmatprep.subr.mxu0 0.0
    %1316 = vmatpush1.msra.mxu0 0.0
    %1317 = vmatprep.subr.mxu0 0.0
    %1318 = vmatpush1.msra.mxu0 0.0
    %1319 = vmatprep.subr.mxu0 0.0
    %1320 = vmatpush1.msra.mxu0 0.0
    %1321 = vmatprep.subr.mxu0 0.0
    %1322 = vmatpush1.msra.mxu0 0.0
    %1323 = vmatprep.subr.mxu0 0.0
    %1324 = vmatpush1.msra.mxu0 0.0
    %1325 = vmatprep.subr.mxu0 0.0
    %1326 = vmatpush1.msra.mxu0 0.0
    %1327 = vmatprep.subr.mxu0 0.0
    %1328 = vmatpush1.msra.mxu0 0.0
    %1329 = vmatprep.subr.mxu0 0.0
    %1330 = vmatpush1.msra.mxu0 0.0
    %1331 = vmatprep.subr.mxu0 0.0
    %1332 = vmatpush1.msra.mxu0 0.0
    %1333 = vmatprep.subr.mxu0 0.0
    %1334 = vmatpush1.msra.mxu0 0.0
    %1335 = vmatprep.subr.mxu0 0.0
    %1336 = vmatpush1.msra.mxu0 0.0
    %1337 = vmatprep.subr.mxu0 0.0
    %1338 = vmatpush1.msra.mxu0 0.0
    %1339 = vmatprep.subr.mxu0 0.0
    %1340 = vmatpush1.msra.mxu0 0.0
    %1341 = vmatprep.subr.mxu0 0.0
    %1342 = vmatpush1.msra.mxu0 0.0
    %1343 = vmatprep.subr.mxu0 0.0
    %1344 = vmatpush1.msra.mxu0 0.0
    %1345 = vmatprep.subr.mxu0 0.0
    %1346 = vmatpush1.msra.mxu0 0.0
    %1347 = vmatprep.subr.mxu0 0.0
    %1348 = vmatpush1.msra.mxu0 0.0
    %1349 = vmatprep.subr.mxu0 0.0
    %1350 = vmatpush1.msra.mxu0 0.0
    %1351 = vmatprep.subr.mxu0 0.0
    %1352 = vmatpush1.msra.mxu0 0.0
    %1353 = vmatprep.subr.mxu0 0.0
    %1354 = vmatpush1.msra.mxu0 0.0
    %1355 = vmatprep.subr.mxu0 0.0
    %1356 = vmatpush1.msra.mxu0 0.0
    %1357 = vmatprep.mubr.f32.mxu0 0.0
    %1358 = vmatmul.mubr.f32.gmra.mrb[0].mxu0 %v1291
    %v1359 = vpop.f32.mrb[0].mxu0
    %v1360 = vadd.f32 0.0, %v1359
    %v1361 = vpop.f32.mrb[0].mxu0
    %v1362 = vadd.f32 0.0, %v1361
    %1363 = vdwg.mxu0
    %v1364 = vrot.slane %v418, 4
    %v1366 = vadd.f32 %v1360, %v1364
    %v1367 = vrot.slane %v414, 2
    %v1369 = vadd.f32 %v1362, %v1367
    %v1370 = vxor.u32 %v1366, 2147483648
    %v1371 = vmul.f32 %v1370, 1.442695
    %v1372 = vpow.pop %v1371
    %v1373 = vadd.f32 %v1372, 1.0
    %v1374 = vrcp.pop %v1373
    %v1375 = vmul.f32 1.0, %v1374
    %v1376 = vtanh.pop %v1366
    %v1377 = vmul.f32 %v1375, %v1245
    %1379 = vrot.lane.b32.xlu0 %v1376, 64
    %v1380 = vpop.permute.xlu0 %1379
    %v1382 = vmul.f32 %v1375, %v1380
    %1384 = vrot.lane.b32.xlu0 %v1382, 32
    %v1385 = vpop.permute.xlu0 %1384
    %v1387 = vadd.f32 %v1377, %v1385
    %v1388 = vtanh.pop %v1387
    %1390 = vrot.lane.b32.xlu0 %v1388, 64
    %v1391 = vpop.permute.xlu0 %1390
    %v1393 = vmul.f32 %v1375, %v1391
    %v1394 = vxor.u32 %v1369, 2147483648
    %v1395 = vmul.f32 %v1394, 1.442695
    %v1396 = vpow.pop %v1395
    %v1397 = vadd.f32 %v1396, 1.0
    %v1398 = vrcp.pop %v1397
    %v1399 = vmul.f32 1.0, %v1398
    %v1400 = vtanh.pop %v1369
    %v1401 = vmul.f32 %v1399, %v1269
    %1403 = vrot.lane.b32.xlu0 %v1400, 64
    %v1404 = vpop.permute.xlu0 %1403
    %v1406 = vmul.f32 %v1399, %v1404
    %1408 = vrot.lane.b32.xlu0 %v1406, 32
    %v1409 = vpop.permute.xlu0 %1408
    %v1411 = vadd.f32 %v1401, %v1409
    %v1412 = vtanh.pop %v1411
    %1414 = vrot.lane.b32.xlu0 %v1412, 64
    %v1415 = vpop.permute.xlu0 %1414
    %v1417 = vmul.f32 %v1399, %v1415
    %1419 = vrot.lane.b32.xlu0 %v1393, 32
    %v1420 = vpop.permute.xlu0 %1419
    %1422 = vst.msk [vmem:[#allocation2 + $0xc] sm:$0x3] %vm570, %v1420
    %1424 = vrot.lane.b32.xlu0 %v1417, 32
    %v1425 = vpop.permute.xlu0 %1424
    %1427 = vst.msk [vmem:[#allocation3 + $0x2] sm:$0x3] %vm570, %v1425
    %1428 = vrot.lane.b32.xlu0 %v1417, 64
    %v1429 = vpop.permute.xlu0 %1428
    %v1431 = vsel %vm338, %v1420, %v1429
    %v1433 = vsel %vm438, %v1431, 0
    %1435 = vmatprep.subr.mxu0 %v423
    %1436 = vmatpush1.msra.mxu0 %v422
    %1437 = vmatprep.subr.mxu0 %v425
    %1438 = vmatpush1.msra.mxu0 %v424
    %1439 = vmatprep.subr.mxu0 %v427
    %1440 = vmatpush1.msra.mxu0 %v426
    %1441 = vmatprep.subr.mxu0 %v429
    %1442 = vmatpush1.msra.mxu0 %v428
    %1443 = vmatprep.subr.mxu0 %v431
    %1444 = vmatpush1.msra.mxu0 %v430
    %1445 = vmatprep.subr.mxu0 %v433
    %1446 = vmatpush1.msra.mxu0 %v432
    %1447 = vmatprep.subr.mxu0 %v435
    %1448 = vmatpush1.msra.mxu0 %v434
    %1449 = vmatprep.subr.mxu0 %v437
    %1450 = vmatpush1.msra.mxu0 %v436
    %1451 = vmatprep.subr.mxu0 0.0
    %1452 = vmatpush1.msra.mxu0 0.0
    %1453 = vmatprep.subr.mxu0 0.0
    %1454 = vmatpush1.msra.mxu0 0.0
    %1455 = vmatprep.subr.mxu0 0.0
    %1456 = vmatpush1.msra.mxu0 0.0
    %1457 = vmatprep.subr.mxu0 0.0
    %1458 = vmatpush1.msra.mxu0 0.0
    %1459 = vmatprep.subr.mxu0 0.0
    %1460 = vmatpush1.msra.mxu0 0.0
    %1461 = vmatprep.subr.mxu0 0.0
    %1462 = vmatpush1.msra.mxu0 0.0
    %1463 = vmatprep.subr.mxu0 0.0
    %1464 = vmatpush1.msra.mxu0 0.0
    %1465 = vmatprep.subr.mxu0 0.0
    %1466 = vmatpush1.msra.mxu0 0.0
    %1467 = vmatprep.subr.mxu0 0.0
    %1468 = vmatpush1.msra.mxu0 0.0
    %1469 = vmatprep.subr.mxu0 0.0
    %1470 = vmatpush1.msra.mxu0 0.0
    %1471 = vmatprep.subr.mxu0 0.0
    %1472 = vmatpush1.msra.mxu0 0.0
    %1473 = vmatprep.subr.mxu0 0.0
    %1474 = vmatpush1.msra.mxu0 0.0
    %1475 = vmatprep.subr.mxu0 0.0
    %1476 = vmatpush1.msra.mxu0 0.0
    %1477 = vmatprep.subr.mxu0 0.0
    %1478 = vmatpush1.msra.mxu0 0.0
    %1479 = vmatprep.subr.mxu0 0.0
    %1480 = vmatpush1.msra.mxu0 0.0
    %1481 = vmatprep.subr.mxu0 0.0
    %1482 = vmatpush1.msra.mxu0 0.0
    %1483 = vmatprep.subr.mxu0 0.0
    %1484 = vmatpush1.msra.mxu0 0.0
    %1485 = vmatprep.subr.mxu0 0.0
    %1486 = vmatpush1.msra.mxu0 0.0
    %1487 = vmatprep.subr.mxu0 0.0
    %1488 = vmatpush1.msra.mxu0 0.0
    %1489 = vmatprep.subr.mxu0 0.0
    %1490 = vmatpush1.msra.mxu0 0.0
    %1491 = vmatprep.subr.mxu0 0.0
    %1492 = vmatpush1.msra.mxu0 0.0
    %1493 = vmatprep.subr.mxu0 0.0
    %1494 = vmatpush1.msra.mxu0 0.0
    %1495 = vmatprep.subr.mxu0 0.0
    %1496 = vmatpush1.msra.mxu0 0.0
    %1497 = vmatprep.subr.mxu0 0.0
    %1498 = vmatpush1.msra.mxu0 0.0
    %1499 = vmatprep.mubr.f32.mxu0 0.0
    %1500 = vmatmul.mubr.f32.gmra.mrb[0].mxu0 %v1433
    %v1501 = vpop.f32.mrb[0].mxu0
    %v1502 = vadd.f32 0.0, %v1501
    %v1503 = vpop.f32.mrb[0].mxu0
    %v1504 = vadd.f32 0.0, %v1503
    %1505 = vdwg.mxu0
    %v1506 = vrot.slane %v418, 6
    %v1508 = vadd.f32 %v1502, %v1506
    %v1509 = vadd.f32 %v1504, %v414
    %v1510 = vxor.u32 %v1508, 2147483648
    %v1511 = vmul.f32 %v1510, 1.442695
    %v1512 = vpow.pop %v1511
    %v1513 = vadd.f32 %v1512, 1.0
    %v1514 = vrcp.pop %v1513
    %v1515 = vmul.f32 1.0, %v1514
    %v1516 = vtanh.pop %v1508
    %v1517 = vmul.f32 %v1515, %v1387
    %1519 = vrot.lane.b32.xlu0 %v1516, 64
    %v1520 = vpop.permute.xlu0 %1519
    %v1522 = vmul.f32 %v1515, %v1520
    %1524 = vrot.lane.b32.xlu0 %v1522, 32
    %v1525 = vpop.permute.xlu0 %1524
    %v1527 = vadd.f32 %v1517, %v1525
    %v1528 = vtanh.pop %v1527
    %1530 = vrot.lane.b32.xlu0 %v1528, 64
    %v1531 = vpop.permute.xlu0 %1530
    %v1533 = vmul.f32 %v1515, %v1531
    %v1534 = vxor.u32 %v1509, 2147483648
    %v1535 = vmul.f32 %v1534, 1.442695
    %v1536 = vpow.pop %v1535
    %v1537 = vadd.f32 %v1536, 1.0
    %v1538 = vrcp.pop %v1537
    %v1539 = vmul.f32 1.0, %v1538
    %v1540 = vtanh.pop %v1509
    %v1541 = vmul.f32 %v1539, %v1411
    %1543 = vrot.lane.b32.xlu0 %v1540, 64
    %v1544 = vpop.permute.xlu0 %1543
    %v1546 = vmul.f32 %v1539, %v1544
    %1548 = vrot.lane.b32.xlu0 %v1546, 32
    %v1549 = vpop.permute.xlu0 %1548
    %v1551 = vadd.f32 %v1541, %v1549
    %v1552 = vtanh.pop %v1551
    %1554 = vrot.lane.b32.xlu0 %v1552, 64
    %v1555 = vpop.permute.xlu0 %1554
    %v1557 = vmul.f32 %v1539, %v1555
    %1559 = vrot.lane.b32.xlu0 %v1533, 32
    %v1560 = vpop.permute.xlu0 %1559
    %1562 = vst.msk [vmem:[#allocation2 + $0xe] sm:$0x3] %vm570, %v1560
    %1564 = vrot.lane.b32.xlu0 %v1557, 32
    %v1565 = vpop.permute.xlu0 %1564
    %1567 = vst.msk [vmem:[#allocation3] sm:$0x3] %vm570, %v1565
    %v1568 = vld [vmem:[%s6] sm:$0xff]
    %v1569 = vld [vmem:[%s6 + $0x8] sm:$0xff]
    %v1570 = vld [vmem:[%s6 + $0x10] sm:$0xff]
    %v1571 = vld [vmem:[%s6 + $0x18] sm:$0xff]
    %v1572 = vld [vmem:[%s6 + $0x20] sm:$0xff]
    %v1573 = vld [vmem:[%s6 + $0x28] sm:$0xff]
    %v1574 = vld [vmem:[%s6 + $0x30] sm:$0xff]
    %v1575 = vld [vmem:[%s6 + $0x38] sm:$0xff]
    %v1576 = vld [vmem:[%s6 + $0x40] sm:$0xff]
    %v1577 = vld [vmem:[%s6 + $0x48] sm:$0xff]
    %v1578 = vld [vmem:[%s6 + $0x50] sm:$0xff]
    %v1579 = vld [vmem:[%s6 + $0x58] sm:$0xff]
    %v1580 = vld [vmem:[%s6 + $0x60] sm:$0xff]
    %v1581 = vld [vmem:[%s6 + $0x68] sm:$0xff]
    %v1582 = vld [vmem:[%s6 + $0x70] sm:$0xff]
    %v1583 = vld [vmem:[%s6 + $0x78] sm:$0xff]
    %v1584 = vld [vmem:[#allocation2] sm:$0xff]
    %v1585 = vld [vmem:[#allocation2 + $0x8] sm:$0xff]
    %v1586 = vld [vmem:[#allocation3] sm:$0xff]
    %v1587 = vld [vmem:[#allocation3 + $0x8] sm:$0xff]
    %v1589 = vsel %vm338, %v1586, 0
    %v1592 = vsel %vm338, %v1587, 0
    %1594 = vmatprep.subr.mxu0 %v1577
    %1595 = vmatpush1.msra.mxu0 %v1576
    %1596 = vmatprep.subr.mxu0 %v1579
    %1597 = vmatpush1.msra.mxu0 %v1578
    %1598 = vmatprep.subr.mxu0 %v1581
    %1599 = vmatpush1.msra.mxu0 %v1580
    %1600 = vmatprep.subr.mxu0 %v1583
    %1601 = vmatpush1.msra.mxu0 %v1582
    %1602 = vmatprep.subr.mxu0 0.0
    %1603 = vmatpush1.msra.mxu0 0.0
    %1604 = vmatprep.subr.mxu0 0.0
    %1605 = vmatpush1.msra.mxu0 0.0
    %1606 = vmatprep.subr.mxu0 0.0
    %1607 = vmatpush1.msra.mxu0 0.0
    %1608 = vmatprep.subr.mxu0 0.0
    %1609 = vmatpush1.msra.mxu0 0.0
    %1610 = vmatprep.subr.mxu0 0.0
    %1611 = vmatpush1.msra.mxu0 0.0
    %1612 = vmatprep.subr.mxu0 0.0
    %1613 = vmatpush1.msra.mxu0 0.0
    %1614 = vmatprep.subr.mxu0 0.0
    %1615 = vmatpush1.msra.mxu0 0.0
    %1616 = vmatprep.subr.mxu0 0.0
    %1617 = vmatpush1.msra.mxu0 0.0
    %1618 = vmatprep.subr.mxu0 0.0
    %1619 = vmatpush1.msra.mxu0 0.0
    %1620 = vmatprep.subr.mxu0 0.0
    %1621 = vmatpush1.msra.mxu0 0.0
    %1622 = vmatprep.subr.mxu0 0.0
    %1623 = vmatpush1.msra.mxu0 0.0
    %1624 = vmatprep.subr.mxu0 0.0
    %1625 = vmatpush1.msra.mxu0 0.0
    %1626 = vmatprep.subr.mxu0 0.0
    %1627 = vmatpush1.msra.mxu0 0.0
    %1628 = vmatprep.subr.mxu0 0.0
    %1629 = vmatpush1.msra.mxu0 0.0
    %1630 = vmatprep.subr.mxu0 0.0
    %1631 = vmatpush1.msra.mxu0 0.0
    %1632 = vmatprep.subr.mxu0 0.0
    %1633 = vmatpush1.msra.mxu0 0.0
    %1634 = vmatprep.subr.mxu0 0.0
    %1635 = vmatpush1.msra.mxu0 0.0
    %1636 = vmatprep.subr.mxu0 0.0
    %1637 = vmatpush1.msra.mxu0 0.0
    %1638 = vmatprep.subr.mxu0 0.0
    %1639 = vmatpush1.msra.mxu0 0.0
    %1640 = vmatprep.subr.mxu0 0.0
    %1641 = vmatpush1.msra.mxu0 0.0
    %1642 = vmatprep.subr.mxu0 0.0
    %1643 = vmatpush1.msra.mxu0 0.0
    %1644 = vmatprep.subr.mxu0 0.0
    %1645 = vmatpush1.msra.mxu0 0.0
    %1646 = vmatprep.subr.mxu0 0.0
    %1647 = vmatpush1.msra.mxu0 0.0
    %1648 = vmatprep.subr.mxu0 0.0
    %1649 = vmatpush1.msra.mxu0 0.0
    %1650 = vmatprep.subr.mxu0 0.0
    %1651 = vmatpush1.msra.mxu0 0.0
    %1652 = vmatprep.subr.mxu0 0.0
    %1653 = vmatpush1.msra.mxu0 0.0
    %1654 = vmatprep.subr.mxu0 0.0
    %1655 = vmatpush1.msra.mxu0 0.0
    %1656 = vmatprep.subr.mxu0 0.0
    %1657 = vmatpush1.msra.mxu0 0.0
    %1658 = vmatprep.mubr.f32.mxu0 0.0
    %1659 = vmatmul.mubr.f32.gmra.mrb[0].mxu0 %v1589
    %v1660 = vpop.f32.mrb[0].mxu0
    %v1661 = vadd.f32 0.0, %v1660
    %v1662 = vpop.f32.mrb[0].mxu0
    %v1663 = vadd.f32 0.0, %v1662
    %1664 = vmatprep.mubr.f32.mxu0 0.0
    %1665 = vmatmul.mubr.f32.gmra.mrb[0].mxu0 %v1592
    %v1666 = vpop.f32.mrb[0].mxu0
    %v1667 = vadd.f32 0.0, %v1666
    %v1668 = vpop.f32.mrb[0].mxu0
    %v1669 = vadd.f32 0.0, %v1668
    %1670 = vdwg.mxu0
    %v1672 = vsel %vm338, %v1584, 0
    %v1675 = vsel %vm338, %v1585, 0
    %1677 = vmatprep.subr.mxu0 %v1569
    %1678 = vmatpush1.msra.mxu0 %v1568
    %1679 = vmatprep.subr.mxu0 %v1571
    %1680 = vmatpush1.msra.mxu0 %v1570
    %1681 = vmatprep.subr.mxu0 %v1573
    %1682 = vmatpush1.msra.mxu0 %v1572
    %1683 = vmatprep.subr.mxu0 %v1575
    %1684 = vmatpush1.msra.mxu0 %v1574
    %1685 = vmatprep.subr.mxu0 0.0
    %1686 = vmatpush1.msra.mxu0 0.0
    %1687 = vmatprep.subr.mxu0 0.0
    %1688 = vmatpush1.msra.mxu0 0.0
    %1689 = vmatprep.subr.mxu0 0.0
    %1690 = vmatpush1.msra.mxu0 0.0
    %1691 = vmatprep.subr.mxu0 0.0
    %1692 = vmatpush1.msra.mxu0 0.0
    %1693 = vmatprep.subr.mxu0 0.0
    %1694 = vmatpush1.msra.mxu0 0.0
    %1695 = vmatprep.subr.mxu0 0.0
    %1696 = vmatpush1.msra.mxu0 0.0
    %1697 = vmatprep.subr.mxu0 0.0
    %1698 = vmatpush1.msra.mxu0 0.0
    %1699 = vmatprep.subr.mxu0 0.0
    %1700 = vmatpush1.msra.mxu0 0.0
    %1701 = vmatprep.subr.mxu0 0.0
    %1702 = vmatpush1.msra.mxu0 0.0
    %1703 = vmatprep.subr.mxu0 0.0
    %1704 = vmatpush1.msra.mxu0 0.0
    %1705 = vmatprep.subr.mxu0 0.0
    %1706 = vmatpush1.msra.mxu0 0.0
    %1707 = vmatprep.subr.mxu0 0.0
    %1708 = vmatpush1.msra.mxu0 0.0
    %1709 = vmatprep.subr.mxu0 0.0
    %1710 = vmatpush1.msra.mxu0 0.0
    %1711 = vmatprep.subr.mxu0 0.0
    %1712 = vmatpush1.msra.mxu0 0.0
    %1713 = vmatprep.subr.mxu0 0.0
    %1714 = vmatpush1.msra.mxu0 0.0
    %1715 = vmatprep.subr.mxu0 0.0
    %1716 = vmatpush1.msra.mxu0 0.0
    %1717 = vmatprep.subr.mxu0 0.0
    %1718 = vmatpush1.msra.mxu0 0.0
    %1719 = vmatprep.subr.mxu0 0.0
    %1720 = vmatpush1.msra.mxu0 0.0
    %1721 = vmatprep.subr.mxu0 0.0
    %1722 = vmatpush1.msra.mxu0 0.0
    %1723 = vmatprep.subr.mxu0 0.0
    %1724 = vmatpush1.msra.mxu0 0.0
    %1725 = vmatprep.subr.mxu0 0.0
    %1726 = vmatpush1.msra.mxu0 0.0
    %1727 = vmatprep.subr.mxu0 0.0
    %1728 = vmatpush1.msra.mxu0 0.0
    %1729 = vmatprep.subr.mxu0 0.0
    %1730 = vmatpush1.msra.mxu0 0.0
    %1731 = vmatprep.subr.mxu0 0.0
    %1732 = vmatpush1.msra.mxu0 0.0
    %1733 = vmatprep.subr.mxu0 0.0
    %1734 = vmatpush1.msra.mxu0 0.0
    %1735 = vmatprep.subr.mxu0 0.0
    %1736 = vmatpush1.msra.mxu0 0.0
    %1737 = vmatprep.subr.mxu0 0.0
    %1738 = vmatpush1.msra.mxu0 0.0
    %1739 = vmatprep.subr.mxu0 0.0
    %1740 = vmatpush1.msra.mxu0 0.0
    %1741 = vmatprep.mubr.f32.mxu0 0.0
    %1742 = vmatmul.mubr.f32.gmra.mrb[0].mxu0 %v1672
    %v1743 = vpop.f32.mrb[0].mxu0
    %v1744 = vadd.f32 %v1661, %v1743
    %v1745 = vpop.f32.mrb[0].mxu0
    %v1746 = vadd.f32 %v1663, %v1745
    %1747 = vmatprep.mubr.f32.mxu0 0.0
    %1748 = vmatmul.mubr.f32.gmra.mrb[0].mxu0 %v1675
    %v1749 = vpop.f32.mrb[0].mxu0
    %v1750 = vadd.f32 %v1667, %v1749
    %v1751 = vpop.f32.mrb[0].mxu0
    %v1752 = vadd.f32 %v1669, %v1751
    %1753 = vdwg.mxu0
    %v1754 = vld [vmem:[#allocation12] sm:$0x3]
    %v1756 = vlaneseq
    %v1757 = vshrl.u32 %v1756, 7
    %v1758 = vsub.s32 0, %v1757
    %v1759 = vrot.slane %v1754, %v1758
    %v1760 = vlaneseq
    %v1761 = vshrl.u32 %v1760, 7
    %v1762 = vsub.s32 1, %v1761
    %v1763 = vrot.slane %v1754, %v1762
    %v1766 = vadd.f32 %v1744, %v1759
    %v1767 = vadd.f32 %v1746, %v1763
    %v1768 = vadd.f32 %v1750, %v1759
    %v1769 = vadd.f32 %v1752, %v1763
    %v1770 = vld [vmem:[#allocation10] sm:$0xff]
    %v1771 = vld [vmem:[#allocation10 + $0x8] sm:$0xff]
    %v1772 = vld [vmem:[#allocation10 + $0x10] sm:$0xff]
    %v1773 = vld [vmem:[#allocation10 + $0x18] sm:$0xff]
    %v1774 = vld [vmem:[#allocation10 + $0x20] sm:$0xff]
    %v1775 = vld [vmem:[#allocation10 + $0x28] sm:$0xff]
    %v1776 = vld [vmem:[#allocation10 + $0x30] sm:$0xff]
    %v1777 = vld [vmem:[#allocation10 + $0x38] sm:$0xff]
    %v1778 = vld [vmem:[#allocation10 + $0x40] sm:$0xff]
    %v1779 = vld [vmem:[#allocation10 + $0x48] sm:$0xff]
    %v1780 = vld [vmem:[#allocation10 + $0x50] sm:$0xff]
    %v1781 = vld [vmem:[#allocation10 + $0x58] sm:$0xff]
    %v1782 = vld [vmem:[#allocation10 + $0x60] sm:$0xff]
    %v1783 = vld [vmem:[#allocation10 + $0x68] sm:$0xff]
    %v1784 = vld [vmem:[#allocation10 + $0x70] sm:$0xff]
    %v1785 = vld [vmem:[#allocation10 + $0x78] sm:$0xff]
    %1786 = vmatprep.subr.mxu0 %v1771
    %1787 = vmatpush1.msra.mxu0 %v1770
    %1788 = vmatprep.subr.mxu0 %v1773
    %1789 = vmatpush1.msra.mxu0 %v1772
    %1790 = vmatprep.subr.mxu0 %v1775
    %1791 = vmatpush1.msra.mxu0 %v1774
    %1792 = vmatprep.subr.mxu0 %v1777
    %1793 = vmatpush1.msra.mxu0 %v1776
    %1794 = vmatprep.subr.mxu0 %v1779
    %1795 = vmatpush1.msra.mxu0 %v1778
    %1796 = vmatprep.subr.mxu0 %v1781
    %1797 = vmatpush1.msra.mxu0 %v1780
    %1798 = vmatprep.subr.mxu0 %v1783
    %1799 = vmatpush1.msra.mxu0 %v1782
    %1800 = vmatprep.subr.mxu0 %v1785
    %1801 = vmatpush1.msra.mxu0 %v1784
    %1802 = vmatprep.subr.mxu0 0.0
    %1803 = vmatpush1.msra.mxu0 0.0
    %1804 = vmatprep.subr.mxu0 0.0
    %1805 = vmatpush1.msra.mxu0 0.0
    %1806 = vmatprep.subr.mxu0 0.0
    %1807 = vmatpush1.msra.mxu0 0.0
    %1808 = vmatprep.subr.mxu0 0.0
    %1809 = vmatpush1.msra.mxu0 0.0
    %1810 = vmatprep.subr.mxu0 0.0
    %1811 = vmatpush1.msra.mxu0 0.0
    %1812 = vmatprep.subr.mxu0 0.0
    %1813 = vmatpush1.msra.mxu0 0.0
    %1814 = vmatprep.subr.mxu0 0.0
    %1815 = vmatpush1.msra.mxu0 0.0
    %1816 = vmatprep.subr.mxu0 0.0
    %1817 = vmatpush1.msra.mxu0 0.0
    %1818 = vmatprep.subr.mxu0 0.0
    %1819 = vmatpush1.msra.mxu0 0.0
    %1820 = vmatprep.subr.mxu0 0.0
    %1821 = vmatpush1.msra.mxu0 0.0
    %1822 = vmatprep.subr.mxu0 0.0
    %1823 = vmatpush1.msra.mxu0 0.0
    %1824 = vmatprep.subr.mxu0 0.0
    %1825 = vmatpush1.msra.mxu0 0.0
    %1826 = vmatprep.subr.mxu0 0.0
    %1827 = vmatpush1.msra.mxu0 0.0
    %1828 = vmatprep.subr.mxu0 0.0
    %1829 = vmatpush1.msra.mxu0 0.0
    %1830 = vmatprep.subr.mxu0 0.0
    %1831 = vmatpush1.msra.mxu0 0.0
    %1832 = vmatprep.subr.mxu0 0.0
    %1833 = vmatpush1.msra.mxu0 0.0
    %1834 = vmatprep.subr.mxu0 0.0
    %1835 = vmatpush1.msra.mxu0 0.0
    %1836 = vmatprep.subr.mxu0 0.0
    %1837 = vmatpush1.msra.mxu0 0.0
    %1838 = vmatprep.subr.mxu0 0.0
    %1839 = vmatpush1.msra.mxu0 0.0
    %1840 = vmatprep.subr.mxu0 0.0
    %1841 = vmatpush1.msra.mxu0 0.0
    %1842 = vmatprep.subr.mxu0 0.0
    %1843 = vmatpush1.msra.mxu0 0.0
    %1844 = vmatprep.subr.mxu0 0.0
    %1845 = vmatpush1.msra.mxu0 0.0
    %1846 = vmatprep.subr.mxu0 0.0
    %1847 = vmatpush1.msra.mxu0 0.0
    %1848 = vmatprep.subr.mxu0 0.0
    %1849 = vmatpush1.msra.mxu0 0.0
    %1850 = vmatprep.mubr.f32.mxu0 0.0
    %1851 = vmatmul.mubr.f32.gmra.mrb[0].mxu0 %v440
    %v1852 = vpop.f32.mrb[0].mxu0
    %v1853 = vadd.f32 0.0, %v1852
    %v1854 = vpop.f32.mrb[0].mxu0
    %v1855 = vadd.f32 0.0, %v1854
    %1856 = vdwg.mxu0
    %v1857 = vadd.f32 %v1853, %v1766
    %v1859 = vrot.slane %v1769, 6
    %v1861 = vadd.f32 %v1855, %v1859
    %v1862 = vxor.u32 %v1857, 2147483648
    %v1863 = vmul.f32 %v1862, 1.442695
    %v1864 = vpow.pop %v1863
    %v1865 = vadd.f32 %v1864, 1.0
    %v1866 = vrcp.pop %v1865
    %v1867 = vmul.f32 1.0, %v1866
    %v1868 = vtanh.pop %v1857
    %v1869 = vmul.f32 %v1867, 0.0
    %1871 = vrot.lane.b32.xlu0 %v1868, 64
    %v1872 = vpop.permute.xlu0 %1871
    %v1874 = vmul.f32 %v1867, %v1872
    %1876 = vrot.lane.b32.xlu0 %v1874, 32
    %v1877 = vpop.permute.xlu0 %1876
    %v1879 = vadd.f32 %v1869, %v1877
    %v1880 = vtanh.pop %v1879
    %1882 = vrot.lane.b32.xlu0 %v1880, 64
    %v1883 = vpop.permute.xlu0 %1882
    %v1885 = vmul.f32 %v1867, %v1883
    %v1886 = vxor.u32 %v1861, 2147483648
    %v1887 = vmul.f32 %v1886, 1.442695
    %v1888 = vpow.pop %v1887
    %v1889 = vadd.f32 %v1888, 1.0
    %v1890 = vrcp.pop %v1889
    %v1891 = vmul.f32 1.0, %v1890
    %v1892 = vtanh.pop %v1861
    %v1893 = vmul.f32 %v1891, 0.0
    %1895 = vrot.lane.b32.xlu0 %v1892, 64
    %v1896 = vpop.permute.xlu0 %1895
    %v1898 = vmul.f32 %v1891, %v1896
    %1900 = vrot.lane.b32.xlu0 %v1898, 32
    %v1901 = vpop.permute.xlu0 %1900
    %v1903 = vadd.f32 %v1893, %v1901
    %v1904 = vtanh.pop %v1903
    %1906 = vrot.lane.b32.xlu0 %v1904, 64
    %v1907 = vpop.permute.xlu0 %1906
    %v1909 = vmul.f32 %v1891, %v1907
    %1911 = vrot.lane.b32.xlu0 %v1885, 32
    %v1912 = vpop.permute.xlu0 %1911
    %1914 = vst.msk [vmem:[#allocation2] sm:$0x3] %vm570, %v1912
    %1916 = vrot.lane.b32.xlu0 %v1909, 32
    %v1917 = vpop.permute.xlu0 %1916
    %1919 = vst.msk [vmem:[#allocation3 + $0xe] sm:$0x3] %vm570, %v1917
    %1920 = vrot.lane.b32.xlu0 %v1909, 64
    %v1921 = vpop.permute.xlu0 %1920
    %v1923 = vsel %vm338, %v1912, %v1921
    %v1925 = vsel %vm438, %v1923, 0
    %1927 = vmatprep.subr.mxu0 %v1771
    %1928 = vmatpush1.msra.mxu0 %v1770
    %1929 = vmatprep.subr.mxu0 %v1773
    %1930 = vmatpush1.msra.mxu0 %v1772
    %1931 = vmatprep.subr.mxu0 %v1775
    %1932 = vmatpush1.msra.mxu0 %v1774
    %1933 = vmatprep.subr.mxu0 %v1777
    %1934 = vmatpush1.msra.mxu0 %v1776
    %1935 = vmatprep.subr.mxu0 %v1779
    %1936 = vmatpush1.msra.mxu0 %v1778
    %1937 = vmatprep.subr.mxu0 %v1781
    %1938 = vmatpush1.msra.mxu0 %v1780
    %1939 = vmatprep.subr.mxu0 %v1783
    %1940 = vmatpush1.msra.mxu0 %v1782
    %1941 = vmatprep.subr.mxu0 %v1785
    %1942 = vmatpush1.msra.mxu0 %v1784
    %1943 = vmatprep.subr.mxu0 0.0
    %1944 = vmatpush1.msra.mxu0 0.0
    %1945 = vmatprep.subr.mxu0 0.0
    %1946 = vmatpush1.msra.mxu0 0.0
    %1947 = vmatprep.subr.mxu0 0.0
    %1948 = vmatpush1.msra.mxu0 0.0
    %1949 = vmatprep.subr.mxu0 0.0
    %1950 = vmatpush1.msra.mxu0 0.0
    %1951 = vmatprep.subr.mxu0 0.0
    %1952 = vmatpush1.msra.mxu0 0.0
    %1953 = vmatprep.subr.mxu0 0.0
    %1954 = vmatpush1.msra.mxu0 0.0
    %1955 = vmatprep.subr.mxu0 0.0
    %1956 = vmatpush1.msra.mxu0 0.0
    %1957 = vmatprep.subr.mxu0 0.0
    %1958 = vmatpush1.msra.mxu0 0.0
    %1959 = vmatprep.subr.mxu0 0.0
    %1960 = vmatpush1.msra.mxu0 0.0
    %1961 = vmatprep.subr.mxu0 0.0
    %1962 = vmatpush1.msra.mxu0 0.0
    %1963 = vmatprep.subr.mxu0 0.0
    %1964 = vmatpush1.msra.mxu0 0.0
    %1965 = vmatprep.subr.mxu0 0.0
    %1966 = vmatpush1.msra.mxu0 0.0
    %1967 = vmatprep.subr.mxu0 0.0
    %1968 = vmatpush1.msra.mxu0 0.0
    %1969 = vmatprep.subr.mxu0 0.0
    %1970 = vmatpush1.msra.mxu0 0.0
    %1971 = vmatprep.subr.mxu0 0.0
    %1972 = vmatpush1.msra.mxu0 0.0
    %1973 = vmatprep.subr.mxu0 0.0
    %1974 = vmatpush1.msra.mxu0 0.0
    %1975 = vmatprep.subr.mxu0 0.0
    %1976 = vmatpush1.msra.mxu0 0.0
    %1977 = vmatprep.subr.mxu0 0.0
    %1978 = vmatpush1.msra.mxu0 0.0
    %1979 = vmatprep.subr.mxu0 0.0
    %1980 = vmatpush1.msra.mxu0 0.0
    %1981 = vmatprep.subr.mxu0 0.0
    %1982 = vmatpush1.msra.mxu0 0.0
    %1983 = vmatprep.subr.mxu0 0.0
    %1984 = vmatpush1.msra.mxu0 0.0
    %1985 = vmatprep.subr.mxu0 0.0
    %1986 = vmatpush1.msra.mxu0 0.0
    %1987 = vmatprep.subr.mxu0 0.0
    %1988 = vmatpush1.msra.mxu0 0.0
    %1989 = vmatprep.subr.mxu0 0.0
    %1990 = vmatpush1.msra.mxu0 0.0
    %1991 = vmatprep.mubr.f32.mxu0 0.0
    %1992 = vmatmul.mubr.f32.gmra.mrb[0].mxu0 %v1925
    %v1993 = vpop.f32.mrb[0].mxu0
    %v1994 = vadd.f32 0.0, %v1993
    %v1995 = vpop.f32.mrb[0].mxu0
    %v1996 = vadd.f32 0.0, %v1995
    %1997 = vdwg.mxu0
    %v1999 = vrot.slane %v1766, 2
    %v2001 = vadd.f32 %v1994, %v1999
    %v2002 = vrot.slane %v1769, 4
    %v2004 = vadd.f32 %v1996, %v2002
    %v2005 = vxor.u32 %v2001, 2147483648
    %v2006 = vmul.f32 %v2005, 1.442695
    %v2007 = vpow.pop %v2006
    %v2008 = vadd.f32 %v2007, 1.0
    %v2009 = vrcp.pop %v2008
    %v2010 = vmul.f32 1.0, %v2009
    %v2011 = vtanh.pop %v2001
    %v2012 = vmul.f32 %v2010, %v1879
    %2014 = vrot.lane.b32.xlu0 %v2011, 64
    %v2015 = vpop.permute.xlu0 %2014
    %v2017 = vmul.f32 %v2010, %v2015
    %2019 = vrot.lane.b32.xlu0 %v2017, 32
    %v2020 = vpop.permute.xlu0 %2019
    %v2022 = vadd.f32 %v2012, %v2020
    %v2023 = vtanh.pop %v2022
    %2025 = vrot.lane.b32.xlu0 %v2023, 64
    %v2026 = vpop.permute.xlu0 %2025
    %v2028 = vmul.f32 %v2010, %v2026
    %v2029 = vxor.u32 %v2004, 2147483648
    %v2030 = vmul.f32 %v2029, 1.442695
    %v2031 = vpow.pop %v2030
    %v2032 = vadd.f32 %v2031, 1.0
    %v2033 = vrcp.pop %v2032
    %v2034 = vmul.f32 1.0, %v2033
    %v2035 = vtanh.pop %v2004
    %v2036 = vmul.f32 %v2034, %v1903
    %2038 = vrot.lane.b32.xlu0 %v2035, 64
    %v2039 = vpop.permute.xlu0 %2038
    %v2041 = vmul.f32 %v2034, %v2039
    %2043 = vrot.lane.b32.xlu0 %v2041, 32
    %v2044 = vpop.permute.xlu0 %2043
    %v2046 = vadd.f32 %v2036, %v2044
    %v2047 = vtanh.pop %v2046
    %2049 = vrot.lane.b32.xlu0 %v2047, 64
    %v2050 = vpop.permute.xlu0 %2049
    %v2052 = vmul.f32 %v2034, %v2050
    %2054 = vrot.lane.b32.xlu0 %v2028, 32
    %v2055 = vpop.permute.xlu0 %2054
    %2057 = vst.msk [vmem:[#allocation2 + $0x2] sm:$0x3] %vm570, %v2055
    %2059 = vrot.lane.b32.xlu0 %v2052, 32
    %v2060 = vpop.permute.xlu0 %2059
    %2062 = vst.msk [vmem:[#allocation3 + $0xc] sm:$0x3] %vm570, %v2060
    %2063 = vrot.lane.b32.xlu0 %v2052, 64
    %v2064 = vpop.permute.xlu0 %2063
    %v2066 = vsel %vm338, %v2055, %v2064
    %v2068 = vsel %vm438, %v2066, 0
    %2070 = vmatprep.subr.mxu0 %v1771
    %2071 = vmatpush1.msra.mxu0 %v1770
    %2072 = vmatprep.subr.mxu0 %v1773
    %2073 = vmatpush1.msra.mxu0 %v1772
    %2074 = vmatprep.subr.mxu0 %v1775
    %2075 = vmatpush1.msra.mxu0 %v1774
    %2076 = vmatprep.subr.mxu0 %v1777
    %2077 = vmatpush1.msra.mxu0 %v1776
    %2078 = vmatprep.subr.mxu0 %v1779
    %2079 = vmatpush1.msra.mxu0 %v1778
    %2080 = vmatprep.subr.mxu0 %v1781
    %2081 = vmatpush1.msra.mxu0 %v1780
    %2082 = vmatprep.subr.mxu0 %v1783
    %2083 = vmatpush1.msra.mxu0 %v1782
    %2084 = vmatprep.subr.mxu0 %v1785
    %2085 = vmatpush1.msra.mxu0 %v1784
    %2086 = vmatprep.subr.mxu0 0.0
    %2087 = vmatpush1.msra.mxu0 0.0
    %2088 = vmatprep.subr.mxu0 0.0
    %2089 = vmatpush1.msra.mxu0 0.0
    %2090 = vmatprep.subr.mxu0 0.0
    %2091 = vmatpush1.msra.mxu0 0.0
    %2092 = vmatprep.subr.mxu0 0.0
    %2093 = vmatpush1.msra.mxu0 0.0
    %2094 = vmatprep.subr.mxu0 0.0
    %2095 = vmatpush1.msra.mxu0 0.0
    %2096 = vmatprep.subr.mxu0 0.0
    %2097 = vmatpush1.msra.mxu0 0.0
    %2098 = vmatprep.subr.mxu0 0.0
    %2099 = vmatpush1.msra.mxu0 0.0
    %2100 = vmatprep.subr.mxu0 0.0
    %2101 = vmatpush1.msra.mxu0 0.0
    %2102 = vmatprep.subr.mxu0 0.0
    %2103 = vmatpush1.msra.mxu0 0.0
    %2104 = vmatprep.subr.mxu0 0.0
    %2105 = vmatpush1.msra.mxu0 0.0
    %2106 = vmatprep.subr.mxu0 0.0
    %2107 = vmatpush1.msra.mxu0 0.0
    %2108 = vmatprep.subr.mxu0 0.0
    %2109 = vmatpush1.msra.mxu0 0.0
    %2110 = vmatprep.subr.mxu0 0.0
    %2111 = vmatpush1.msra.mxu0 0.0
    %2112 = vmatprep.subr.mxu0 0.0
    %2113 = vmatpush1.msra.mxu0 0.0
    %2114 = vmatprep.subr.mxu0 0.0
    %2115 = vmatpush1.msra.mxu0 0.0
    %2116 = vmatprep.subr.mxu0 0.0
    %2117 = vmatpush1.msra.mxu0 0.0
    %2118 = vmatprep.subr.mxu0 0.0
    %2119 = vmatpush1.msra.mxu0 0.0
    %2120 = vmatprep.subr.mxu0 0.0
    %2121 = vmatpush1.msra.mxu0 0.0
    %2122 = vmatprep.subr.mxu0 0.0
    %2123 = vmatpush1.msra.mxu0 0.0
    %2124 = vmatprep.subr.mxu0 0.0
    %2125 = vmatpush1.msra.mxu0 0.0
    %2126 = vmatprep.subr.mxu0 0.0
    %2127 = vmatpush1.msra.mxu0 0.0
    %2128 = vmatprep.subr.mxu0 0.0
    %2129 = vmatpush1.msra.mxu0 0.0
    %2130 = vmatprep.subr.mxu0 0.0
    %2131 = vmatpush1.msra.mxu0 0.0
    %2132 = vmatprep.subr.mxu0 0.0
    %2133 = vmatpush1.msra.mxu0 0.0
    %2134 = vmatprep.mubr.f32.mxu0 0.0
    %2135 = vmatmul.mubr.f32.gmra.mrb[0].mxu0 %v2068
    %v2136 = vpop.f32.mrb[0].mxu0
    %v2137 = vadd.f32 0.0, %v2136
    %v2138 = vpop.f32.mrb[0].mxu0
    %v2139 = vadd.f32 0.0, %v2138
    %2140 = vdwg.mxu0
    %v2141 = vrot.slane %v1766, 4
    %v2143 = vadd.f32 %v2137, %v2141
    %v2144 = vrot.slane %v1769, 2
    %v2146 = vadd.f32 %v2139, %v2144
    %v2147 = vxor.u32 %v2143, 2147483648
    %v2148 = vmul.f32 %v2147, 1.442695
    %v2149 = vpow.pop %v2148
    %v2150 = vadd.f32 %v2149, 1.0
    %v2151 = vrcp.pop %v2150
    %v2152 = vmul.f32 1.0, %v2151
    %v2153 = vtanh.pop %v2143
    %v2154 = vmul.f32 %v2152, %v2022
    %2156 = vrot.lane.b32.xlu0 %v2153, 64
    %v2157 = vpop.permute.xlu0 %2156
    %v2159 = vmul.f32 %v2152, %v2157
    %2161 = vrot.lane.b32.xlu0 %v2159, 32
    %v2162 = vpop.permute.xlu0 %2161
    %v2164 = vadd.f32 %v2154, %v2162
    %v2165 = vtanh.pop %v2164
    %2167 = vrot.lane.b32.xlu0 %v2165, 64
    %v2168 = vpop.permute.xlu0 %2167
    %v2170 = vmul.f32 %v2152, %v2168
    %v2171 = vxor.u32 %v2146, 2147483648
    %v2172 = vmul.f32 %v2171, 1.442695
    %v2173 = vpow.pop %v2172
    %v2174 = vadd.f32 %v2173, 1.0
    %v2175 = vrcp.pop %v2174
    %v2176 = vmul.f32 1.0, %v2175
    %v2177 = vtanh.pop %v2146
    %v2178 = vmul.f32 %v2176, %v2046
    %2180 = vrot.lane.b32.xlu0 %v2177, 64
    %v2181 = vpop.permute.xlu0 %2180
    %v2183 = vmul.f32 %v2176, %v2181
    %2185 = vrot.lane.b32.xlu0 %v2183, 32
    %v2186 = vpop.permute.xlu0 %2185
    %v2188 = vadd.f32 %v2178, %v2186
    %v2189 = vtanh.pop %v2188
    %2191 = vrot.lane.b32.xlu0 %v2189, 64
    %v2192 = vpop.permute.xlu0 %2191
    %v2194 = vmul.f32 %v2176, %v2192
    %2196 = vrot.lane.b32.xlu0 %v2170, 32
    %v2197 = vpop.permute.xlu0 %2196
    %2199 = vst.msk [vmem:[#allocation2 + $0x4] sm:$0x3] %vm570, %v2197
    %2201 = vrot.lane.b32.xlu0 %v2194, 32
    %v2202 = vpop.permute.xlu0 %2201
    %2204 = vst.msk [vmem:[#allocation3 + $0xa] sm:$0x3] %vm570, %v2202
    %2205 = vrot.lane.b32.xlu0 %v2194, 64
    %v2206 = vpop.permute.xlu0 %2205
    %v2208 = vsel %vm338, %v2197, %v2206
    %v2210 = vsel %vm438, %v2208, 0
    %2212 = vmatprep.subr.mxu0 %v1771
    %2213 = vmatpush1.msra.mxu0 %v1770
    %2214 = vmatprep.subr.mxu0 %v1773
    %2215 = vmatpush1.msra.mxu0 %v1772
    %2216 = vmatprep.subr.mxu0 %v1775
    %2217 = vmatpush1.msra.mxu0 %v1774
    %2218 = vmatprep.subr.mxu0 %v1777
    %2219 = vmatpush1.msra.mxu0 %v1776
    %2220 = vmatprep.subr.mxu0 %v1779
    %2221 = vmatpush1.msra.mxu0 %v1778
    %2222 = vmatprep.subr.mxu0 %v1781
    %2223 = vmatpush1.msra.mxu0 %v1780
    %2224 = vmatprep.subr.mxu0 %v1783
    %2225 = vmatpush1.msra.mxu0 %v1782
    %2226 = vmatprep.subr.mxu0 %v1785
    %2227 = vmatpush1.msra.mxu0 %v1784
    %2228 = vmatprep.subr.mxu0 0.0
    %2229 = vmatpush1.msra.mxu0 0.0
    %2230 = vmatprep.subr.mxu0 0.0
    %2231 = vmatpush1.msra.mxu0 0.0
    %2232 = vmatprep.subr.mxu0 0.0
    %2233 = vmatpush1.msra.mxu0 0.0
    %2234 = vmatprep.subr.mxu0 0.0
    %2235 = vmatpush1.msra.mxu0 0.0
    %2236 = vmatprep.subr.mxu0 0.0
    %2237 = vmatpush1.msra.mxu0 0.0
    %2238 = vmatprep.subr.mxu0 0.0
    %2239 = vmatpush1.msra.mxu0 0.0
    %2240 = vmatprep.subr.mxu0 0.0
    %2241 = vmatpush1.msra.mxu0 0.0
    %2242 = vmatprep.subr.mxu0 0.0
    %2243 = vmatpush1.msra.mxu0 0.0
    %2244 = vmatprep.subr.mxu0 0.0
    %2245 = vmatpush1.msra.mxu0 0.0
    %2246 = vmatprep.subr.mxu0 0.0
    %2247 = vmatpush1.msra.mxu0 0.0
    %2248 = vmatprep.subr.mxu0 0.0
    %2249 = vmatpush1.msra.mxu0 0.0
    %2250 = vmatprep.subr.mxu0 0.0
    %2251 = vmatpush1.msra.mxu0 0.0
    %2252 = vmatprep.subr.mxu0 0.0
    %2253 = vmatpush1.msra.mxu0 0.0
    %2254 = vmatprep.subr.mxu0 0.0
    %2255 = vmatpush1.msra.mxu0 0.0
    %2256 = vmatprep.subr.mxu0 0.0
    %2257 = vmatpush1.msra.mxu0 0.0
    %2258 = vmatprep.subr.mxu0 0.0
    %2259 = vmatpush1.msra.mxu0 0.0
    %2260 = vmatprep.subr.mxu0 0.0
    %2261 = vmatpush1.msra.mxu0 0.0
    %2262 = vmatprep.subr.mxu0 0.0
    %2263 = vmatpush1.msra.mxu0 0.0
    %2264 = vmatprep.subr.mxu0 0.0
    %2265 = vmatpush1.msra.mxu0 0.0
    %2266 = vmatprep.subr.mxu0 0.0
    %2267 = vmatpush1.msra.mxu0 0.0
    %2268 = vmatprep.subr.mxu0 0.0
    %2269 = vmatpush1.msra.mxu0 0.0
    %2270 = vmatprep.subr.mxu0 0.0
    %2271 = vmatpush1.msra.mxu0 0.0
    %2272 = vmatprep.subr.mxu0 0.0
    %2273 = vmatpush1.msra.mxu0 0.0
    %2274 = vmatprep.subr.mxu0 0.0
    %2275 = vmatpush1.msra.mxu0 0.0
    %2276 = vmatprep.mubr.f32.mxu0 0.0
    %2277 = vmatmul.mubr.f32.gmra.mrb[0].mxu0 %v2210
    %v2278 = vpop.f32.mrb[0].mxu0
    %v2279 = vadd.f32 0.0, %v2278
    %v2280 = vpop.f32.mrb[0].mxu0
    %v2281 = vadd.f32 0.0, %v2280
    %2282 = vdwg.mxu0
    %v2283 = vrot.slane %v1766, 6
    %v2285 = vadd.f32 %v2279, %v2283
    %v2286 = vadd.f32 %v2281, %v1769
    %v2287 = vxor.u32 %v2285, 2147483648
    %v2288 = vmul.f32 %v2287, 1.442695
    %v2289 = vpow.pop %v2288
    %v2290 = vadd.f32 %v2289, 1.0
    %v2291 = vrcp.pop %v2290
    %v2292 = vmul.f32 1.0, %v2291
    %v2293 = vtanh.pop %v2285
    %v2294 = vmul.f32 %v2292, %v2164
    %2296 = vrot.lane.b32.xlu0 %v2293, 64
    %v2297 = vpop.permute.xlu0 %2296
    %v2299 = vmul.f32 %v2292, %v2297
    %2301 = vrot.lane.b32.xlu0 %v2299, 32
    %v2302 = vpop.permute.xlu0 %2301
    %v2304 = vadd.f32 %v2294, %v2302
    %v2305 = vtanh.pop %v2304
    %2307 = vrot.lane.b32.xlu0 %v2305, 64
    %v2308 = vpop.permute.xlu0 %2307
    %v2310 = vmul.f32 %v2292, %v2308
    %v2311 = vxor.u32 %v2286, 2147483648
    %v2312 = vmul.f32 %v2311, 1.442695
    %v2313 = vpow.pop %v2312
    %v2314 = vadd.f32 %v2313, 1.0
    %v2315 = vrcp.pop %v2314
    %v2316 = vmul.f32 1.0, %v2315
    %v2317 = vtanh.pop %v2286
    %v2318 = vmul.f32 %v2316, %v2188
    %2320 = vrot.lane.b32.xlu0 %v2317, 64
    %v2321 = vpop.permute.xlu0 %2320
    %v2323 = vmul.f32 %v2316, %v2321
    %2325 = vrot.lane.b32.xlu0 %v2323, 32
    %v2326 = vpop.permute.xlu0 %2325
    %v2328 = vadd.f32 %v2318, %v2326
    %v2329 = vtanh.pop %v2328
    %2331 = vrot.lane.b32.xlu0 %v2329, 64
    %v2332 = vpop.permute.xlu0 %2331
    %v2334 = vmul.f32 %v2316, %v2332
    %2336 = vrot.lane.b32.xlu0 %v2310, 32
    %v2337 = vpop.permute.xlu0 %2336
    %2339 = vst.msk [vmem:[#allocation2 + $0x6] sm:$0x3] %vm570, %v2337
    %2341 = vrot.lane.b32.xlu0 %v2334, 32
    %v2342 = vpop.permute.xlu0 %2341
    %2344 = vst.msk [vmem:[#allocation3 + $0x8] sm:$0x3] %vm570, %v2342
    %2345 = vrot.lane.b32.xlu0 %v2334, 64
    %v2346 = vpop.permute.xlu0 %2345
    %v2348 = vsel %vm338, %v2337, %v2346
    %v2350 = vsel %vm438, %v2348, 0
    %2352 = vmatprep.subr.mxu0 %v1771
    %2353 = vmatpush1.msra.mxu0 %v1770
    %2354 = vmatprep.subr.mxu0 %v1773
    %2355 = vmatpush1.msra.mxu0 %v1772
    %2356 = vmatprep.subr.mxu0 %v1775
    %2357 = vmatpush1.msra.mxu0 %v1774
    %2358 = vmatprep.subr.mxu0 %v1777
    %2359 = vmatpush1.msra.mxu0 %v1776
    %2360 = vmatprep.subr.mxu0 %v1779
    %2361 = vmatpush1.msra.mxu0 %v1778
    %2362 = vmatprep.subr.mxu0 %v1781
    %2363 = vmatpush1.msra.mxu0 %v1780
    %2364 = vmatprep.subr.mxu0 %v1783
    %2365 = vmatpush1.msra.mxu0 %v1782
    %2366 = vmatprep.subr.mxu0 %v1785
    %2367 = vmatpush1.msra.mxu0 %v1784
    %2368 = vmatprep.subr.mxu0 0.0
    %2369 = vmatpush1.msra.mxu0 0.0
    %2370 = vmatprep.subr.mxu0 0.0
    %2371 = vmatpush1.msra.mxu0 0.0
    %2372 = vmatprep.subr.mxu0 0.0
    %2373 = vmatpush1.msra.mxu0 0.0
    %2374 = vmatprep.subr.mxu0 0.0
    %2375 = vmatpush1.msra.mxu0 0.0
    %2376 = vmatprep.subr.mxu0 0.0
    %2377 = vmatpush1.msra.mxu0 0.0
    %2378 = vmatprep.subr.mxu0 0.0
    %2379 = vmatpush1.msra.mxu0 0.0
    %2380 = vmatprep.subr.mxu0 0.0
    %2381 = vmatpush1.msra.mxu0 0.0
    %2382 = vmatprep.subr.mxu0 0.0
    %2383 = vmatpush1.msra.mxu0 0.0
    %2384 = vmatprep.subr.mxu0 0.0
    %2385 = vmatpush1.msra.mxu0 0.0
    %2386 = vmatprep.subr.mxu0 0.0
    %2387 = vmatpush1.msra.mxu0 0.0
    %2388 = vmatprep.subr.mxu0 0.0
    %2389 = vmatpush1.msra.mxu0 0.0
    %2390 = vmatprep.subr.mxu0 0.0
    %2391 = vmatpush1.msra.mxu0 0.0
    %2392 = vmatprep.subr.mxu0 0.0
    %2393 = vmatpush1.msra.mxu0 0.0
    %2394 = vmatprep.subr.mxu0 0.0
    %2395 = vmatpush1.msra.mxu0 0.0
    %2396 = vmatprep.subr.mxu0 0.0
    %2397 = vmatpush1.msra.mxu0 0.0
    %2398 = vmatprep.subr.mxu0 0.0
    %2399 = vmatpush1.msra.mxu0 0.0
    %2400 = vmatprep.subr.mxu0 0.0
    %2401 = vmatpush1.msra.mxu0 0.0
    %2402 = vmatprep.subr.mxu0 0.0
    %2403 = vmatpush1.msra.mxu0 0.0
    %2404 = vmatprep.subr.mxu0 0.0
    %2405 = vmatpush1.msra.mxu0 0.0
    %2406 = vmatprep.subr.mxu0 0.0
    %2407 = vmatpush1.msra.mxu0 0.0
    %2408 = vmatprep.subr.mxu0 0.0
    %2409 = vmatpush1.msra.mxu0 0.0
    %2410 = vmatprep.subr.mxu0 0.0
    %2411 = vmatpush1.msra.mxu0 0.0
    %2412 = vmatprep.subr.mxu0 0.0
    %2413 = vmatpush1.msra.mxu0 0.0
    %2414 = vmatprep.subr.mxu0 0.0
    %2415 = vmatpush1.msra.mxu0 0.0
    %2416 = vmatprep.mubr.f32.mxu0 0.0
    %2417 = vmatmul.mubr.f32.gmra.mrb[0].mxu0 %v2350
    %v2418 = vpop.f32.mrb[0].mxu0
    %v2419 = vadd.f32 0.0, %v2418
    %v2420 = vpop.f32.mrb[0].mxu0
    %v2421 = vadd.f32 0.0, %v2420
    %2422 = vdwg.mxu0
    %v2423 = vadd.f32 %v2419, %v1768
    %v2425 = vrot.slane %v1767, 6
    %v2427 = vadd.f32 %v2421, %v2425
    %v2428 = vxor.u32 %v2423, 2147483648
    %v2429 = vmul.f32 %v2428, 1.442695
    %v2430 = vpow.pop %v2429
    %v2431 = vadd.f32 %v2430, 1.0
    %v2432 = vrcp.pop %v2431
    %v2433 = vmul.f32 1.0, %v2432
    %v2434 = vtanh.pop %v2423
    %v2435 = vmul.f32 %v2433, %v2304
    %2437 = vrot.lane.b32.xlu0 %v2434, 64
    %v2438 = vpop.permute.xlu0 %2437
    %v2440 = vmul.f32 %v2433, %v2438
    %2442 = vrot.lane.b32.xlu0 %v2440, 32
    %v2443 = vpop.permute.xlu0 %2442
    %v2445 = vadd.f32 %v2435, %v2443
    %v2446 = vtanh.pop %v2445
    %2448 = vrot.lane.b32.xlu0 %v2446, 64
    %v2449 = vpop.permute.xlu0 %2448
    %v2451 = vmul.f32 %v2433, %v2449
    %v2452 = vxor.u32 %v2427, 2147483648
    %v2453 = vmul.f32 %v2452, 1.442695
    %v2454 = vpow.pop %v2453
    %v2455 = vadd.f32 %v2454, 1.0
    %v2456 = vrcp.pop %v2455
    %v2457 = vmul.f32 1.0, %v2456
    %v2458 = vtanh.pop %v2427
    %v2459 = vmul.f32 %v2457, %v2328
    %2461 = vrot.lane.b32.xlu0 %v2458, 64
    %v2462 = vpop.permute.xlu0 %2461
    %v2464 = vmul.f32 %v2457, %v2462
    %2466 = vrot.lane.b32.xlu0 %v2464, 32
    %v2467 = vpop.permute.xlu0 %2466
    %v2469 = vadd.f32 %v2459, %v2467
    %v2470 = vtanh.pop %v2469
    %2472 = vrot.lane.b32.xlu0 %v2470, 64
    %v2473 = vpop.permute.xlu0 %2472
    %v2475 = vmul.f32 %v2457, %v2473
    %2477 = vrot.lane.b32.xlu0 %v2451, 32
    %v2478 = vpop.permute.xlu0 %2477
    %2480 = vst.msk [vmem:[#allocation2 + $0x8] sm:$0x3] %vm570, %v2478
    %2482 = vrot.lane.b32.xlu0 %v2475, 32
    %v2483 = vpop.permute.xlu0 %2482
    %2485 = vst.msk [vmem:[#allocation3 + $0x6] sm:$0x3] %vm570, %v2483
    %2486 = vrot.lane.b32.xlu0 %v2475, 64
    %v2487 = vpop.permute.xlu0 %2486
    %v2489 = vsel %vm338, %v2478, %v2487
    %v2491 = vsel %vm438, %v2489, 0
    %2493 = vmatprep.subr.mxu0 %v1771
    %2494 = vmatpush1.msra.mxu0 %v1770
    %2495 = vmatprep.subr.mxu0 %v1773
    %2496 = vmatpush1.msra.mxu0 %v1772
    %2497 = vmatprep.subr.mxu0 %v1775
    %2498 = vmatpush1.msra.mxu0 %v1774
    %2499 = vmatprep.subr.mxu0 %v1777
    %2500 = vmatpush1.msra.mxu0 %v1776
    %2501 = vmatprep.subr.mxu0 %v1779
    %2502 = vmatpush1.msra.mxu0 %v1778
    %2503 = vmatprep.subr.mxu0 %v1781
    %2504 = vmatpush1.msra.mxu0 %v1780
    %2505 = vmatprep.subr.mxu0 %v1783
    %2506 = vmatpush1.msra.mxu0 %v1782
    %2507 = vmatprep.subr.mxu0 %v1785
    %2508 = vmatpush1.msra.mxu0 %v1784
    %2509 = vmatprep.subr.mxu0 0.0
    %2510 = vmatpush1.msra.mxu0 0.0
    %2511 = vmatprep.subr.mxu0 0.0
    %2512 = vmatpush1.msra.mxu0 0.0
    %2513 = vmatprep.subr.mxu0 0.0
    %2514 = vmatpush1.msra.mxu0 0.0
    %2515 = vmatprep.subr.mxu0 0.0
    %2516 = vmatpush1.msra.mxu0 0.0
    %2517 = vmatprep.subr.mxu0 0.0
    %2518 = vmatpush1.msra.mxu0 0.0
    %2519 = vmatprep.subr.mxu0 0.0
    %2520 = vmatpush1.msra.mxu0 0.0
    %2521 = vmatprep.subr.mxu0 0.0
    %2522 = vmatpush1.msra.mxu0 0.0
    %2523 = vmatprep.subr.mxu0 0.0
    %2524 = vmatpush1.msra.mxu0 0.0
    %2525 = vmatprep.subr.mxu0 0.0
    %2526 = vmatpush1.msra.mxu0 0.0
    %2527 = vmatprep.subr.mxu0 0.0
    %2528 = vmatpush1.msra.mxu0 0.0
    %2529 = vmatprep.subr.mxu0 0.0
    %2530 = vmatpush1.msra.mxu0 0.0
    %2531 = vmatprep.subr.mxu0 0.0
    %2532 = vmatpush1.msra.mxu0 0.0
    %2533 = vmatprep.subr.mxu0 0.0
    %2534 = vmatpush1.msra.mxu0 0.0
    %2535 = vmatprep.subr.mxu0 0.0
    %2536 = vmatpush1.msra.mxu0 0.0
    %2537 = vmatprep.subr.mxu0 0.0
    %2538 = vmatpush1.msra.mxu0 0.0
    %2539 = vmatprep.subr.mxu0 0.0
    %2540 = vmatpush1.msra.mxu0 0.0
    %2541 = vmatprep.subr.mxu0 0.0
    %2542 = vmatpush1.msra.mxu0 0.0
    %2543 = vmatprep.subr.mxu0 0.0
    %2544 = vmatpush1.msra.mxu0 0.0
    %2545 = vmatprep.subr.mxu0 0.0
    %2546 = vmatpush1.msra.mxu0 0.0
    %2547 = vmatprep.subr.mxu0 0.0
    %2548 = vmatpush1.msra.mxu0 0.0
    %2549 = vmatprep.subr.mxu0 0.0
    %2550 = vmatpush1.msra.mxu0 0.0
    %2551 = vmatprep.subr.mxu0 0.0
    %2552 = vmatpush1.msra.mxu0 0.0
    %2553 = vmatprep.subr.mxu0 0.0
    %2554 = vmatpush1.msra.mxu0 0.0
    %2555 = vmatprep.subr.mxu0 0.0
    %2556 = vmatpush1.msra.mxu0 0.0
    %2557 = vmatprep.mubr.f32.mxu0 0.0
    %2558 = vmatmul.mubr.f32.gmra.mrb[0].mxu0 %v2491
    %v2559 = vpop.f32.mrb[0].mxu0
    %v2560 = vadd.f32 0.0, %v2559
    %v2561 = vpop.f32.mrb[0].mxu0
    %v2562 = vadd.f32 0.0, %v2561
    %2563 = vdwg.mxu0
    %v2565 = vrot.slane %v1768, 2
    %v2567 = vadd.f32 %v2560, %v2565
    %v2568 = vrot.slane %v1767, 4
    %v2570 = vadd.f32 %v2562, %v2568
    %v2571 = vxor.u32 %v2567, 2147483648
    %v2572 = vmul.f32 %v2571, 1.442695
    %v2573 = vpow.pop %v2572
    %v2574 = vadd.f32 %v2573, 1.0
    %v2575 = vrcp.pop %v2574
    %v2576 = vmul.f32 1.0, %v2575
    %v2577 = vtanh.pop %v2567
    %v2578 = vmul.f32 %v2576, %v2445
    %2580 = vrot.lane.b32.xlu0 %v2577, 64
    %v2581 = vpop.permute.xlu0 %2580
    %v2583 = vmul.f32 %v2576, %v2581
    %2585 = vrot.lane.b32.xlu0 %v2583, 32
    %v2586 = vpop.permute.xlu0 %2585
    %v2588 = vadd.f32 %v2578, %v2586
    %v2589 = vtanh.pop %v2588
    %2591 = vrot.lane.b32.xlu0 %v2589, 64
    %v2592 = vpop.permute.xlu0 %2591
    %v2594 = vmul.f32 %v2576, %v2592
    %v2595 = vxor.u32 %v2570, 2147483648
    %v2596 = vmul.f32 %v2595, 1.442695
    %v2597 = vpow.pop %v2596
    %v2598 = vadd.f32 %v2597, 1.0
    %v2599 = vrcp.pop %v2598
    %v2600 = vmul.f32 1.0, %v2599
    %v2601 = vtanh.pop %v2570
    %v2602 = vmul.f32 %v2600, %v2469
    %2604 = vrot.lane.b32.xlu0 %v2601, 64
    %v2605 = vpop.permute.xlu0 %2604
    %v2607 = vmul.f32 %v2600, %v2605
    %2609 = vrot.lane.b32.xlu0 %v2607, 32
    %v2610 = vpop.permute.xlu0 %2609
    %v2612 = vadd.f32 %v2602, %v2610
    %v2613 = vtanh.pop %v2612
    %2615 = vrot.lane.b32.xlu0 %v2613, 64
    %v2616 = vpop.permute.xlu0 %2615
    %v2618 = vmul.f32 %v2600, %v2616
    %2620 = vrot.lane.b32.xlu0 %v2594, 32
    %v2621 = vpop.permute.xlu0 %2620
    %2623 = vst.msk [vmem:[#allocation2 + $0xa] sm:$0x3] %vm570, %v2621
    %2625 = vrot.lane.b32.xlu0 %v2618, 32
    %v2626 = vpop.permute.xlu0 %2625
    %2628 = vst.msk [vmem:[#allocation3 + $0x4] sm:$0x3] %vm570, %v2626
    %2629 = vrot.lane.b32.xlu0 %v2618, 64
    %v2630 = vpop.permute.xlu0 %2629
    %v2632 = vsel %vm338, %v2621, %v2630
    %v2634 = vsel %vm438, %v2632, 0
    %2636 = vmatprep.subr.mxu0 %v1771
    %2637 = vmatpush1.msra.mxu0 %v1770
    %2638 = vmatprep.subr.mxu0 %v1773
    %2639 = vmatpush1.msra.mxu0 %v1772
    %2640 = vmatprep.subr.mxu0 %v1775
    %2641 = vmatpush1.msra.mxu0 %v1774
    %2642 = vmatprep.subr.mxu0 %v1777
    %2643 = vmatpush1.msra.mxu0 %v1776
    %2644 = vmatprep.subr.mxu0 %v1779
    %2645 = vmatpush1.msra.mxu0 %v1778
    %2646 = vmatprep.subr.mxu0 %v1781
    %2647 = vmatpush1.msra.mxu0 %v1780
    %2648 = vmatprep.subr.mxu0 %v1783
    %2649 = vmatpush1.msra.mxu0 %v1782
    %2650 = vmatprep.subr.mxu0 %v1785
    %2651 = vmatpush1.msra.mxu0 %v1784
    %2652 = vmatprep.subr.mxu0 0.0
    %2653 = vmatpush1.msra.mxu0 0.0
    %2654 = vmatprep.subr.mxu0 0.0
    %2655 = vmatpush1.msra.mxu0 0.0
    %2656 = vmatprep.subr.mxu0 0.0
    %2657 = vmatpush1.msra.mxu0 0.0
    %2658 = vmatprep.subr.mxu0 0.0
    %2659 = vmatpush1.msra.mxu0 0.0
    %2660 = vmatprep.subr.mxu0 0.0
    %2661 = vmatpush1.msra.mxu0 0.0
    %2662 = vmatprep.subr.mxu0 0.0
    %2663 = vmatpush1.msra.mxu0 0.0
    %2664 = vmatprep.subr.mxu0 0.0
    %2665 = vmatpush1.msra.mxu0 0.0
    %2666 = vmatprep.subr.mxu0 0.0
    %2667 = vmatpush1.msra.mxu0 0.0
    %2668 = vmatprep.subr.mxu0 0.0
    %2669 = vmatpush1.msra.mxu0 0.0
    %2670 = vmatprep.subr.mxu0 0.0
    %2671 = vmatpush1.msra.mxu0 0.0
    %2672 = vmatprep.subr.mxu0 0.0
    %2673 = vmatpush1.msra.mxu0 0.0
    %2674 = vmatprep.subr.mxu0 0.0
    %2675 = vmatpush1.msra.mxu0 0.0
    %2676 = vmatprep.subr.mxu0 0.0
    %2677 = vmatpush1.msra.mxu0 0.0
    %2678 = vmatprep.subr.mxu0 0.0
    %2679 = vmatpush1.msra.mxu0 0.0
    %2680 = vmatprep.subr.mxu0 0.0
    %2681 = vmatpush1.msra.mxu0 0.0
    %2682 = vmatprep.subr.mxu0 0.0
    %2683 = vmatpush1.msra.mxu0 0.0
    %2684 = vmatprep.subr.mxu0 0.0
    %2685 = vmatpush1.msra.mxu0 0.0
    %2686 = vmatprep.subr.mxu0 0.0
    %2687 = vmatpush1.msra.mxu0 0.0
    %2688 = vmatprep.subr.mxu0 0.0
    %2689 = vmatpush1.msra.mxu0 0.0
    %2690 = vmatprep.subr.mxu0 0.0
    %2691 = vmatpush1.msra.mxu0 0.0
    %2692 = vmatprep.subr.mxu0 0.0
    %2693 = vmatpush1.msra.mxu0 0.0
    %2694 = vmatprep.subr.mxu0 0.0
    %2695 = vmatpush1.msra.mxu0 0.0
    %2696 = vmatprep.subr.mxu0 0.0
    %2697 = vmatpush1.msra.mxu0 0.0
    %2698 = vmatprep.subr.mxu0 0.0
    %2699 = vmatpush1.msra.mxu0 0.0
    %2700 = vmatprep.mubr.f32.mxu0 0.0
    %2701 = vmatmul.mubr.f32.gmra.mrb[0].mxu0 %v2634
    %v2702 = vpop.f32.mrb[0].mxu0
    %v2703 = vadd.f32 0.0, %v2702
    %v2704 = vpop.f32.mrb[0].mxu0
    %v2705 = vadd.f32 0.0, %v2704
    %2706 = vdwg.mxu0
    %v2707 = vrot.slane %v1768, 4
    %v2709 = vadd.f32 %v2703, %v2707
    %v2710 = vrot.slane %v1767, 2
    %v2712 = vadd.f32 %v2705, %v2710
    %v2713 = vxor.u32 %v2709, 2147483648
    %v2714 = vmul.f32 %v2713, 1.442695
    %v2715 = vpow.pop %v2714
    %v2716 = vadd.f32 %v2715, 1.0
    %v2717 = vrcp.pop %v2716
    %v2718 = vmul.f32 1.0, %v2717
    %v2719 = vtanh.pop %v2709
    %v2720 = vmul.f32 %v2718, %v2588
    %2722 = vrot.lane.b32.xlu0 %v2719, 64
    %v2723 = vpop.permute.xlu0 %2722
    %v2725 = vmul.f32 %v2718, %v2723
    %2727 = vrot.lane.b32.xlu0 %v2725, 32
    %v2728 = vpop.permute.xlu0 %2727
    %v2730 = vadd.f32 %v2720, %v2728
    %v2731 = vtanh.pop %v2730
    %2733 = vrot.lane.b32.xlu0 %v2731, 64
    %v2734 = vpop.permute.xlu0 %2733
    %v2736 = vmul.f32 %v2718, %v2734
    %v2737 = vxor.u32 %v2712, 2147483648
    %v2738 = vmul.f32 %v2737, 1.442695
    %v2739 = vpow.pop %v2738
    %v2740 = vadd.f32 %v2739, 1.0
    %v2741 = vrcp.pop %v2740
    %v2742 = vmul.f32 1.0, %v2741
    %v2743 = vtanh.pop %v2712
    %v2744 = vmul.f32 %v2742, %v2612
    %2746 = vrot.lane.b32.xlu0 %v2743, 64
    %v2747 = vpop.permute.xlu0 %2746
    %v2749 = vmul.f32 %v2742, %v2747
    %2751 = vrot.lane.b32.xlu0 %v2749, 32
    %v2752 = vpop.permute.xlu0 %2751
    %v2754 = vadd.f32 %v2744, %v2752
    %v2755 = vtanh.pop %v2754
    %2757 = vrot.lane.b32.xlu0 %v2755, 64
    %v2758 = vpop.permute.xlu0 %2757
    %v2760 = vmul.f32 %v2742, %v2758
    %2762 = vrot.lane.b32.xlu0 %v2736, 32
    %v2763 = vpop.permute.xlu0 %2762
    %2765 = vst.msk [vmem:[#allocation2 + $0xc] sm:$0x3] %vm570, %v2763
    %2767 = vrot.lane.b32.xlu0 %v2760, 32
    %v2768 = vpop.permute.xlu0 %2767
    %2770 = vst.msk [vmem:[#allocation3 + $0x2] sm:$0x3] %vm570, %v2768
    %2771 = vrot.lane.b32.xlu0 %v2760, 64
    %v2772 = vpop.permute.xlu0 %2771
    %v2774 = vsel %vm338, %v2763, %v2772
    %v2776 = vsel %vm438, %v2774, 0
    %2778 = vmatprep.subr.mxu0 %v1771
    %2779 = vmatpush1.msra.mxu0 %v1770
    %2780 = vmatprep.subr.mxu0 %v1773
    %2781 = vmatpush1.msra.mxu0 %v1772
    %2782 = vmatprep.subr.mxu0 %v1775
    %2783 = vmatpush1.msra.mxu0 %v1774
    %2784 = vmatprep.subr.mxu0 %v1777
    %2785 = vmatpush1.msra.mxu0 %v1776
    %2786 = vmatprep.subr.mxu0 %v1779
    %2787 = vmatpush1.msra.mxu0 %v1778
    %2788 = vmatprep.subr.mxu0 %v1781
    %2789 = vmatpush1.msra.mxu0 %v1780
    %2790 = vmatprep.subr.mxu0 %v1783
    %2791 = vmatpush1.msra.mxu0 %v1782
    %2792 = vmatprep.subr.mxu0 %v1785
    %2793 = vmatpush1.msra.mxu0 %v1784
    %2794 = vmatprep.subr.mxu0 0.0
    %2795 = vmatpush1.msra.mxu0 0.0
    %2796 = vmatprep.subr.mxu0 0.0
    %2797 = vmatpush1.msra.mxu0 0.0
    %2798 = vmatprep.subr.mxu0 0.0
    %2799 = vmatpush1.msra.mxu0 0.0
    %2800 = vmatprep.subr.mxu0 0.0
    %2801 = vmatpush1.msra.mxu0 0.0
    %2802 = vmatprep.subr.mxu0 0.0
    %2803 = vmatpush1.msra.mxu0 0.0
    %2804 = vmatprep.subr.mxu0 0.0
    %2805 = vmatpush1.msra.mxu0 0.0
    %2806 = vmatprep.subr.mxu0 0.0
    %2807 = vmatpush1.msra.mxu0 0.0
    %2808 = vmatprep.subr.mxu0 0.0
    %2809 = vmatpush1.msra.mxu0 0.0
    %2810 = vmatprep.subr.mxu0 0.0
    %2811 = vmatpush1.msra.mxu0 0.0
    %2812 = vmatprep.subr.mxu0 0.0
    %2813 = vmatpush1.msra.mxu0 0.0
    %2814 = vmatprep.subr.mxu0 0.0
    %2815 = vmatpush1.msra.mxu0 0.0
    %2816 = vmatprep.subr.mxu0 0.0
    %2817 = vmatpush1.msra.mxu0 0.0
    %2818 = vmatprep.subr.mxu0 0.0
    %2819 = vmatpush1.msra.mxu0 0.0
    %2820 = vmatprep.subr.mxu0 0.0
    %2821 = vmatpush1.msra.mxu0 0.0
    %2822 = vmatprep.subr.mxu0 0.0
    %2823 = vmatpush1.msra.mxu0 0.0
    %2824 = vmatprep.subr.mxu0 0.0
    %2825 = vmatpush1.msra.mxu0 0.0
    %2826 = vmatprep.subr.mxu0 0.0
    %2827 = vmatpush1.msra.mxu0 0.0
    %2828 = vmatprep.subr.mxu0 0.0
    %2829 = vmatpush1.msra.mxu0 0.0
    %2830 = vmatprep.subr.mxu0 0.0
    %2831 = vmatpush1.msra.mxu0 0.0
    %2832 = vmatprep.subr.mxu0 0.0
    %2833 = vmatpush1.msra.mxu0 0.0
    %2834 = vmatprep.subr.mxu0 0.0
    %2835 = vmatpush1.msra.mxu0 0.0
    %2836 = vmatprep.subr.mxu0 0.0
    %2837 = vmatpush1.msra.mxu0 0.0
    %2838 = vmatprep.subr.mxu0 0.0
    %2839 = vmatpush1.msra.mxu0 0.0
    %2840 = vmatprep.subr.mxu0 0.0
    %2841 = vmatpush1.msra.mxu0 0.0
    %2842 = vmatprep.mubr.f32.mxu0 0.0
    %2843 = vmatmul.mubr.f32.gmra.mrb[0].mxu0 %v2776
    %v2844 = vpop.f32.mrb[0].mxu0
    %v2845 = vadd.f32 0.0, %v2844
    %v2846 = vpop.f32.mrb[0].mxu0
    %v2847 = vadd.f32 0.0, %v2846
    %2848 = vdwg.mxu0
    %v2849 = vrot.slane %v1768, 6
    %v2851 = vadd.f32 %v2845, %v2849
    %v2852 = vadd.f32 %v2847, %v1767
    %v2853 = vxor.u32 %v2851, 2147483648
    %v2854 = vmul.f32 %v2853, 1.442695
    %v2855 = vpow.pop %v2854
    %v2856 = vadd.f32 %v2855, 1.0
    %v2857 = vrcp.pop %v2856
    %v2858 = vmul.f32 1.0, %v2857
    %v2859 = vtanh.pop %v2851
    %v2860 = vmul.f32 %v2858, %v2730
    %2862 = vrot.lane.b32.xlu0 %v2859, 64
    %v2863 = vpop.permute.xlu0 %2862
    %v2865 = vmul.f32 %v2858, %v2863
    %2867 = vrot.lane.b32.xlu0 %v2865, 32
    %v2868 = vpop.permute.xlu0 %2867
    %v2870 = vadd.f32 %v2860, %v2868
    %v2871 = vtanh.pop %v2870
    %2873 = vrot.lane.b32.xlu0 %v2871, 64
    %v2874 = vpop.permute.xlu0 %2873
    %v2876 = vmul.f32 %v2858, %v2874
    %v2877 = vxor.u32 %v2852, 2147483648
    %v2878 = vmul.f32 %v2877, 1.442695
    %v2879 = vpow.pop %v2878
    %v2880 = vadd.f32 %v2879, 1.0
    %v2881 = vrcp.pop %v2880
    %v2882 = vmul.f32 1.0, %v2881
    %v2883 = vtanh.pop %v2852
    %v2884 = vmul.f32 %v2882, %v2754
    %2886 = vrot.lane.b32.xlu0 %v2883, 64
    %v2887 = vpop.permute.xlu0 %2886
    %v2889 = vmul.f32 %v2882, %v2887
    %2891 = vrot.lane.b32.xlu0 %v2889, 32
    %v2892 = vpop.permute.xlu0 %2891
    %v2894 = vadd.f32 %v2884, %v2892
    %v2895 = vtanh.pop %v2894
    %2897 = vrot.lane.b32.xlu0 %v2895, 64
    %v2898 = vpop.permute.xlu0 %2897
    %v2900 = vmul.f32 %v2882, %v2898
    %2902 = vrot.lane.b32.xlu0 %v2876, 32
    %v2903 = vpop.permute.xlu0 %2902
    %2905 = vst.msk [vmem:[#allocation2 + $0xe] sm:$0x3] %vm570, %v2903
    %2907 = vrot.lane.b32.xlu0 %v2900, 32
    %v2908 = vpop.permute.xlu0 %2907
    %2910 = vst.msk [vmem:[#allocation3] sm:$0x3] %vm570, %v2908
    %v2911 = vld [vmem:[#allocation13] sm:$0xff]
    %v2912 = vld [vmem:[#allocation13 + $0x8] sm:$0xff]
    %v2913 = vld [vmem:[#allocation13 + $0x10] sm:$0xff]
    %v2914 = vld [vmem:[#allocation13 + $0x18] sm:$0xff]
    %v2915 = vld [vmem:[#allocation13 + $0x20] sm:$0xff]
    %v2916 = vld [vmem:[#allocation13 + $0x28] sm:$0xff]
    %v2917 = vld [vmem:[#allocation13 + $0x30] sm:$0xff]
    %v2918 = vld [vmem:[#allocation13 + $0x38] sm:$0xff]
    %v2919 = vld [vmem:[#allocation2] sm:$0xff]
    %v2920 = vld [vmem:[#allocation2 + $0x8] sm:$0xff]
    %v2921 = vld [vmem:[#allocation3] sm:$0xff]
    %v2922 = vld [vmem:[#allocation3 + $0x8] sm:$0xff]
    %v2924 = vsel %vm338, %v2921, 0
    %v2927 = vsel %vm338, %v2922, 0
    %2929 = vmatprep.subr.mxu0 0.0
    %2930 = vmatpush1.msra.mxu0 %v2915
    %2931 = vmatprep.subr.mxu0 0.0
    %2932 = vmatpush1.msra.mxu0 %v2916
    %2933 = vmatprep.subr.mxu0 0.0
    %2934 = vmatpush1.msra.mxu0 %v2917
    %2935 = vmatprep.subr.mxu0 0.0
    %2936 = vmatpush1.msra.mxu0 %v2918
    %2937 = vmatprep.subr.mxu0 0.0
    %2938 = vmatpush1.msra.mxu0 0.0
    %2939 = vmatprep.subr.mxu0 0.0
    %2940 = vmatpush1.msra.mxu0 0.0
    %2941 = vmatprep.subr.mxu0 0.0
    %2942 = vmatpush1.msra.mxu0 0.0
    %2943 = vmatprep.subr.mxu0 0.0
    %2944 = vmatpush1.msra.mxu0 0.0
    %2945 = vmatprep.subr.mxu0 0.0
    %2946 = vmatpush1.msra.mxu0 0.0
    %2947 = vmatprep.subr.mxu0 0.0
    %2948 = vmatpush1.msra.mxu0 0.0
    %2949 = vmatprep.subr.mxu0 0.0
    %2950 = vmatpush1.msra.mxu0 0.0
    %2951 = vmatprep.subr.mxu0 0.0
    %2952 = vmatpush1.msra.mxu0 0.0
    %2953 = vmatprep.subr.mxu0 0.0
    %2954 = vmatpush1.msra.mxu0 0.0
    %2955 = vmatprep.subr.mxu0 0.0
    %2956 = vmatpush1.msra.mxu0 0.0
    %2957 = vmatprep.subr.mxu0 0.0
    %2958 = vmatpush1.msra.mxu0 0.0
    %2959 = vmatprep.subr.mxu0 0.0
    %2960 = vmatpush1.msra.mxu0 0.0
    %2961 = vmatprep.subr.mxu0 0.0
    %2962 = vmatpush1.msra.mxu0 0.0
    %2963 = vmatprep.subr.mxu0 0.0
    %2964 = vmatpush1.msra.mxu0 0.0
    %2965 = vmatprep.subr.mxu0 0.0
    %2966 = vmatpush1.msra.mxu0 0.0
    %2967 = vmatprep.subr.mxu0 0.0
    %2968 = vmatpush1.msra.mxu0 0.0
    %2969 = vmatprep.subr.mxu0 0.0
    %2970 = vmatpush1.msra.mxu0 0.0
    %2971 = vmatprep.subr.mxu0 0.0
    %2972 = vmatpush1.msra.mxu0 0.0
    %2973 = vmatprep.subr.mxu0 0.0
    %2974 = vmatpush1.msra.mxu0 0.0
    %2975 = vmatprep.subr.mxu0 0.0
    %2976 = vmatpush1.msra.mxu0 0.0
    %2977 = vmatprep.subr.mxu0 0.0
    %2978 = vmatpush1.msra.mxu0 0.0
    %2979 = vmatprep.subr.mxu0 0.0
    %2980 = vmatpush1.msra.mxu0 0.0
    %2981 = vmatprep.subr.mxu0 0.0
    %2982 = vmatpush1.msra.mxu0 0.0
    %2983 = vmatprep.subr.mxu0 0.0
    %2984 = vmatpush1.msra.mxu0 0.0
    %2985 = vmatprep.subr.mxu0 0.0
    %2986 = vmatpush1.msra.mxu0 0.0
    %2987 = vmatprep.subr.mxu0 0.0
    %2988 = vmatpush1.msra.mxu0 0.0
    %2989 = vmatprep.subr.mxu0 0.0
    %2990 = vmatpush1.msra.mxu0 0.0
    %2991 = vmatprep.subr.mxu0 0.0
    %2992 = vmatpush1.msra.mxu0 0.0
    %2993 = vmatprep.mubr.f32.mxu0 0.0
    %2994 = vmatmul.mubr.f32.gmra.mrb[0].mxu0 %v2924
    %v2995 = vpop.f32.mrb[0].mxu0
    %v2996 = vadd.f32 0.0, %v2995
    %v2997 = vpop.f32.mrb[0].mxu0
    %2998 = vmatprep.mubr.f32.mxu0 0.0
    %2999 = vmatmul.mubr.f32.gmra.mrb[0].mxu0 %v2927
    %v3000 = vpop.f32.mrb[0].mxu0
    %v3001 = vadd.f32 0.0, %v3000
    %v3002 = vpop.f32.mrb[0].mxu0
    %3003 = vdwg.mxu0
    %v3005 = vsel %vm338, %v2919, 0
    %v3008 = vsel %vm338, %v2920, 0
    %3010 = vmatprep.subr.mxu0 0.0
    %3011 = vmatpush1.msra.mxu0 %v2911
    %3012 = vmatprep.subr.mxu0 0.0
    %3013 = vmatpush1.msra.mxu0 %v2912
    %3014 = vmatprep.subr.mxu0 0.0
    %3015 = vmatpush1.msra.mxu0 %v2913
    %3016 = vmatprep.subr.mxu0 0.0
    %3017 = vmatpush1.msra.mxu0 %v2914
    %3018 = vmatprep.subr.mxu0 0.0
    %3019 = vmatpush1.msra.mxu0 0.0
    %3020 = vmatprep.subr.mxu0 0.0
    %3021 = vmatpush1.msra.mxu0 0.0
    %3022 = vmatprep.subr.mxu0 0.0
    %3023 = vmatpush1.msra.mxu0 0.0
    %3024 = vmatprep.subr.mxu0 0.0
    %3025 = vmatpush1.msra.mxu0 0.0
    %3026 = vmatprep.subr.mxu0 0.0
    %3027 = vmatpush1.msra.mxu0 0.0
    %3028 = vmatprep.subr.mxu0 0.0
    %3029 = vmatpush1.msra.mxu0 0.0
    %3030 = vmatprep.subr.mxu0 0.0
    %3031 = vmatpush1.msra.mxu0 0.0
    %3032 = vmatprep.subr.mxu0 0.0
    %3033 = vmatpush1.msra.mxu0 0.0
    %3034 = vmatprep.subr.mxu0 0.0
    %3035 = vmatpush1.msra.mxu0 0.0
    %3036 = vmatprep.subr.mxu0 0.0
    %3037 = vmatpush1.msra.mxu0 0.0
    %3038 = vmatprep.subr.mxu0 0.0
    %3039 = vmatpush1.msra.mxu0 0.0
    %3040 = vmatprep.subr.mxu0 0.0
    %3041 = vmatpush1.msra.mxu0 0.0
    %3042 = vmatprep.subr.mxu0 0.0
    %3043 = vmatpush1.msra.mxu0 0.0
    %3044 = vmatprep.subr.mxu0 0.0
    %3045 = vmatpush1.msra.mxu0 0.0
    %3046 = vmatprep.subr.mxu0 0.0
    %3047 = vmatpush1.msra.mxu0 0.0
    %3048 = vmatprep.subr.mxu0 0.0
    %3049 = vmatpush1.msra.mxu0 0.0
    %3050 = vmatprep.subr.mxu0 0.0
    %3051 = vmatpush1.msra.mxu0 0.0
    %3052 = vmatprep.subr.mxu0 0.0
    %3053 = vmatpush1.msra.mxu0 0.0
    %3054 = vmatprep.subr.mxu0 0.0
    %3055 = vmatpush1.msra.mxu0 0.0
    %3056 = vmatprep.subr.mxu0 0.0
    %3057 = vmatpush1.msra.mxu0 0.0
    %3058 = vmatprep.subr.mxu0 0.0
    %3059 = vmatpush1.msra.mxu0 0.0
    %3060 = vmatprep.subr.mxu0 0.0
    %3061 = vmatpush1.msra.mxu0 0.0
    %3062 = vmatprep.subr.mxu0 0.0
    %3063 = vmatpush1.msra.mxu0 0.0
    %3064 = vmatprep.subr.mxu0 0.0
    %3065 = vmatpush1.msra.mxu0 0.0
    %3066 = vmatprep.subr.mxu0 0.0
    %3067 = vmatpush1.msra.mxu0 0.0
    %3068 = vmatprep.subr.mxu0 0.0
    %3069 = vmatpush1.msra.mxu0 0.0
    %3070 = vmatprep.subr.mxu0 0.0
    %3071 = vmatpush1.msra.mxu0 0.0
    %3072 = vmatprep.subr.mxu0 0.0
    %3073 = vmatpush1.msra.mxu0 0.0
    %3074 = vmatprep.mubr.f32.mxu0 0.0
    %3075 = vmatmul.mubr.f32.gmra.mrb[0].mxu0 %v3005
    %v3076 = vpop.f32.mrb[0].mxu0
    %v3077 = vadd.f32 %v2996, %v3076
    %v3078 = vpop.f32.mrb[0].mxu0
    %3079 = vmatprep.mubr.f32.mxu0 0.0
    %3080 = vmatmul.mubr.f32.gmra.mrb[0].mxu0 %v3008
    %v3081 = vpop.f32.mrb[0].mxu0
    %v3082 = vadd.f32 %v3001, %v3081
    %v3083 = vpop.f32.mrb[0].mxu0
    %3084 = vdwg.mxu0
    %v3085 = vld [vmem:[%s10] sm:$0x1]
    %v3087 = vlaneseq
    %v3088 = vshrl.u32 %v3087, 7
    %v3089 = vsub.s32 0, %v3088
    %v3090 = vrot.slane %v3085, %v3089
    %v3092 = vadd.f32 %v3077, %v3090
    %v3093 = vadd.f32 %v3082, %v3090
    %3094 = vmax.xlane.f32.xlu0 %v3092
    %v3095 = vpop.xlane.xlu0 %3094
    %3096 = vmax.xlane.f32.xlu0 %v3093
    %v3097 = vpop.xlane.xlu0 %3096
    %v3098 = vsub.f32 %v3092, %v3095
    %v3099 = vsub.f32 %v3093, %v3097
    %v3100 = vmul.f32 %v3098, 1.442695
    %v3101 = vpow.pop %v3100
    %v3102 = vmul.f32 %v3099, 1.442695
    %v3103 = vpow.pop %v3102
    %3104 = vadd.xlane.f32.xlu0 %v3101
    %v3105 = vpop.xlane.xlu0 %3104
    %3106 = vadd.xlane.f32.xlu0 %v3103
    %v3107 = vpop.xlane.xlu0 %3106
    %v3108 = vlog2.pop %v3105
    %v3109 = vmul.f32 %v3108, 0.6931472
    %v3110 = vlog2.pop %v3107
    %v3111 = vmul.f32 %v3110, 0.6931472
    %v3112 = vsub.f32 %v3098, %v3109
    %v3113 = vsub.f32 %v3099, %v3111
    %3114 = vst [vmem:[#allocation15] sm:$0xff] %v3112
    %3115 = vst [vmem:[#allocation15 + $0x8] sm:$0xff] %v3113
    // Predicated region
    $region70: #{lstm_block_forward.1} parent=1 // pred_check
      _
    $region71: #{lstm_block_forward.1} parent=1 // pred_check_branch
      %3117 = sbr.rel (0) target = $region73
    $region72: #{lstm_block_forward.1} parent=1 // pred_region
      %s3119 = ssub.s32 256, 256
      %3120 = vsyncadd [#allocation6], %s3119
      %s3121 = sshll.u32 [#allocation15], 4
      %s3122 = int_to_ptr.vmem [resolvable:$true] %s3121
      %3127 = dma.vmem_to_hbm [thread:$0]  %s3122, 256, %s11, [#allocation6], 128, 128, 8
    $region73: #{lstm_block_forward.1} parent=1 // pred_fallthru
      _
    // Predicated region
    $region74: #{lstm_block_forward.1} parent=1 // pred_check
      _
    $region75: #{lstm_block_forward.1} parent=1 // pred_check_branch
      %3129 = sbr.rel (0) target = $region77
    $region76: #{lstm_block_forward.1} parent=1 // pred_region
      %3130 = dma.done [#allocation6], 256
    $region77: #{lstm_block_forward.1} parent=1 // pred_fallthru
      _
    %3131 = vsyncpa [#allocation5], 1
    %3132 = vsyncpa [#allocation8], 1
    %3133 = vsyncpa [#allocation11], 1
    %3134 = vsyncpa [#allocation14], 1
    %3135 = vsyncpa [#allocation6], 1

</llo_original>
